<compile_context>
chip_gen: v6e
topology: v6e:2x2x1
jax: 0.10.0
libtpu: 0.0.40
codegen_flags: <defaults>
</compile_context>

<pallas_src>
import jax
import jax.numpy as jnp
from jax import lax
from jax.experimental import pallas as pl
from jax.experimental.pallas import tpu as pltpu  # noqa: F401  (no TPU-specific params needed for this gridless kernel)


def _sigmoid(v):
    return 1.0 / (1.0 + jnp.exp(-v))


# Contract the LAST dim of both operands: A (m,k) . B (n,k) -> (m,n)  (== A @ B.T)
_DN_LAST = (((1,), (1,)), ((), ()))


def _sent_encoder_kernel(x_ref,
                         wih_f_ref, whh_f_ref, bf_ref,
                         wih_r_ref, whh_r_ref, br_ref,
                         whc_ref, bhc_ref, uw_ref,
                         ctx_ref, alphas_ref):
    f32 = jnp.float32
    T = x_ref.shape[0]
    H = whh_f_ref.shape[1]

    x = x_ref[...]                                                    # (T, E)

    # ---- input projections for all timesteps, both directions (2 MXU GEMMs) ----
    xg_f = lax.dot_general(x, wih_f_ref[...], _DN_LAST,
                           preferred_element_type=f32) + bf_ref[...]  # (T, 4H)
    xg_r = lax.dot_general(x, wih_r_ref[...], _DN_LAST,
                           preferred_element_type=f32) + br_ref[...]  # (T, 4H)

    whh_f = whh_f_ref[...]                                            # (4H, H)
    whh_r = whh_r_ref[...]

    def lstm_cell(x_gates, h, c, whh):
        # PyTorch LSTM gate order: i, f, g, o
        g = x_gates + lax.dot_general(h, whh, _DN_LAST, preferred_element_type=f32)
        i = _sigmoid(g[:, 0 * H:1 * H])
        f = _sigmoid(g[:, 1 * H:2 * H])
        gg = jnp.tanh(g[:, 2 * H:3 * H])
        o = _sigmoid(g[:, 3 * H:4 * H])
        c_new = f * c + i * gg
        h_new = o * jnp.tanh(c_new)
        return h_new, c_new

    # ---- forward direction ----
    h = jnp.zeros((1, H), f32)
    c = jnp.zeros((1, H), f32)
    hs_f = []
    for t in range(T):                      # static unroll (T small & static)
        h, c = lstm_cell(xg_f[t:t + 1, :], h, c, whh_f)
        hs_f.append(h)

    # ---- reverse direction ----
    h = jnp.zeros((1, H), f32)
    c = jnp.zeros((1, H), f32)
    hs_r = [None] * T
    for t in range(T - 1, -1, -1):
        h, c = lstm_cell(xg_r[t:t + 1, :], h, c, whh_r)
        hs_r[t] = h

    rec = jnp.concatenate([jnp.concatenate(hs_f, axis=0),
                           jnp.concatenate(hs_r, axis=0)], axis=1)    # (T, 2H)

    # ---- attention ----
    ut = jnp.tanh(lax.dot_general(rec, whc_ref[...], _DN_LAST,
                                  preferred_element_type=f32) + bhc_ref[...])  # (T, 2H)
    scores = jnp.dot(ut, uw_ref[...], preferred_element_type=f32)     # (T, 1)
    m = jnp.max(scores, axis=0, keepdims=True)
    e = jnp.exp(scores - m)
    alphas = e / jnp.sum(e, axis=0, keepdims=True)                    # (T, 1)

    alphas_ref[...] = alphas.astype(alphas_ref.dtype)
    ctx = jnp.sum(rec * alphas, axis=0, keepdims=True)                # (1, 2H)
    ctx_ref[...] = ctx.astype(ctx_ref.dtype)


def sent_encoder_forward(in_seq, params):
    """Pallas equivalent of sent_encoder.forward (batch size 1).

    in_seq : (..., embed_size) -- flattened to (T, embed_size), like .view(-1, 1, E)
    params : dict of f32 arrays in PyTorch layout:
        w_ih_f, w_ih_r : (4H, E)   LSTM input-hidden weights (forward / reverse)
        w_hh_f, w_hh_r : (4H, H)   LSTM hidden-hidden weights
        b_ih_f, b_hh_f, b_ih_r, b_hh_r : (4H,)
        w_hc : (2H, 2H), b_hc : (2H,)   hidden2context Linear
        uw   : (2H, 1)                  attention vector
    Returns (context (2H,), alphas (T, 1)).
    """
    E = params["w_ih_f"].shape[1]
    H = params["w_hh_f"].shape[1]
    H2, H4 = 2 * H, 4 * H

    x = in_seq.reshape(-1, E).astype(jnp.float32)
    T = x.shape[0]

    # Fuse the two LSTM bias vectors once in the wrapper; keep all biases 2-D.
    b_f = (params["b_ih_f"] + params["b_hh_f"]).reshape(1, H4).astype(jnp.float32)
    b_r = (params["b_ih_r"] + params["b_hh_r"]).reshape(1, H4).astype(jnp.float32)
    b_hc = params["b_hc"].reshape(1, H2).astype(jnp.float32)

    flops = (2 * 2 * T * E * H4        # input projections (both directions)
             + 2 * 2 * T * H * H4      # recurrent projections
             + 2 * T * H2 * H2         # hidden2context
             + 2 * T * H2              # attention scores
             + 2 * T * H2)             # context reduction
    transcendentals = 2 * T * 5 * H + T * H2 + T
    bytes_accessed = 4 * (T * E + 2 * (H4 * E + H4 * H + H4)
                          + H2 * H2 + 3 * H2 + 2 * T)

    def full(shape):
        return pl.BlockSpec(shape, lambda: (0,) * len(shape))

    context, alphas = pl.pallas_call(
        _sent_encoder_kernel,
        out_shape=(jax.ShapeDtypeStruct((1, H2), jnp.float32),
                   jax.ShapeDtypeStruct((T, 1), jnp.float32)),
        in_specs=[
            full((T, E)),
            full((H4, E)), full((H4, H)), full((1, H4)),
            full((H4, E)), full((H4, H)), full((1, H4)),
            full((H2, H2)), full((1, H2)), full((H2, 1)),
        ],
        out_specs=(full((1, H2)), full((T, 1))),
        cost_estimate=pl.CostEstimate(flops=flops,
                                      transcendentals=transcendentals,
                                      bytes_accessed=bytes_accessed),
    )(x,
      params["w_ih_f"], params["w_hh_f"], b_f,
      params["w_ih_r"], params["w_hh_r"], b_r,
      params["w_hc"], b_hc, params["uw"])

    return context.reshape(H2), alphas


def _reference_forward(in_seq, params):
    """Pure-JAX reference with identical PyTorch LSTM / attention semantics."""
    E = params["w_ih_f"].shape[1]
    H = params["w_hh_f"].shape[1]
    x = in_seq.reshape(-1, E).astype(jnp.float32)
    T = x.shape[0]

    def run_dir(w_ih, w_hh, b_ih, b_hh, reverse):
        h = jnp.zeros((H,), jnp.float32)
        c = jnp.zeros((H,), jnp.float32)
        hs = [None] * T
        order = range(T - 1, -1, -1) if reverse else range(T)
        for t in order:
            g = x[t] @ w_ih.T + h @ w_hh.T + b_ih + b_hh
            i = _sigmoid(g[0 * H:1 * H])
            f = _sigmoid(g[1 * H:2 * H])
            gg = jnp.tanh(g[2 * H:3 * H])
            o = _sigmoid(g[3 * H:4 * H])
            c = f * c + i * gg
            h = o * jnp.tanh(c)
            hs[t] = h
        return jnp.stack(hs, axis=0)

    rec = jnp.concatenate(
        [run_dir(params["w_ih_f"], params["w_hh_f"],
                 params["b_ih_f"], params["b_hh_f"], False),
         run_dir(params["w_ih_r"], params["w_hh_r"],
                 params["b_ih_r"], params["b_hh_r"], True)],
        axis=1)
    ut = jnp.tanh(rec @ params["w_hc"].T + params["b_hc"])
    scores = ut @ params["uw"]
    alphas = jax.nn.softmax(scores, axis=0)
    context = jnp.sum(rec * alphas, axis=0)
    return context, alphas


if __name__ == "__main__":
    # Small, deterministic setup: T sentences of embed_size features, batch = 1.
    T = 8
    embed_size = 32
    nHidden = 16
    H2, H4 = 2 * nHidden, 4 * nHidden

    key = jax.random.PRNGKey(0)
    ks = jax.random.split(key, 12)

    bound = 1.0 / float(jnp.sqrt(jnp.float32(nHidden)))

    def u(k, shape):
        return jax.random.uniform(k, shape, minval=-bound, maxval=bound,
                                  dtype=jnp.float32)

    params = {
        "w_ih_f": u(ks[0], (H4, embed_size)),
        "w_hh_f": u(ks[1], (H4, nHidden)),
        "b_ih_f": u(ks[2], (H4,)),
        "b_hh_f": u(ks[3], (H4,)),
        "w_ih_r": u(ks[4], (H4, embed_size)),
        "w_hh_r": u(ks[5], (H4, nHidden)),
        "b_ih_r": u(ks[6], (H4,)),
        "b_hh_r": u(ks[7], (H4,)),
        "w_hc": u(ks[8], (H2, H2)),
        "b_hc": u(ks[9], (H2,)),
        "uw": jax.random.normal(ks[10], (H2, 1), dtype=jnp.float32),
    }
    in_seq = jax.random.normal(ks[11], (T, embed_size), dtype=jnp.float32)

    context, alphas = sent_encoder_forward(in_seq, params)
    context = jax.block_until_ready(context)
    alphas = jax.block_until_ready(alphas)

    ref_ctx, ref_alphas = _reference_forward(in_seq, params)

    assert context.shape == (H2,), context.shape
    assert alphas.shape == (T, 1), alphas.shape
    # Tolerance allows for MXU f32 multi-pass vs XLA dot precision differences
    # compounded through the 8-step recurrence; real bugs produce O(1e-1) errors.
    assert jnp.allclose(alphas, ref_alphas, atol=1e-3, rtol=1e-3), "alphas mismatch"
    assert jnp.allclose(context, ref_ctx, atol=1e-3, rtol=1e-3), "context mismatch"
    assert jnp.allclose(jnp.sum(alphas), 1.0, atol=1e-5), "alphas do not sum to 1"

    print("KERNEL_OK")
</pallas_src>

<mosaic_0001>
module attributes {stable_mosaic.version = 11 : i64} {
  func.func @_sent_encoder_kernel(%arg0: memref<8x32xf32, #tpu.memory_space<vmem>>, %arg1: memref<64x32xf32, #tpu.memory_space<vmem>>, %arg2: memref<64x16xf32, #tpu.memory_space<vmem>>, %arg3: memref<1x64xf32, #tpu.memory_space<vmem>>, %arg4: memref<64x32xf32, #tpu.memory_space<vmem>>, %arg5: memref<64x16xf32, #tpu.memory_space<vmem>>, %arg6: memref<1x64xf32, #tpu.memory_space<vmem>>, %arg7: memref<32x32xf32, #tpu.memory_space<vmem>>, %arg8: memref<1x32xf32, #tpu.memory_space<vmem>>, %arg9: memref<32x1xf32, #tpu.memory_space<vmem>>, %arg10: memref<1x32xf32, #tpu.memory_space<vmem>>, %arg11: memref<8x1xf32, #tpu.memory_space<vmem>>) attributes {dimension_semantics = [], scalar_prefetch = 0 : i64, scratch_operands = 0 : i64, tpu.core_type = #tpu.core_type<tc>} {
    %c0 = arith.constant 0 : index
    %c0_0 = arith.constant 0 : index
    %0 = vector.load %arg0[%c0, %c0_0] : memref<8x32xf32, #tpu.memory_space<vmem>>, vector<8x32xf32>
    %c0_1 = arith.constant 0 : index
    %c0_2 = arith.constant 0 : index
    %1 = vector.load %arg1[%c0_1, %c0_2] : memref<64x32xf32, #tpu.memory_space<vmem>>, vector<64x32xf32>
    %cst = arith.constant dense<0.000000e+00> : vector<8x64xf32>
    %2 = tpu.matmul %0, %1, %cst {dimension_numbers = #tpu.dot_dimension_numbers<[1], [1], [0], [0], [0, 0, 1, 0], [], []>} : vector<8x32xf32>, vector<64x32xf32>, vector<8x64xf32> -> vector<8x64xf32>
    %c0_3 = arith.constant 0 : index
    %c0_4 = arith.constant 0 : index
    %3 = vector.load %arg3[%c0_3, %c0_4] : memref<1x64xf32, #tpu.memory_space<vmem>>, vector<1x64xf32>
    %4 = vector.broadcast %3 : vector<1x64xf32> to vector<8x64xf32>
    %5 = arith.addf %2, %4 : vector<8x64xf32>
    %c0_5 = arith.constant 0 : index
    %c0_6 = arith.constant 0 : index
    %6 = vector.load %arg4[%c0_5, %c0_6] : memref<64x32xf32, #tpu.memory_space<vmem>>, vector<64x32xf32>
    %cst_7 = arith.constant dense<0.000000e+00> : vector<8x64xf32>
    %7 = tpu.matmul %0, %6, %cst_7 {dimension_numbers = #tpu.dot_dimension_numbers<[1], [1], [0], [0], [0, 0, 1, 0], [], []>} : vector<8x32xf32>, vector<64x32xf32>, vector<8x64xf32> -> vector<8x64xf32>
    %c0_8 = arith.constant 0 : index
    %c0_9 = arith.constant 0 : index
    %8 = vector.load %arg6[%c0_8, %c0_9] : memref<1x64xf32, #tpu.memory_space<vmem>>, vector<1x64xf32>
    %9 = vector.broadcast %8 : vector<1x64xf32> to vector<8x64xf32>
    %10 = arith.addf %7, %9 : vector<8x64xf32>
    %c0_10 = arith.constant 0 : index
    %c0_11 = arith.constant 0 : index
    %11 = vector.load %arg2[%c0_10, %c0_11] : memref<64x16xf32, #tpu.memory_space<vmem>>, vector<64x16xf32>
    %c0_12 = arith.constant 0 : index
    %c0_13 = arith.constant 0 : index
    %12 = vector.load %arg5[%c0_12, %c0_13] : memref<64x16xf32, #tpu.memory_space<vmem>>, vector<64x16xf32>
    %cst_14 = arith.constant 0.000000e+00 : f32
    %13 = vector.broadcast %cst_14 : f32 to vector<1x16xf32>
    %cst_15 = arith.constant 0.000000e+00 : f32
    %14 = vector.broadcast %cst_15 : f32 to vector<1x16xf32>
    %15 = vector.extract_strided_slice %5 {offsets = [0, 0], sizes = [1, 64], strides = [1, 1]} : vector<8x64xf32> to vector<1x64xf32>
    %cst_16 = arith.constant dense<0.000000e+00> : vector<1x64xf32>
    %16 = tpu.matmul %13, %11, %cst_16 {dimension_numbers = #tpu.dot_dimension_numbers<[1], [1], [0], [0], [0, 0, 1, 0], [], []>} : vector<1x16xf32>, vector<64x16xf32>, vector<1x64xf32> -> vector<1x64xf32>
    %17 = arith.addf %15, %16 : vector<1x64xf32>
    %18 = vector.extract_strided_slice %17 {offsets = [0, 0], sizes = [1, 16], strides = [1, 1]} : vector<1x64xf32> to vector<1x16xf32>
    %cst_17 = arith.constant 0.000000e+00 : f32
    %19 = vector.broadcast %cst_17 : f32 to vector<1x16xf32>
    %20 = arith.subf %19, %18 : vector<1x16xf32>
    %21 = math.exp %20 : vector<1x16xf32>
    %cst_18 = arith.constant 1.000000e+00 : f32
    %22 = vector.broadcast %cst_18 : f32 to vector<1x16xf32>
    %23 = arith.addf %22, %21 : vector<1x16xf32>
    %cst_19 = arith.constant 1.000000e+00 : f32
    %24 = vector.broadcast %cst_19 : f32 to vector<1x16xf32>
    %25 = arith.divf %24, %23 : vector<1x16xf32>
    %26 = vector.extract_strided_slice %17 {offsets = [0, 16], sizes = [1, 16], strides = [1, 1]} : vector<1x64xf32> to vector<1x16xf32>
    %cst_20 = arith.constant 0.000000e+00 : f32
    %27 = vector.broadcast %cst_20 : f32 to vector<1x16xf32>
    %28 = arith.subf %27, %26 : vector<1x16xf32>
    %29 = math.exp %28 : vector<1x16xf32>
    %cst_21 = arith.constant 1.000000e+00 : f32
    %30 = vector.broadcast %cst_21 : f32 to vector<1x16xf32>
    %31 = arith.addf %30, %29 : vector<1x16xf32>
    %cst_22 = arith.constant 1.000000e+00 : f32
    %32 = vector.broadcast %cst_22 : f32 to vector<1x16xf32>
    %33 = arith.divf %32, %31 : vector<1x16xf32>
    %34 = vector.extract_strided_slice %17 {offsets = [0, 32], sizes = [1, 16], strides = [1, 1]} : vector<1x64xf32> to vector<1x16xf32>
    %35 = math.tanh %34 : vector<1x16xf32>
    %36 = vector.extract_strided_slice %17 {offsets = [0, 48], sizes = [1, 16], strides = [1, 1]} : vector<1x64xf32> to vector<1x16xf32>
    %cst_23 = arith.constant 0.000000e+00 : f32
    %37 = vector.broadcast %cst_23 : f32 to vector<1x16xf32>
    %38 = arith.subf %37, %36 : vector<1x16xf32>
    %39 = math.exp %38 : vector<1x16xf32>
    %cst_24 = arith.constant 1.000000e+00 : f32
    %40 = vector.broadcast %cst_24 : f32 to vector<1x16xf32>
    %41 = arith.addf %40, %39 : vector<1x16xf32>
    %cst_25 = arith.constant 1.000000e+00 : f32
    %42 = vector.broadcast %cst_25 : f32 to vector<1x16xf32>
    %43 = arith.divf %42, %41 : vector<1x16xf32>
    %44 = arith.mulf %33, %14 : vector<1x16xf32>
    %45 = arith.mulf %25, %35 : vector<1x16xf32>
    %46 = arith.addf %44, %45 : vector<1x16xf32>
    %47 = math.tanh %46 : vector<1x16xf32>
    %48 = arith.mulf %43, %47 : vector<1x16xf32>
    %49 = vector.extract_strided_slice %5 {offsets = [1, 0], sizes = [1, 64], strides = [1, 1]} : vector<8x64xf32> to vector<1x64xf32>
    %cst_26 = arith.constant dense<0.000000e+00> : vector<1x64xf32>
    %50 = tpu.matmul %48, %11, %cst_26 {dimension_numbers = #tpu.dot_dimension_numbers<[1], [1], [0], [0], [0, 0, 1, 0], [], []>} : vector<1x16xf32>, vector<64x16xf32>, vector<1x64xf32> -> vector<1x64xf32>
    %51 = arith.addf %49, %50 : vector<1x64xf32>
    %52 = vector.extract_strided_slice %51 {offsets = [0, 0], sizes = [1, 16], strides = [1, 1]} : vector<1x64xf32> to vector<1x16xf32>
    %cst_27 = arith.constant 0.000000e+00 : f32
    %53 = vector.broadcast %cst_27 : f32 to vector<1x16xf32>
    %54 = arith.subf %53, %52 : vector<1x16xf32>
    %55 = math.exp %54 : vector<1x16xf32>
    %cst_28 = arith.constant 1.000000e+00 : f32
    %56 = vector.broadcast %cst_28 : f32 to vector<1x16xf32>
    %57 = arith.addf %56, %55 : vector<1x16xf32>
    %cst_29 = arith.constant 1.000000e+00 : f32
    %58 = vector.broadcast %cst_29 : f32 to vector<1x16xf32>
    %59 = arith.divf %58, %57 : vector<1x16xf32>
    %60 = vector.extract_strided_slice %51 {offsets = [0, 16], sizes = [1, 16], strides = [1, 1]} : vector<1x64xf32> to vector<1x16xf32>
    %cst_30 = arith.constant 0.000000e+00 : f32
    %61 = vector.broadcast %cst_30 : f32 to vector<1x16xf32>
    %62 = arith.subf %61, %60 : vector<1x16xf32>
    %63 = math.exp %62 : vector<1x16xf32>
    %cst_31 = arith.constant 1.000000e+00 : f32
    %64 = vector.broadcast %cst_31 : f32 to vector<1x16xf32>
    %65 = arith.addf %64, %63 : vector<1x16xf32>
    %cst_32 = arith.constant 1.000000e+00 : f32
    %66 = vector.broadcast %cst_32 : f32 to vector<1x16xf32>
    %67 = arith.divf %66, %65 : vector<1x16xf32>
    %68 = vector.extract_strided_slice %51 {offsets = [0, 32], sizes = [1, 16], strides = [1, 1]} : vector<1x64xf32> to vector<1x16xf32>
    %69 = math.tanh %68 : vector<1x16xf32>
    %70 = vector.extract_strided_slice %51 {offsets = [0, 48], sizes = [1, 16], strides = [1, 1]} : vector<1x64xf32> to vector<1x16xf32>
    %cst_33 = arith.constant 0.000000e+00 : f32
    %71 = vector.broadcast %cst_33 : f32 to vector<1x16xf32>
    %72 = arith.subf %71, %70 : vector<1x16xf32>
    %73 = math.exp %72 : vector<1x16xf32>
    %cst_34 = arith.constant 1.000000e+00 : f32
    %74 = vector.broadcast %cst_34 : f32 to vector<1x16xf32>
    %75 = arith.addf %74, %73 : vector<1x16xf32>
    %cst_35 = arith.constant 1.000000e+00 : f32
    %76 = vector.broadcast %cst_35 : f32 to vector<1x16xf32>
    %77 = arith.divf %76, %75 : vector<1x16xf32>
    %78 = arith.mulf %67, %46 : vector<1x16xf32>
    %79 = arith.mulf %59, %69 : vector<1x16xf32>
    %80 = arith.addf %78, %79 : vector<1x16xf32>
    %81 = math.tanh %80 : vector<1x16xf32>
    %82 = arith.mulf %77, %81 : vector<1x16xf32>
    %83 = vector.extract_strided_slice %5 {offsets = [2, 0], sizes = [1, 64], strides = [1, 1]} : vector<8x64xf32> to vector<1x64xf32>
    %cst_36 = arith.constant dense<0.000000e+00> : vector<1x64xf32>
    %84 = tpu.matmul %82, %11, %cst_36 {dimension_numbers = #tpu.dot_dimension_numbers<[1], [1], [0], [0], [0, 0, 1, 0], [], []>} : vector<1x16xf32>, vector<64x16xf32>, vector<1x64xf32> -> vector<1x64xf32>
    %85 = arith.addf %83, %84 : vector<1x64xf32>
    %86 = vector.extract_strided_slice %85 {offsets = [0, 0], sizes = [1, 16], strides = [1, 1]} : vector<1x64xf32> to vector<1x16xf32>
    %cst_37 = arith.constant 0.000000e+00 : f32
    %87 = vector.broadcast %cst_37 : f32 to vector<1x16xf32>
    %88 = arith.subf %87, %86 : vector<1x16xf32>
    %89 = math.exp %88 : vector<1x16xf32>
    %cst_38 = arith.constant 1.000000e+00 : f32
    %90 = vector.broadcast %cst_38 : f32 to vector<1x16xf32>
    %91 = arith.addf %90, %89 : vector<1x16xf32>
    %cst_39 = arith.constant 1.000000e+00 : f32
    %92 = vector.broadcast %cst_39 : f32 to vector<1x16xf32>
    %93 = arith.divf %92, %91 : vector<1x16xf32>
    %94 = vector.extract_strided_slice %85 {offsets = [0, 16], sizes = [1, 16], strides = [1, 1]} : vector<1x64xf32> to vector<1x16xf32>
    %cst_40 = arith.constant 0.000000e+00 : f32
    %95 = vector.broadcast %cst_40 : f32 to vector<1x16xf32>
    %96 = arith.subf %95, %94 : vector<1x16xf32>
    %97 = math.exp %96 : vector<1x16xf32>
    %cst_41 = arith.constant 1.000000e+00 : f32
    %98 = vector.broadcast %cst_41 : f32 to vector<1x16xf32>
    %99 = arith.addf %98, %97 : vector<1x16xf32>
    %cst_42 = arith.constant 1.000000e+00 : f32
    %100 = vector.broadcast %cst_42 : f32 to vector<1x16xf32>
    %101 = arith.divf %100, %99 : vector<1x16xf32>
    %102 = vector.extract_strided_slice %85 {offsets = [0, 32], sizes = [1, 16], strides = [1, 1]} : vector<1x64xf32> to vector<1x16xf32>
    %103 = math.tanh %102 : vector<1x16xf32>
    %104 = vector.extract_strided_slice %85 {offsets = [0, 48], sizes = [1, 16], strides = [1, 1]} : vector<1x64xf32> to vector<1x16xf32>
    %cst_43 = arith.constant 0.000000e+00 : f32
    %105 = vector.broadcast %cst_43 : f32 to vector<1x16xf32>
    %106 = arith.subf %105, %104 : vector<1x16xf32>
    %107 = math.exp %106 : vector<1x16xf32>
    %cst_44 = arith.constant 1.000000e+00 : f32
    %108 = vector.broadcast %cst_44 : f32 to vector<1x16xf32>
    %109 = arith.addf %108, %107 : vector<1x16xf32>
    %cst_45 = arith.constant 1.000000e+00 : f32
    %110 = vector.broadcast %cst_45 : f32 to vector<1x16xf32>
    %111 = arith.divf %110, %109 : vector<1x16xf32>
    %112 = arith.mulf %101, %80 : vector<1x16xf32>
    %113 = arith.mulf %93, %103 : vector<1x16xf32>
    %114 = arith.addf %112, %113 : vector<1x16xf32>
    %115 = math.tanh %114 : vector<1x16xf32>
    %116 = arith.mulf %111, %115 : vector<1x16xf32>
    %117 = vector.extract_strided_slice %5 {offsets = [3, 0], sizes = [1, 64], strides = [1, 1]} : vector<8x64xf32> to vector<1x64xf32>
    %cst_46 = arith.constant dense<0.000000e+00> : vector<1x64xf32>
    %118 = tpu.matmul %116, %11, %cst_46 {dimension_numbers = #tpu.dot_dimension_numbers<[1], [1], [0], [0], [0, 0, 1, 0], [], []>} : vector<1x16xf32>, vector<64x16xf32>, vector<1x64xf32> -> vector<1x64xf32>
    %119 = arith.addf %117, %118 : vector<1x64xf32>
    %120 = vector.extract_strided_slice %119 {offsets = [0, 0], sizes = [1, 16], strides = [1, 1]} : vector<1x64xf32> to vector<1x16xf32>
    %cst_47 = arith.constant 0.000000e+00 : f32
    %121 = vector.broadcast %cst_47 : f32 to vector<1x16xf32>
    %122 = arith.subf %121, %120 : vector<1x16xf32>
    %123 = math.exp %122 : vector<1x16xf32>
    %cst_48 = arith.constant 1.000000e+00 : f32
    %124 = vector.broadcast %cst_48 : f32 to vector<1x16xf32>
    %125 = arith.addf %124, %123 : vector<1x16xf32>
    %cst_49 = arith.constant 1.000000e+00 : f32
    %126 = vector.broadcast %cst_49 : f32 to vector<1x16xf32>
    %127 = arith.divf %126, %125 : vector<1x16xf32>
    %128 = vector.extract_strided_slice %119 {offsets = [0, 16], sizes = [1, 16], strides = [1, 1]} : vector<1x64xf32> to vector<1x16xf32>
    %cst_50 = arith.constant 0.000000e+00 : f32
    %129 = vector.broadcast %cst_50 : f32 to vector<1x16xf32>
    %130 = arith.subf %129, %128 : vector<1x16xf32>
    %131 = math.exp %130 : vector<1x16xf32>
    %cst_51 = arith.constant 1.000000e+00 : f32
    %132 = vector.broadcast %cst_51 : f32 to vector<1x16xf32>
    %133 = arith.addf %132, %131 : vector<1x16xf32>
    %cst_52 = arith.constant 1.000000e+00 : f32
    %134 = vector.broadcast %cst_52 : f32 to vector<1x16xf32>
    %135 = arith.divf %134, %133 : vector<1x16xf32>
    %136 = vector.extract_strided_slice %119 {offsets = [0, 32], sizes = [1, 16], strides = [1, 1]} : vector<1x64xf32> to vector<1x16xf32>
    %137 = math.tanh %136 : vector<1x16xf32>
    %138 = vector.extract_strided_slice %119 {offsets = [0, 48], sizes = [1, 16], strides = [1, 1]} : vector<1x64xf32> to vector<1x16xf32>
    %cst_53 = arith.constant 0.000000e+00 : f32
    %139 = vector.broadcast %cst_53 : f32 to vector<1x16xf32>
    %140 = arith.subf %139, %138 : vector<1x16xf32>
    %141 = math.exp %140 : vector<1x16xf32>
    %cst_54 = arith.constant 1.000000e+00 : f32
    %142 = vector.broadcast %cst_54 : f32 to vector<1x16xf32>
    %143 = arith.addf %142, %141 : vector<1x16xf32>
    %cst_55 = arith.constant 1.000000e+00 : f32
    %144 = vector.broadcast %cst_55 : f32 to vector<1x16xf32>
    %145 = arith.divf %144, %143 : vector<1x16xf32>
    %146 = arith.mulf %135, %114 : vector<1x16xf32>
    %147 = arith.mulf %127, %137 : vector<1x16xf32>
    %148 = arith.addf %146, %147 : vector<1x16xf32>
    %149 = math.tanh %148 : vector<1x16xf32>
    %150 = arith.mulf %145, %149 : vector<1x16xf32>
    %151 = vector.extract_strided_slice %5 {offsets = [4, 0], sizes = [1, 64], strides = [1, 1]} : vector<8x64xf32> to vector<1x64xf32>
    %cst_56 = arith.constant dense<0.000000e+00> : vector<1x64xf32>
    %152 = tpu.matmul %150, %11, %cst_56 {dimension_numbers = #tpu.dot_dimension_numbers<[1], [1], [0], [0], [0, 0, 1, 0], [], []>} : vector<1x16xf32>, vector<64x16xf32>, vector<1x64xf32> -> vector<1x64xf32>
    %153 = arith.addf %151, %152 : vector<1x64xf32>
    %154 = vector.extract_strided_slice %153 {offsets = [0, 0], sizes = [1, 16], strides = [1, 1]} : vector<1x64xf32> to vector<1x16xf32>
    %cst_57 = arith.constant 0.000000e+00 : f32
    %155 = vector.broadcast %cst_57 : f32 to vector<1x16xf32>
    %156 = arith.subf %155, %154 : vector<1x16xf32>
    %157 = math.exp %156 : vector<1x16xf32>
    %cst_58 = arith.constant 1.000000e+00 : f32
    %158 = vector.broadcast %cst_58 : f32 to vector<1x16xf32>
    %159 = arith.addf %158, %157 : vector<1x16xf32>
    %cst_59 = arith.constant 1.000000e+00 : f32
    %160 = vector.broadcast %cst_59 : f32 to vector<1x16xf32>
    %161 = arith.divf %160, %159 : vector<1x16xf32>
    %162 = vector.extract_strided_slice %153 {offsets = [0, 16], sizes = [1, 16], strides = [1, 1]} : vector<1x64xf32> to vector<1x16xf32>
    %cst_60 = arith.constant 0.000000e+00 : f32
    %163 = vector.broadcast %cst_60 : f32 to vector<1x16xf32>
    %164 = arith.subf %163, %162 : vector<1x16xf32>
    %165 = math.exp %164 : vector<1x16xf32>
    %cst_61 = arith.constant 1.000000e+00 : f32
    %166 = vector.broadcast %cst_61 : f32 to vector<1x16xf32>
    %167 = arith.addf %166, %165 : vector<1x16xf32>
    %cst_62 = arith.constant 1.000000e+00 : f32
    %168 = vector.broadcast %cst_62 : f32 to vector<1x16xf32>
    %169 = arith.divf %168, %167 : vector<1x16xf32>
    %170 = vector.extract_strided_slice %153 {offsets = [0, 32], sizes = [1, 16], strides = [1, 1]} : vector<1x64xf32> to vector<1x16xf32>
    %171 = math.tanh %170 : vector<1x16xf32>
    %172 = vector.extract_strided_slice %153 {offsets = [0, 48], sizes = [1, 16], strides = [1, 1]} : vector<1x64xf32> to vector<1x16xf32>
    %cst_63 = arith.constant 0.000000e+00 : f32
    %173 = vector.broadcast %cst_63 : f32 to vector<1x16xf32>
    %174 = arith.subf %173, %172 : vector<1x16xf32>
    %175 = math.exp %174 : vector<1x16xf32>
    %cst_64 = arith.constant 1.000000e+00 : f32
    %176 = vector.broadcast %cst_64 : f32 to vector<1x16xf32>
    %177 = arith.addf %176, %175 : vector<1x16xf32>
    %cst_65 = arith.constant 1.000000e+00 : f32
    %178 = vector.broadcast %cst_65 : f32 to vector<1x16xf32>
    %179 = arith.divf %178, %177 : vector<1x16xf32>
    %180 = arith.mulf %169, %148 : vector<1x16xf32>
    %181 = arith.mulf %161, %171 : vector<1x16xf32>
    %182 = arith.addf %180, %181 : vector<1x16xf32>
    %183 = math.tanh %182 : vector<1x16xf32>
    %184 = arith.mulf %179, %183 : vector<1x16xf32>
    %185 = vector.extract_strided_slice %5 {offsets = [5, 0], sizes = [1, 64], strides = [1, 1]} : vector<8x64xf32> to vector<1x64xf32>
    %cst_66 = arith.constant dense<0.000000e+00> : vector<1x64xf32>
    %186 = tpu.matmul %184, %11, %cst_66 {dimension_numbers = #tpu.dot_dimension_numbers<[1], [1], [0], [0], [0, 0, 1, 0], [], []>} : vector<1x16xf32>, vector<64x16xf32>, vector<1x64xf32> -> vector<1x64xf32>
    %187 = arith.addf %185, %186 : vector<1x64xf32>
    %188 = vector.extract_strided_slice %187 {offsets = [0, 0], sizes = [1, 16], strides = [1, 1]} : vector<1x64xf32> to vector<1x16xf32>
    %cst_67 = arith.constant 0.000000e+00 : f32
    %189 = vector.broadcast %cst_67 : f32 to vector<1x16xf32>
    %190 = arith.subf %189, %188 : vector<1x16xf32>
    %191 = math.exp %190 : vector<1x16xf32>
    %cst_68 = arith.constant 1.000000e+00 : f32
    %192 = vector.broadcast %cst_68 : f32 to vector<1x16xf32>
    %193 = arith.addf %192, %191 : vector<1x16xf32>
    %cst_69 = arith.constant 1.000000e+00 : f32
    %194 = vector.broadcast %cst_69 : f32 to vector<1x16xf32>
    %195 = arith.divf %194, %193 : vector<1x16xf32>
    %196 = vector.extract_strided_slice %187 {offsets = [0, 16], sizes = [1, 16], strides = [1, 1]} : vector<1x64xf32> to vector<1x16xf32>
    %cst_70 = arith.constant 0.000000e+00 : f32
    %197 = vector.broadcast %cst_70 : f32 to vector<1x16xf32>
    %198 = arith.subf %197, %196 : vector<1x16xf32>
    %199 = math.exp %198 : vector<1x16xf32>
    %cst_71 = arith.constant 1.000000e+00 : f32
    %200 = vector.broadcast %cst_71 : f32 to vector<1x16xf32>
    %201 = arith.addf %200, %199 : vector<1x16xf32>
    %cst_72 = arith.constant 1.000000e+00 : f32
    %202 = vector.broadcast %cst_72 : f32 to vector<1x16xf32>
    %203 = arith.divf %202, %201 : vector<1x16xf32>
    %204 = vector.extract_strided_slice %187 {offsets = [0, 32], sizes = [1, 16], strides = [1, 1]} : vector<1x64xf32> to vector<1x16xf32>
    %205 = math.tanh %204 : vector<1x16xf32>
    %206 = vector.extract_strided_slice %187 {offsets = [0, 48], sizes = [1, 16], strides = [1, 1]} : vector<1x64xf32> to vector<1x16xf32>
    %cst_73 = arith.constant 0.000000e+00 : f32
    %207 = vector.broadcast %cst_73 : f32 to vector<1x16xf32>
    %208 = arith.subf %207, %206 : vector<1x16xf32>
    %209 = math.exp %208 : vector<1x16xf32>
    %cst_74 = arith.constant 1.000000e+00 : f32
    %210 = vector.broadcast %cst_74 : f32 to vector<1x16xf32>
    %211 = arith.addf %210, %209 : vector<1x16xf32>
    %cst_75 = arith.constant 1.000000e+00 : f32
    %212 = vector.broadcast %cst_75 : f32 to vector<1x16xf32>
    %213 = arith.divf %212, %211 : vector<1x16xf32>
    %214 = arith.mulf %203, %182 : vector<1x16xf32>
    %215 = arith.mulf %195, %205 : vector<1x16xf32>
    %216 = arith.addf %214, %215 : vector<1x16xf32>
    %217 = math.tanh %216 : vector<1x16xf32>
    %218 = arith.mulf %213, %217 : vector<1x16xf32>
    %219 = vector.extract_strided_slice %5 {offsets = [6, 0], sizes = [1, 64], strides = [1, 1]} : vector<8x64xf32> to vector<1x64xf32>
    %cst_76 = arith.constant dense<0.000000e+00> : vector<1x64xf32>
    %220 = tpu.matmul %218, %11, %cst_76 {dimension_numbers = #tpu.dot_dimension_numbers<[1], [1], [0], [0], [0, 0, 1, 0], [], []>} : vector<1x16xf32>, vector<64x16xf32>, vector<1x64xf32> -> vector<1x64xf32>
    %221 = arith.addf %219, %220 : vector<1x64xf32>
    %222 = vector.extract_strided_slice %221 {offsets = [0, 0], sizes = [1, 16], strides = [1, 1]} : vector<1x64xf32> to vector<1x16xf32>
    %cst_77 = arith.constant 0.000000e+00 : f32
    %223 = vector.broadcast %cst_77 : f32 to vector<1x16xf32>
    %224 = arith.subf %223, %222 : vector<1x16xf32>
    %225 = math.exp %224 : vector<1x16xf32>
    %cst_78 = arith.constant 1.000000e+00 : f32
    %226 = vector.broadcast %cst_78 : f32 to vector<1x16xf32>
    %227 = arith.addf %226, %225 : vector<1x16xf32>
    %cst_79 = arith.constant 1.000000e+00 : f32
    %228 = vector.broadcast %cst_79 : f32 to vector<1x16xf32>
    %229 = arith.divf %228, %227 : vector<1x16xf32>
    %230 = vector.extract_strided_slice %221 {offsets = [0, 16], sizes = [1, 16], strides = [1, 1]} : vector<1x64xf32> to vector<1x16xf32>
    %cst_80 = arith.constant 0.000000e+00 : f32
    %231 = vector.broadcast %cst_80 : f32 to vector<1x16xf32>
    %232 = arith.subf %231, %230 : vector<1x16xf32>
    %233 = math.exp %232 : vector<1x16xf32>
    %cst_81 = arith.constant 1.000000e+00 : f32
    %234 = vector.broadcast %cst_81 : f32 to vector<1x16xf32>
    %235 = arith.addf %234, %233 : vector<1x16xf32>
    %cst_82 = arith.constant 1.000000e+00 : f32
    %236 = vector.broadcast %cst_82 : f32 to vector<1x16xf32>
    %237 = arith.divf %236, %235 : vector<1x16xf32>
    %238 = vector.extract_strided_slice %221 {offsets = [0, 32], sizes = [1, 16], strides = [1, 1]} : vector<1x64xf32> to vector<1x16xf32>
    %239 = math.tanh %238 : vector<1x16xf32>
    %240 = vector.extract_strided_slice %221 {offsets = [0, 48], sizes = [1, 16], strides = [1, 1]} : vector<1x64xf32> to vector<1x16xf32>
    %cst_83 = arith.constant 0.000000e+00 : f32
    %241 = vector.broadcast %cst_83 : f32 to vector<1x16xf32>
    %242 = arith.subf %241, %240 : vector<1x16xf32>
    %243 = math.exp %242 : vector<1x16xf32>
    %cst_84 = arith.constant 1.000000e+00 : f32
    %244 = vector.broadcast %cst_84 : f32 to vector<1x16xf32>
    %245 = arith.addf %244, %243 : vector<1x16xf32>
    %cst_85 = arith.constant 1.000000e+00 : f32
    %246 = vector.broadcast %cst_85 : f32 to vector<1x16xf32>
    %247 = arith.divf %246, %245 : vector<1x16xf32>
    %248 = arith.mulf %237, %216 : vector<1x16xf32>
    %249 = arith.mulf %229, %239 : vector<1x16xf32>
    %250 = arith.addf %248, %249 : vector<1x16xf32>
    %251 = math.tanh %250 : vector<1x16xf32>
    %252 = arith.mulf %247, %251 : vector<1x16xf32>
    %253 = vector.extract_strided_slice %5 {offsets = [7, 0], sizes = [1, 64], strides = [1, 1]} : vector<8x64xf32> to vector<1x64xf32>
    %cst_86 = arith.constant dense<0.000000e+00> : vector<1x64xf32>
    %254 = tpu.matmul %252, %11, %cst_86 {dimension_numbers = #tpu.dot_dimension_numbers<[1], [1], [0], [0], [0, 0, 1, 0], [], []>} : vector<1x16xf32>, vector<64x16xf32>, vector<1x64xf32> -> vector<1x64xf32>
    %255 = arith.addf %253, %254 : vector<1x64xf32>
    %256 = vector.extract_strided_slice %255 {offsets = [0, 0], sizes = [1, 16], strides = [1, 1]} : vector<1x64xf32> to vector<1x16xf32>
    %cst_87 = arith.constant 0.000000e+00 : f32
    %257 = vector.broadcast %cst_87 : f32 to vector<1x16xf32>
    %258 = arith.subf %257, %256 : vector<1x16xf32>
    %259 = math.exp %258 : vector<1x16xf32>
    %cst_88 = arith.constant 1.000000e+00 : f32
    %260 = vector.broadcast %cst_88 : f32 to vector<1x16xf32>
    %261 = arith.addf %260, %259 : vector<1x16xf32>
    %cst_89 = arith.constant 1.000000e+00 : f32
    %262 = vector.broadcast %cst_89 : f32 to vector<1x16xf32>
    %263 = arith.divf %262, %261 : vector<1x16xf32>
    %264 = vector.extract_strided_slice %255 {offsets = [0, 16], sizes = [1, 16], strides = [1, 1]} : vector<1x64xf32> to vector<1x16xf32>
    %cst_90 = arith.constant 0.000000e+00 : f32
    %265 = vector.broadcast %cst_90 : f32 to vector<1x16xf32>
    %266 = arith.subf %265, %264 : vector<1x16xf32>
    %267 = math.exp %266 : vector<1x16xf32>
    %cst_91 = arith.constant 1.000000e+00 : f32
    %268 = vector.broadcast %cst_91 : f32 to vector<1x16xf32>
    %269 = arith.addf %268, %267 : vector<1x16xf32>
    %cst_92 = arith.constant 1.000000e+00 : f32
    %270 = vector.broadcast %cst_92 : f32 to vector<1x16xf32>
    %271 = arith.divf %270, %269 : vector<1x16xf32>
    %272 = vector.extract_strided_slice %255 {offsets = [0, 32], sizes = [1, 16], strides = [1, 1]} : vector<1x64xf32> to vector<1x16xf32>
    %273 = math.tanh %272 : vector<1x16xf32>
    %274 = vector.extract_strided_slice %255 {offsets = [0, 48], sizes = [1, 16], strides = [1, 1]} : vector<1x64xf32> to vector<1x16xf32>
    %cst_93 = arith.constant 0.000000e+00 : f32
    %275 = vector.broadcast %cst_93 : f32 to vector<1x16xf32>
    %276 = arith.subf %275, %274 : vector<1x16xf32>
    %277 = math.exp %276 : vector<1x16xf32>
    %cst_94 = arith.constant 1.000000e+00 : f32
    %278 = vector.broadcast %cst_94 : f32 to vector<1x16xf32>
    %279 = arith.addf %278, %277 : vector<1x16xf32>
    %cst_95 = arith.constant 1.000000e+00 : f32
    %280 = vector.broadcast %cst_95 : f32 to vector<1x16xf32>
    %281 = arith.divf %280, %279 : vector<1x16xf32>
    %282 = arith.mulf %271, %250 : vector<1x16xf32>
    %283 = arith.mulf %263, %273 : vector<1x16xf32>
    %284 = arith.addf %282, %283 : vector<1x16xf32>
    %285 = math.tanh %284 : vector<1x16xf32>
    %286 = arith.mulf %281, %285 : vector<1x16xf32>
    %cst_96 = arith.constant 0.000000e+00 : f32
    %287 = vector.broadcast %cst_96 : f32 to vector<1x16xf32>
    %cst_97 = arith.constant 0.000000e+00 : f32
    %288 = vector.broadcast %cst_97 : f32 to vector<1x16xf32>
    %289 = vector.extract_strided_slice %10 {offsets = [7, 0], sizes = [1, 64], strides = [1, 1]} : vector<8x64xf32> to vector<1x64xf32>
    %cst_98 = arith.constant dense<0.000000e+00> : vector<1x64xf32>
    %290 = tpu.matmul %287, %12, %cst_98 {dimension_numbers = #tpu.dot_dimension_numbers<[1], [1], [0], [0], [0, 0, 1, 0], [], []>} : vector<1x16xf32>, vector<64x16xf32>, vector<1x64xf32> -> vector<1x64xf32>
    %291 = arith.addf %289, %290 : vector<1x64xf32>
    %292 = vector.extract_strided_slice %291 {offsets = [0, 0], sizes = [1, 16], strides = [1, 1]} : vector<1x64xf32> to vector<1x16xf32>
    %cst_99 = arith.constant 0.000000e+00 : f32
    %293 = vector.broadcast %cst_99 : f32 to vector<1x16xf32>
    %294 = arith.subf %293, %292 : vector<1x16xf32>
    %295 = math.exp %294 : vector<1x16xf32>
    %cst_100 = arith.constant 1.000000e+00 : f32
    %296 = vector.broadcast %cst_100 : f32 to vector<1x16xf32>
    %297 = arith.addf %296, %295 : vector<1x16xf32>
    %cst_101 = arith.constant 1.000000e+00 : f32
    %298 = vector.broadcast %cst_101 : f32 to vector<1x16xf32>
    %299 = arith.divf %298, %297 : vector<1x16xf32>
    %300 = vector.extract_strided_slice %291 {offsets = [0, 16], sizes = [1, 16], strides = [1, 1]} : vector<1x64xf32> to vector<1x16xf32>
    %cst_102 = arith.constant 0.000000e+00 : f32
    %301 = vector.broadcast %cst_102 : f32 to vector<1x16xf32>
    %302 = arith.subf %301, %300 : vector<1x16xf32>
    %303 = math.exp %302 : vector<1x16xf32>
    %cst_103 = arith.constant 1.000000e+00 : f32
    %304 = vector.broadcast %cst_103 : f32 to vector<1x16xf32>
    %305 = arith.addf %304, %303 : vector<1x16xf32>
    %cst_104 = arith.constant 1.000000e+00 : f32
    %306 = vector.broadcast %cst_104 : f32 to vector<1x16xf32>
    %307 = arith.divf %306, %305 : vector<1x16xf32>
    %308 = vector.extract_strided_slice %291 {offsets = [0, 32], sizes = [1, 16], strides = [1, 1]} : vector<1x64xf32> to vector<1x16xf32>
    %309 = math.tanh %308 : vector<1x16xf32>
    %310 = vector.extract_strided_slice %291 {offsets = [0, 48], sizes = [1, 16], strides = [1, 1]} : vector<1x64xf32> to vector<1x16xf32>
    %cst_105 = arith.constant 0.000000e+00 : f32
    %311 = vector.broadcast %cst_105 : f32 to vector<1x16xf32>
    %312 = arith.subf %311, %310 : vector<1x16xf32>
    %313 = math.exp %312 : vector<1x16xf32>
    %cst_106 = arith.constant 1.000000e+00 : f32
    %314 = vector.broadcast %cst_106 : f32 to vector<1x16xf32>
    %315 = arith.addf %314, %313 : vector<1x16xf32>
    %cst_107 = arith.constant 1.000000e+00 : f32
    %316 = vector.broadcast %cst_107 : f32 to vector<1x16xf32>
    %317 = arith.divf %316, %315 : vector<1x16xf32>
    %318 = arith.mulf %307, %288 : vector<1x16xf32>
    %319 = arith.mulf %299, %309 : vector<1x16xf32>
    %320 = arith.addf %318, %319 : vector<1x16xf32>
    %321 = math.tanh %320 : vector<1x16xf32>
    %322 = arith.mulf %317, %321 : vector<1x16xf32>
    %323 = vector.extract_strided_slice %10 {offsets = [6, 0], sizes = [1, 64], strides = [1, 1]} : vector<8x64xf32> to vector<1x64xf32>
    %cst_108 = arith.constant dense<0.000000e+00> : vector<1x64xf32>
    %324 = tpu.matmul %322, %12, %cst_108 {dimension_numbers = #tpu.dot_dimension_numbers<[1], [1], [0], [0], [0, 0, 1, 0], [], []>} : vector<1x16xf32>, vector<64x16xf32>, vector<1x64xf32> -> vector<1x64xf32>
    %325 = arith.addf %323, %324 : vector<1x64xf32>
    %326 = vector.extract_strided_slice %325 {offsets = [0, 0], sizes = [1, 16], strides = [1, 1]} : vector<1x64xf32> to vector<1x16xf32>
    %cst_109 = arith.constant 0.000000e+00 : f32
    %327 = vector.broadcast %cst_109 : f32 to vector<1x16xf32>
    %328 = arith.subf %327, %326 : vector<1x16xf32>
    %329 = math.exp %328 : vector<1x16xf32>
    %cst_110 = arith.constant 1.000000e+00 : f32
    %330 = vector.broadcast %cst_110 : f32 to vector<1x16xf32>
    %331 = arith.addf %330, %329 : vector<1x16xf32>
    %cst_111 = arith.constant 1.000000e+00 : f32
    %332 = vector.broadcast %cst_111 : f32 to vector<1x16xf32>
    %333 = arith.divf %332, %331 : vector<1x16xf32>
    %334 = vector.extract_strided_slice %325 {offsets = [0, 16], sizes = [1, 16], strides = [1, 1]} : vector<1x64xf32> to vector<1x16xf32>
    %cst_112 = arith.constant 0.000000e+00 : f32
    %335 = vector.broadcast %cst_112 : f32 to vector<1x16xf32>
    %336 = arith.subf %335, %334 : vector<1x16xf32>
    %337 = math.exp %336 : vector<1x16xf32>
    %cst_113 = arith.constant 1.000000e+00 : f32
    %338 = vector.broadcast %cst_113 : f32 to vector<1x16xf32>
    %339 = arith.addf %338, %337 : vector<1x16xf32>
    %cst_114 = arith.constant 1.000000e+00 : f32
    %340 = vector.broadcast %cst_114 : f32 to vector<1x16xf32>
    %341 = arith.divf %340, %339 : vector<1x16xf32>
    %342 = vector.extract_strided_slice %325 {offsets = [0, 32], sizes = [1, 16], strides = [1, 1]} : vector<1x64xf32> to vector<1x16xf32>
    %343 = math.tanh %342 : vector<1x16xf32>
    %344 = vector.extract_strided_slice %325 {offsets = [0, 48], sizes = [1, 16], strides = [1, 1]} : vector<1x64xf32> to vector<1x16xf32>
    %cst_115 = arith.constant 0.000000e+00 : f32
    %345 = vector.broadcast %cst_115 : f32 to vector<1x16xf32>
    %346 = arith.subf %345, %344 : vector<1x16xf32>
    %347 = math.exp %346 : vector<1x16xf32>
    %cst_116 = arith.constant 1.000000e+00 : f32
    %348 = vector.broadcast %cst_116 : f32 to vector<1x16xf32>
    %349 = arith.addf %348, %347 : vector<1x16xf32>
    %cst_117 = arith.constant 1.000000e+00 : f32
    %350 = vector.broadcast %cst_117 : f32 to vector<1x16xf32>
    %351 = arith.divf %350, %349 : vector<1x16xf32>
    %352 = arith.mulf %341, %320 : vector<1x16xf32>
    %353 = arith.mulf %333, %343 : vector<1x16xf32>
    %354 = arith.addf %352, %353 : vector<1x16xf32>
    %355 = math.tanh %354 : vector<1x16xf32>
    %356 = arith.mulf %351, %355 : vector<1x16xf32>
    %357 = vector.extract_strided_slice %10 {offsets = [5, 0], sizes = [1, 64], strides = [1, 1]} : vector<8x64xf32> to vector<1x64xf32>
    %cst_118 = arith.constant dense<0.000000e+00> : vector<1x64xf32>
    %358 = tpu.matmul %356, %12, %cst_118 {dimension_numbers = #tpu.dot_dimension_numbers<[1], [1], [0], [0], [0, 0, 1, 0], [], []>} : vector<1x16xf32>, vector<64x16xf32>, vector<1x64xf32> -> vector<1x64xf32>
    %359 = arith.addf %357, %358 : vector<1x64xf32>
    %360 = vector.extract_strided_slice %359 {offsets = [0, 0], sizes = [1, 16], strides = [1, 1]} : vector<1x64xf32> to vector<1x16xf32>
    %cst_119 = arith.constant 0.000000e+00 : f32
    %361 = vector.broadcast %cst_119 : f32 to vector<1x16xf32>
    %362 = arith.subf %361, %360 : vector<1x16xf32>
    %363 = math.exp %362 : vector<1x16xf32>
    %cst_120 = arith.constant 1.000000e+00 : f32
    %364 = vector.broadcast %cst_120 : f32 to vector<1x16xf32>
    %365 = arith.addf %364, %363 : vector<1x16xf32>
    %cst_121 = arith.constant 1.000000e+00 : f32
    %366 = vector.broadcast %cst_121 : f32 to vector<1x16xf32>
    %367 = arith.divf %366, %365 : vector<1x16xf32>
    %368 = vector.extract_strided_slice %359 {offsets = [0, 16], sizes = [1, 16], strides = [1, 1]} : vector<1x64xf32> to vector<1x16xf32>
    %cst_122 = arith.constant 0.000000e+00 : f32
    %369 = vector.broadcast %cst_122 : f32 to vector<1x16xf32>
    %370 = arith.subf %369, %368 : vector<1x16xf32>
    %371 = math.exp %370 : vector<1x16xf32>
    %cst_123 = arith.constant 1.000000e+00 : f32
    %372 = vector.broadcast %cst_123 : f32 to vector<1x16xf32>
    %373 = arith.addf %372, %371 : vector<1x16xf32>
    %cst_124 = arith.constant 1.000000e+00 : f32
    %374 = vector.broadcast %cst_124 : f32 to vector<1x16xf32>
    %375 = arith.divf %374, %373 : vector<1x16xf32>
    %376 = vector.extract_strided_slice %359 {offsets = [0, 32], sizes = [1, 16], strides = [1, 1]} : vector<1x64xf32> to vector<1x16xf32>
    %377 = math.tanh %376 : vector<1x16xf32>
    %378 = vector.extract_strided_slice %359 {offsets = [0, 48], sizes = [1, 16], strides = [1, 1]} : vector<1x64xf32> to vector<1x16xf32>
    %cst_125 = arith.constant 0.000000e+00 : f32
    %379 = vector.broadcast %cst_125 : f32 to vector<1x16xf32>
    %380 = arith.subf %379, %378 : vector<1x16xf32>
    %381 = math.exp %380 : vector<1x16xf32>
    %cst_126 = arith.constant 1.000000e+00 : f32
    %382 = vector.broadcast %cst_126 : f32 to vector<1x16xf32>
    %383 = arith.addf %382, %381 : vector<1x16xf32>
    %cst_127 = arith.constant 1.000000e+00 : f32
    %384 = vector.broadcast %cst_127 : f32 to vector<1x16xf32>
    %385 = arith.divf %384, %383 : vector<1x16xf32>
    %386 = arith.mulf %375, %354 : vector<1x16xf32>
    %387 = arith.mulf %367, %377 : vector<1x16xf32>
    %388 = arith.addf %386, %387 : vector<1x16xf32>
    %389 = math.tanh %388 : vector<1x16xf32>
    %390 = arith.mulf %385, %389 : vector<1x16xf32>
    %391 = vector.extract_strided_slice %10 {offsets = [4, 0], sizes = [1, 64], strides = [1, 1]} : vector<8x64xf32> to vector<1x64xf32>
    %cst_128 = arith.constant dense<0.000000e+00> : vector<1x64xf32>
    %392 = tpu.matmul %390, %12, %cst_128 {dimension_numbers = #tpu.dot_dimension_numbers<[1], [1], [0], [0], [0, 0, 1, 0], [], []>} : vector<1x16xf32>, vector<64x16xf32>, vector<1x64xf32> -> vector<1x64xf32>
    %393 = arith.addf %391, %392 : vector<1x64xf32>
    %394 = vector.extract_strided_slice %393 {offsets = [0, 0], sizes = [1, 16], strides = [1, 1]} : vector<1x64xf32> to vector<1x16xf32>
    %cst_129 = arith.constant 0.000000e+00 : f32
    %395 = vector.broadcast %cst_129 : f32 to vector<1x16xf32>
    %396 = arith.subf %395, %394 : vector<1x16xf32>
    %397 = math.exp %396 : vector<1x16xf32>
    %cst_130 = arith.constant 1.000000e+00 : f32
    %398 = vector.broadcast %cst_130 : f32 to vector<1x16xf32>
    %399 = arith.addf %398, %397 : vector<1x16xf32>
    %cst_131 = arith.constant 1.000000e+00 : f32
    %400 = vector.broadcast %cst_131 : f32 to vector<1x16xf32>
    %401 = arith.divf %400, %399 : vector<1x16xf32>
    %402 = vector.extract_strided_slice %393 {offsets = [0, 16], sizes = [1, 16], strides = [1, 1]} : vector<1x64xf32> to vector<1x16xf32>
    %cst_132 = arith.constant 0.000000e+00 : f32
    %403 = vector.broadcast %cst_132 : f32 to vector<1x16xf32>
    %404 = arith.subf %403, %402 : vector<1x16xf32>
    %405 = math.exp %404 : vector<1x16xf32>
    %cst_133 = arith.constant 1.000000e+00 : f32
    %406 = vector.broadcast %cst_133 : f32 to vector<1x16xf32>
    %407 = arith.addf %406, %405 : vector<1x16xf32>
    %cst_134 = arith.constant 1.000000e+00 : f32
    %408 = vector.broadcast %cst_134 : f32 to vector<1x16xf32>
    %409 = arith.divf %408, %407 : vector<1x16xf32>
    %410 = vector.extract_strided_slice %393 {offsets = [0, 32], sizes = [1, 16], strides = [1, 1]} : vector<1x64xf32> to vector<1x16xf32>
    %411 = math.tanh %410 : vector<1x16xf32>
    %412 = vector.extract_strided_slice %393 {offsets = [0, 48], sizes = [1, 16], strides = [1, 1]} : vector<1x64xf32> to vector<1x16xf32>
    %cst_135 = arith.constant 0.000000e+00 : f32
    %413 = vector.broadcast %cst_135 : f32 to vector<1x16xf32>
    %414 = arith.subf %413, %412 : vector<1x16xf32>
    %415 = math.exp %414 : vector<1x16xf32>
    %cst_136 = arith.constant 1.000000e+00 : f32
    %416 = vector.broadcast %cst_136 : f32 to vector<1x16xf32>
    %417 = arith.addf %416, %415 : vector<1x16xf32>
    %cst_137 = arith.constant 1.000000e+00 : f32
    %418 = vector.broadcast %cst_137 : f32 to vector<1x16xf32>
    %419 = arith.divf %418, %417 : vector<1x16xf32>
    %420 = arith.mulf %409, %388 : vector<1x16xf32>
    %421 = arith.mulf %401, %411 : vector<1x16xf32>
    %422 = arith.addf %420, %421 : vector<1x16xf32>
    %423 = math.tanh %422 : vector<1x16xf32>
    %424 = arith.mulf %419, %423 : vector<1x16xf32>
    %425 = vector.extract_strided_slice %10 {offsets = [3, 0], sizes = [1, 64], strides = [1, 1]} : vector<8x64xf32> to vector<1x64xf32>
    %cst_138 = arith.constant dense<0.000000e+00> : vector<1x64xf32>
    %426 = tpu.matmul %424, %12, %cst_138 {dimension_numbers = #tpu.dot_dimension_numbers<[1], [1], [0], [0], [0, 0, 1, 0], [], []>} : vector<1x16xf32>, vector<64x16xf32>, vector<1x64xf32> -> vector<1x64xf32>
    %427 = arith.addf %425, %426 : vector<1x64xf32>
    %428 = vector.extract_strided_slice %427 {offsets = [0, 0], sizes = [1, 16], strides = [1, 1]} : vector<1x64xf32> to vector<1x16xf32>
    %cst_139 = arith.constant 0.000000e+00 : f32
    %429 = vector.broadcast %cst_139 : f32 to vector<1x16xf32>
    %430 = arith.subf %429, %428 : vector<1x16xf32>
    %431 = math.exp %430 : vector<1x16xf32>
    %cst_140 = arith.constant 1.000000e+00 : f32
    %432 = vector.broadcast %cst_140 : f32 to vector<1x16xf32>
    %433 = arith.addf %432, %431 : vector<1x16xf32>
    %cst_141 = arith.constant 1.000000e+00 : f32
    %434 = vector.broadcast %cst_141 : f32 to vector<1x16xf32>
    %435 = arith.divf %434, %433 : vector<1x16xf32>
    %436 = vector.extract_strided_slice %427 {offsets = [0, 16], sizes = [1, 16], strides = [1, 1]} : vector<1x64xf32> to vector<1x16xf32>
    %cst_142 = arith.constant 0.000000e+00 : f32
    %437 = vector.broadcast %cst_142 : f32 to vector<1x16xf32>
    %438 = arith.subf %437, %436 : vector<1x16xf32>
    %439 = math.exp %438 : vector<1x16xf32>
    %cst_143 = arith.constant 1.000000e+00 : f32
    %440 = vector.broadcast %cst_143 : f32 to vector<1x16xf32>
    %441 = arith.addf %440, %439 : vector<1x16xf32>
    %cst_144 = arith.constant 1.000000e+00 : f32
    %442 = vector.broadcast %cst_144 : f32 to vector<1x16xf32>
    %443 = arith.divf %442, %441 : vector<1x16xf32>
    %444 = vector.extract_strided_slice %427 {offsets = [0, 32], sizes = [1, 16], strides = [1, 1]} : vector<1x64xf32> to vector<1x16xf32>
    %445 = math.tanh %444 : vector<1x16xf32>
    %446 = vector.extract_strided_slice %427 {offsets = [0, 48], sizes = [1, 16], strides = [1, 1]} : vector<1x64xf32> to vector<1x16xf32>
    %cst_145 = arith.constant 0.000000e+00 : f32
    %447 = vector.broadcast %cst_145 : f32 to vector<1x16xf32>
    %448 = arith.subf %447, %446 : vector<1x16xf32>
    %449 = math.exp %448 : vector<1x16xf32>
    %cst_146 = arith.constant 1.000000e+00 : f32
    %450 = vector.broadcast %cst_146 : f32 to vector<1x16xf32>
    %451 = arith.addf %450, %449 : vector<1x16xf32>
    %cst_147 = arith.constant 1.000000e+00 : f32
    %452 = vector.broadcast %cst_147 : f32 to vector<1x16xf32>
    %453 = arith.divf %452, %451 : vector<1x16xf32>
    %454 = arith.mulf %443, %422 : vector<1x16xf32>
    %455 = arith.mulf %435, %445 : vector<1x16xf32>
    %456 = arith.addf %454, %455 : vector<1x16xf32>
    %457 = math.tanh %456 : vector<1x16xf32>
    %458 = arith.mulf %453, %457 : vector<1x16xf32>
    %459 = vector.extract_strided_slice %10 {offsets = [2, 0], sizes = [1, 64], strides = [1, 1]} : vector<8x64xf32> to vector<1x64xf32>
    %cst_148 = arith.constant dense<0.000000e+00> : vector<1x64xf32>
    %460 = tpu.matmul %458, %12, %cst_148 {dimension_numbers = #tpu.dot_dimension_numbers<[1], [1], [0], [0], [0, 0, 1, 0], [], []>} : vector<1x16xf32>, vector<64x16xf32>, vector<1x64xf32> -> vector<1x64xf32>
    %461 = arith.addf %459, %460 : vector<1x64xf32>
    %462 = vector.extract_strided_slice %461 {offsets = [0, 0], sizes = [1, 16], strides = [1, 1]} : vector<1x64xf32> to vector<1x16xf32>
    %cst_149 = arith.constant 0.000000e+00 : f32
    %463 = vector.broadcast %cst_149 : f32 to vector<1x16xf32>
    %464 = arith.subf %463, %462 : vector<1x16xf32>
    %465 = math.exp %464 : vector<1x16xf32>
    %cst_150 = arith.constant 1.000000e+00 : f32
    %466 = vector.broadcast %cst_150 : f32 to vector<1x16xf32>
    %467 = arith.addf %466, %465 : vector<1x16xf32>
    %cst_151 = arith.constant 1.000000e+00 : f32
    %468 = vector.broadcast %cst_151 : f32 to vector<1x16xf32>
    %469 = arith.divf %468, %467 : vector<1x16xf32>
    %470 = vector.extract_strided_slice %461 {offsets = [0, 16], sizes = [1, 16], strides = [1, 1]} : vector<1x64xf32> to vector<1x16xf32>
    %cst_152 = arith.constant 0.000000e+00 : f32
    %471 = vector.broadcast %cst_152 : f32 to vector<1x16xf32>
    %472 = arith.subf %471, %470 : vector<1x16xf32>
    %473 = math.exp %472 : vector<1x16xf32>
    %cst_153 = arith.constant 1.000000e+00 : f32
    %474 = vector.broadcast %cst_153 : f32 to vector<1x16xf32>
    %475 = arith.addf %474, %473 : vector<1x16xf32>
    %cst_154 = arith.constant 1.000000e+00 : f32
    %476 = vector.broadcast %cst_154 : f32 to vector<1x16xf32>
    %477 = arith.divf %476, %475 : vector<1x16xf32>
    %478 = vector.extract_strided_slice %461 {offsets = [0, 32], sizes = [1, 16], strides = [1, 1]} : vector<1x64xf32> to vector<1x16xf32>
    %479 = math.tanh %478 : vector<1x16xf32>
    %480 = vector.extract_strided_slice %461 {offsets = [0, 48], sizes = [1, 16], strides = [1, 1]} : vector<1x64xf32> to vector<1x16xf32>
    %cst_155 = arith.constant 0.000000e+00 : f32
    %481 = vector.broadcast %cst_155 : f32 to vector<1x16xf32>
    %482 = arith.subf %481, %480 : vector<1x16xf32>
    %483 = math.exp %482 : vector<1x16xf32>
    %cst_156 = arith.constant 1.000000e+00 : f32
    %484 = vector.broadcast %cst_156 : f32 to vector<1x16xf32>
    %485 = arith.addf %484, %483 : vector<1x16xf32>
    %cst_157 = arith.constant 1.000000e+00 : f32
    %486 = vector.broadcast %cst_157 : f32 to vector<1x16xf32>
    %487 = arith.divf %486, %485 : vector<1x16xf32>
    %488 = arith.mulf %477, %456 : vector<1x16xf32>
    %489 = arith.mulf %469, %479 : vector<1x16xf32>
    %490 = arith.addf %488, %489 : vector<1x16xf32>
    %491 = math.tanh %490 : vector<1x16xf32>
    %492 = arith.mulf %487, %491 : vector<1x16xf32>
    %493 = vector.extract_strided_slice %10 {offsets = [1, 0], sizes = [1, 64], strides = [1, 1]} : vector<8x64xf32> to vector<1x64xf32>
    %cst_158 = arith.constant dense<0.000000e+00> : vector<1x64xf32>
    %494 = tpu.matmul %492, %12, %cst_158 {dimension_numbers = #tpu.dot_dimension_numbers<[1], [1], [0], [0], [0, 0, 1, 0], [], []>} : vector<1x16xf32>, vector<64x16xf32>, vector<1x64xf32> -> vector<1x64xf32>
    %495 = arith.addf %493, %494 : vector<1x64xf32>
    %496 = vector.extract_strided_slice %495 {offsets = [0, 0], sizes = [1, 16], strides = [1, 1]} : vector<1x64xf32> to vector<1x16xf32>
    %cst_159 = arith.constant 0.000000e+00 : f32
    %497 = vector.broadcast %cst_159 : f32 to vector<1x16xf32>
    %498 = arith.subf %497, %496 : vector<1x16xf32>
    %499 = math.exp %498 : vector<1x16xf32>
    %cst_160 = arith.constant 1.000000e+00 : f32
    %500 = vector.broadcast %cst_160 : f32 to vector<1x16xf32>
    %501 = arith.addf %500, %499 : vector<1x16xf32>
    %cst_161 = arith.constant 1.000000e+00 : f32
    %502 = vector.broadcast %cst_161 : f32 to vector<1x16xf32>
    %503 = arith.divf %502, %501 : vector<1x16xf32>
    %504 = vector.extract_strided_slice %495 {offsets = [0, 16], sizes = [1, 16], strides = [1, 1]} : vector<1x64xf32> to vector<1x16xf32>
    %cst_162 = arith.constant 0.000000e+00 : f32
    %505 = vector.broadcast %cst_162 : f32 to vector<1x16xf32>
    %506 = arith.subf %505, %504 : vector<1x16xf32>
    %507 = math.exp %506 : vector<1x16xf32>
    %cst_163 = arith.constant 1.000000e+00 : f32
    %508 = vector.broadcast %cst_163 : f32 to vector<1x16xf32>
    %509 = arith.addf %508, %507 : vector<1x16xf32>
    %cst_164 = arith.constant 1.000000e+00 : f32
    %510 = vector.broadcast %cst_164 : f32 to vector<1x16xf32>
    %511 = arith.divf %510, %509 : vector<1x16xf32>
    %512 = vector.extract_strided_slice %495 {offsets = [0, 32], sizes = [1, 16], strides = [1, 1]} : vector<1x64xf32> to vector<1x16xf32>
    %513 = math.tanh %512 : vector<1x16xf32>
    %514 = vector.extract_strided_slice %495 {offsets = [0, 48], sizes = [1, 16], strides = [1, 1]} : vector<1x64xf32> to vector<1x16xf32>
    %cst_165 = arith.constant 0.000000e+00 : f32
    %515 = vector.broadcast %cst_165 : f32 to vector<1x16xf32>
    %516 = arith.subf %515, %514 : vector<1x16xf32>
    %517 = math.exp %516 : vector<1x16xf32>
    %cst_166 = arith.constant 1.000000e+00 : f32
    %518 = vector.broadcast %cst_166 : f32 to vector<1x16xf32>
    %519 = arith.addf %518, %517 : vector<1x16xf32>
    %cst_167 = arith.constant 1.000000e+00 : f32
    %520 = vector.broadcast %cst_167 : f32 to vector<1x16xf32>
    %521 = arith.divf %520, %519 : vector<1x16xf32>
    %522 = arith.mulf %511, %490 : vector<1x16xf32>
    %523 = arith.mulf %503, %513 : vector<1x16xf32>
    %524 = arith.addf %522, %523 : vector<1x16xf32>
    %525 = math.tanh %524 : vector<1x16xf32>
    %526 = arith.mulf %521, %525 : vector<1x16xf32>
    %527 = vector.extract_strided_slice %10 {offsets = [0, 0], sizes = [1, 64], strides = [1, 1]} : vector<8x64xf32> to vector<1x64xf32>
    %cst_168 = arith.constant dense<0.000000e+00> : vector<1x64xf32>
    %528 = tpu.matmul %526, %12, %cst_168 {dimension_numbers = #tpu.dot_dimension_numbers<[1], [1], [0], [0], [0, 0, 1, 0], [], []>} : vector<1x16xf32>, vector<64x16xf32>, vector<1x64xf32> -> vector<1x64xf32>
    %529 = arith.addf %527, %528 : vector<1x64xf32>
    %530 = vector.extract_strided_slice %529 {offsets = [0, 0], sizes = [1, 16], strides = [1, 1]} : vector<1x64xf32> to vector<1x16xf32>
    %cst_169 = arith.constant 0.000000e+00 : f32
    %531 = vector.broadcast %cst_169 : f32 to vector<1x16xf32>
    %532 = arith.subf %531, %530 : vector<1x16xf32>
    %533 = math.exp %532 : vector<1x16xf32>
    %cst_170 = arith.constant 1.000000e+00 : f32
    %534 = vector.broadcast %cst_170 : f32 to vector<1x16xf32>
    %535 = arith.addf %534, %533 : vector<1x16xf32>
    %cst_171 = arith.constant 1.000000e+00 : f32
    %536 = vector.broadcast %cst_171 : f32 to vector<1x16xf32>
    %537 = arith.divf %536, %535 : vector<1x16xf32>
    %538 = vector.extract_strided_slice %529 {offsets = [0, 16], sizes = [1, 16], strides = [1, 1]} : vector<1x64xf32> to vector<1x16xf32>
    %cst_172 = arith.constant 0.000000e+00 : f32
    %539 = vector.broadcast %cst_172 : f32 to vector<1x16xf32>
    %540 = arith.subf %539, %538 : vector<1x16xf32>
    %541 = math.exp %540 : vector<1x16xf32>
    %cst_173 = arith.constant 1.000000e+00 : f32
    %542 = vector.broadcast %cst_173 : f32 to vector<1x16xf32>
    %543 = arith.addf %542, %541 : vector<1x16xf32>
    %cst_174 = arith.constant 1.000000e+00 : f32
    %544 = vector.broadcast %cst_174 : f32 to vector<1x16xf32>
    %545 = arith.divf %544, %543 : vector<1x16xf32>
    %546 = vector.extract_strided_slice %529 {offsets = [0, 32], sizes = [1, 16], strides = [1, 1]} : vector<1x64xf32> to vector<1x16xf32>
    %547 = math.tanh %546 : vector<1x16xf32>
    %548 = vector.extract_strided_slice %529 {offsets = [0, 48], sizes = [1, 16], strides = [1, 1]} : vector<1x64xf32> to vector<1x16xf32>
    %cst_175 = arith.constant 0.000000e+00 : f32
    %549 = vector.broadcast %cst_175 : f32 to vector<1x16xf32>
    %550 = arith.subf %549, %548 : vector<1x16xf32>
    %551 = math.exp %550 : vector<1x16xf32>
    %cst_176 = arith.constant 1.000000e+00 : f32
    %552 = vector.broadcast %cst_176 : f32 to vector<1x16xf32>
    %553 = arith.addf %552, %551 : vector<1x16xf32>
    %cst_177 = arith.constant 1.000000e+00 : f32
    %554 = vector.broadcast %cst_177 : f32 to vector<1x16xf32>
    %555 = arith.divf %554, %553 : vector<1x16xf32>
    %556 = arith.mulf %545, %524 : vector<1x16xf32>
    %557 = arith.mulf %537, %547 : vector<1x16xf32>
    %558 = arith.addf %556, %557 : vector<1x16xf32>
    %559 = math.tanh %558 : vector<1x16xf32>
    %560 = arith.mulf %555, %559 : vector<1x16xf32>
    %561 = tpu.concatenate %48, %82, %116, %150, %184, %218, %252, %286 in 0 : vector<1x16xf32>, vector<1x16xf32>, vector<1x16xf32>, vector<1x16xf32>, vector<1x16xf32>, vector<1x16xf32>, vector<1x16xf32>, vector<1x16xf32> -> vector<8x16xf32>
    %562 = tpu.concatenate %560, %526, %492, %458, %424, %390, %356, %322 in 0 : vector<1x16xf32>, vector<1x16xf32>, vector<1x16xf32>, vector<1x16xf32>, vector<1x16xf32>, vector<1x16xf32>, vector<1x16xf32>, vector<1x16xf32> -> vector<8x16xf32>
    %563 = tpu.concatenate %561, %562 in 1 : vector<8x16xf32>, vector<8x16xf32> -> vector<8x32xf32>
    %c0_178 = arith.constant 0 : index
    %c0_179 = arith.constant 0 : index
    %564 = vector.load %arg7[%c0_178, %c0_179] : memref<32x32xf32, #tpu.memory_space<vmem>>, vector<32x32xf32>
    %cst_180 = arith.constant dense<0.000000e+00> : vector<8x32xf32>
    %565 = tpu.matmul %563, %564, %cst_180 {dimension_numbers = #tpu.dot_dimension_numbers<[1], [1], [0], [0], [0, 0, 1, 0], [], []>} : vector<8x32xf32>, vector<32x32xf32>, vector<8x32xf32> -> vector<8x32xf32>
    %c0_181 = arith.constant 0 : index
    %c0_182 = arith.constant 0 : index
    %566 = vector.load %arg8[%c0_181, %c0_182] : memref<1x32xf32, #tpu.memory_space<vmem>>, vector<1x32xf32>
    %567 = vector.broadcast %566 : vector<1x32xf32> to vector<8x32xf32>
    %568 = arith.addf %565, %567 : vector<8x32xf32>
    %569 = math.tanh %568 : vector<8x32xf32>
    %c0_183 = arith.constant 0 : index
    %c0_184 = arith.constant 0 : index
    %570 = vector.load %arg9[%c0_183, %c0_184] : memref<32x1xf32, #tpu.memory_space<vmem>>, vector<32x1xf32>
    %cst_185 = arith.constant dense<0.000000e+00> : vector<8x1xf32>
    %571 = tpu.matmul %569, %570, %cst_185 {dimension_numbers = #tpu.dot_dimension_numbers<[1], [0], [0], [1], [0, 0, 1, 1], [], []>} : vector<8x32xf32>, vector<32x1xf32>, vector<8x1xf32> -> vector<8x1xf32>
    %cst_186 = arith.constant dense<0xFF800000> : vector<1xf32>
    %572 = vector.multi_reduction <maximumf>, %571, %cst_186 [0] : vector<8x1xf32> to vector<1xf32>
    %573 = vector.shape_cast %572 : vector<1xf32> to vector<1x1xf32>
    %574 = vector.broadcast %573 : vector<1x1xf32> to vector<8x1xf32>
    %575 = arith.subf %571, %574 : vector<8x1xf32>
    %576 = math.exp %575 : vector<8x1xf32>
    %cst_187 = arith.constant dense<0.000000e+00> : vector<1xf32>
    %577 = vector.multi_reduction <add>, %576, %cst_187 [0] : vector<8x1xf32> to vector<1xf32>
    %578 = vector.shape_cast %577 : vector<1xf32> to vector<1x1xf32>
    %579 = vector.broadcast %578 : vector<1x1xf32> to vector<8x1xf32>
    %580 = arith.divf %576, %579 : vector<8x1xf32>
    %c0_188 = arith.constant 0 : index
    %c0_189 = arith.constant 0 : index
    %581 = vector.load %arg11[%c0_188, %c0_189] : memref<8x1xf32, #tpu.memory_space<vmem>>, vector<8x1xf32>
    tpu.vector_store %arg11[%c0_188, %c0_189], %580 {strides = array<i32>} : memref<8x1xf32, #tpu.memory_space<vmem>>, vector<8x1xf32>,
    %582 = vector.broadcast %580 : vector<8x1xf32> to vector<8x32xf32>
    %583 = arith.mulf %563, %582 : vector<8x32xf32>
    %cst_190 = arith.constant dense<0.000000e+00> : vector<32xf32>
    %584 = vector.multi_reduction <add>, %583, %cst_190 [0] : vector<8x32xf32> to vector<32xf32>
    %585 = vector.shape_cast %584 : vector<32xf32> to vector<1x32xf32>
    %c0_191 = arith.constant 0 : index
    %c0_192 = arith.constant 0 : index
    %586 = vector.load %arg10[%c0_191, %c0_192] : memref<1x32xf32, #tpu.memory_space<vmem>>, vector<1x32xf32>
    tpu.vector_store %arg10[%c0_191, %c0_192], %585 {strides = array<i32>} : memref<1x32xf32, #tpu.memory_space<vmem>>, vector<1x32xf32>,
    return
  }
}

</mosaic_0001>

<llo_original>
// kernel: tpu_custom_call.1
$region0: #{tpu_custom_call.1}
  #allocation0 [shape = 'u32[]', space=smem, size = 0x4, offset = 0x4, fixed_abs, tag = 'smem constant byte address 0x4 - core index']
  #allocation1 [shape = 'u32[144,128]{1,0:T(1,128)}', space=vmem, size = 0x12000, scoped, tag = 'internal scratch']
  %s0 = inlined_call_operand.vmem [shape: f32[8,32], index: 0, kind: input, shape index: {}]
  %s1 = inlined_call_operand.vmem [shape: f32[64,32], index: 1, kind: input, shape index: {}]
  %s2 = inlined_call_operand.vmem [shape: f32[64,16], index: 2, kind: input, shape index: {}]
  %s3 = inlined_call_operand.vmem [shape: f32[1,64], index: 3, kind: input, shape index: {}]
  %s4 = inlined_call_operand.vmem [shape: f32[64,32], index: 4, kind: input, shape index: {}]
  %s5 = inlined_call_operand.vmem [shape: f32[64,16], index: 5, kind: input, shape index: {}]
  %s6 = inlined_call_operand.vmem [shape: f32[1,64], index: 6, kind: input, shape index: {}]
  %s7 = inlined_call_operand.vmem [shape: f32[32,32], index: 7, kind: input, shape index: {}]
  %s8 = inlined_call_operand.vmem [shape: f32[1,32], index: 8, kind: input, shape index: {}]
  %s9 = inlined_call_operand.vmem [shape: f32[32,1], index: 9, kind: input, shape index: {}]
  %s10 = inlined_call_operand.hbm [shape: f32[1,32], index: 10, kind: output, shape index: {0}]
  %s11 = inlined_call_operand.vmem [shape: f32[8,1], index: 11, kind: output, shape index: {1}]
  %12 = xla_tuple %s10, %s11
  %s13 = sld [smem:[#allocation0]]
  $region58: #{tpu_custom_call.1} parent=0
    _
  %s15 = ssub.s32 1, %s13
  %s16 = scalar_select 0, %s15, %s13
  $region1: #{tpu_custom_call.1} parent=0
    #allocation2 [shape = 'u8[512]{0}', space=vmem, size = 0x400, scoped, tag = 'output window, operand 0, single buffered']
    #allocation3 [shape = 's32[1]{0}', space=sflag, size = 0x4, scoped, tag = 'scoped memory for tpu_custom_call.1']
    %17 = vsyncpa [#allocation3], 0
    // Predicated region
    $region2: #{tpu_custom_call.1} parent=1 // pred_check
      _
    $region3: #{tpu_custom_call.1} parent=1 // pred_check_branch
      %19 = sbr.rel (0) target = $region5
    $region4: #{tpu_custom_call.1} parent=1 // pred_region
      _
    $region5: #{tpu_custom_call.1} parent=1 // pred_fallthru
      _
    // Predicated region
    $region6: #{tpu_custom_call.1} parent=1 // pred_check
      _
    $region7: #{tpu_custom_call.1} parent=1 // pred_check_branch
      %21 = sbr.rel (0) target = $region9
    $region8: #{tpu_custom_call.1} parent=1 // pred_region
      _
    $region9: #{tpu_custom_call.1} parent=1 // pred_fallthru
      _
    // Predicated region
    $region10: #{tpu_custom_call.1} parent=1 // pred_check
      _
    $region11: #{tpu_custom_call.1} parent=1 // pred_check_branch
      %23 = sbr.rel (0) target = $region13
    $region12: #{tpu_custom_call.1} parent=1 // pred_region
      _
    $region13: #{tpu_custom_call.1} parent=1 // pred_fallthru
      _
    // Predicated region
    $region14: #{tpu_custom_call.1} parent=1 // pred_check
      _
    $region15: #{tpu_custom_call.1} parent=1 // pred_check_branch
      %25 = sbr.rel (0) target = $region17
    $region16: #{tpu_custom_call.1} parent=1 // pred_region
      _
    $region17: #{tpu_custom_call.1} parent=1 // pred_fallthru
      _
    // Predicated region
    $region18: #{tpu_custom_call.1} parent=1 // pred_check
      _
    $region19: #{tpu_custom_call.1} parent=1 // pred_check_branch
      %27 = sbr.rel (0) target = $region21
    $region20: #{tpu_custom_call.1} parent=1 // pred_region
      _
    $region21: #{tpu_custom_call.1} parent=1 // pred_fallthru
      _
    // Predicated region
    $region22: #{tpu_custom_call.1} parent=1 // pred_check
      _
    $region23: #{tpu_custom_call.1} parent=1 // pred_check_branch
      %29 = sbr.rel (0) target = $region25
    $region24: #{tpu_custom_call.1} parent=1 // pred_region
      _
    $region25: #{tpu_custom_call.1} parent=1 // pred_fallthru
      _
    // Predicated region
    $region26: #{tpu_custom_call.1} parent=1 // pred_check
      _
    $region27: #{tpu_custom_call.1} parent=1 // pred_check_branch
      %31 = sbr.rel (0) target = $region29
    $region28: #{tpu_custom_call.1} parent=1 // pred_region
      _
    $region29: #{tpu_custom_call.1} parent=1 // pred_fallthru
      _
    // Predicated region
    $region30: #{tpu_custom_call.1} parent=1 // pred_check
      _
    $region31: #{tpu_custom_call.1} parent=1 // pred_check_branch
      %33 = sbr.rel (0) target = $region33
    $region32: #{tpu_custom_call.1} parent=1 // pred_region
      _
    $region33: #{tpu_custom_call.1} parent=1 // pred_fallthru
      _
    // Predicated region
    $region34: #{tpu_custom_call.1} parent=1 // pred_check
      _
    $region35: #{tpu_custom_call.1} parent=1 // pred_check_branch
      %35 = sbr.rel (0) target = $region37
    $region36: #{tpu_custom_call.1} parent=1 // pred_region
      _
    $region37: #{tpu_custom_call.1} parent=1 // pred_fallthru
      _
    // Predicated region
    $region38: #{tpu_custom_call.1} parent=1 // pred_check
      _
    $region39: #{tpu_custom_call.1} parent=1 // pred_check_branch
      %37 = sbr.rel (0) target = $region41
    $region40: #{tpu_custom_call.1} parent=1 // pred_region
      _
    $region41: #{tpu_custom_call.1} parent=1 // pred_fallthru
      _
    %v38 = vld [vmem:[%s0] sm:$0xff]
    %v39 = vld [vmem:[%s1] sm:$0xff]
    %v40 = vld [vmem:[%s1 + $0x8] sm:$0xff]
    %v41 = vld [vmem:[%s1 + $0x10] sm:$0xff]
    %v42 = vld [vmem:[%s1 + $0x18] sm:$0xff]
    %v43 = vld [vmem:[%s1 + $0x20] sm:$0xff]
    %v44 = vld [vmem:[%s1 + $0x28] sm:$0xff]
    %v45 = vld [vmem:[%s1 + $0x30] sm:$0xff]
    %v46 = vld [vmem:[%s1 + $0x38] sm:$0xff]
    %v47 = vld [vmem:[%s3] sm:$0x1]
    %v49 = vlaneseq
    %v50 = vshrl.u32 %v49, 7
    %v51 = vsub.s32 0, %v50
    %v52 = vrot.slane %v47, %v51
    %vm54 = vcmask 261120
    %v56 = vsel %vm54, %v38, 0
    %v59 = vsel %vm54, %v39, 0
    %v62 = vsel %vm54, %v40, 0
    %v65 = vsel %vm54, %v41, 0
    %v68 = vsel %vm54, %v42, 0
    %v71 = vsel %vm54, %v43, 0
    %v74 = vsel %vm54, %v44, 0
    %v77 = vsel %vm54, %v45, 0
    %v80 = vsel %vm54, %v46, 0
    %82 = vmatprep.subr.mxu0 0.0
    %83 = vmatpush1.xpose.msra.mxu0 0.0
    %84 = vmatprep.subr.mxu0 0.0
    %85 = vmatpush1.xpose.msra.mxu0 0.0
    %86 = vmatprep.subr.mxu0 0.0
    %87 = vmatpush1.xpose.msra.mxu0 0.0
    %88 = vmatprep.subr.mxu0 0.0
    %89 = vmatpush1.xpose.msra.mxu0 0.0
    %90 = vmatprep.subr.mxu0 0.0
    %91 = vmatpush1.xpose.msra.mxu0 0.0
    %92 = vmatprep.subr.mxu0 0.0
    %93 = vmatpush1.xpose.msra.mxu0 0.0
    %94 = vmatprep.subr.mxu0 0.0
    %95 = vmatpush1.xpose.msra.mxu0 0.0
    %96 = vmatprep.subr.mxu0 0.0
    %97 = vmatpush1.xpose.msra.mxu0 0.0
    %98 = vmatprep.subr.mxu0 0.0
    %99 = vmatpush1.xpose.msra.mxu0 %v80
    %100 = vmatprep.subr.mxu0 0.0
    %101 = vmatpush1.xpose.msra.mxu0 %v77
    %102 = vmatprep.subr.mxu0 0.0
    %103 = vmatpush1.xpose.msra.mxu0 %v74
    %104 = vmatprep.subr.mxu0 0.0
    %105 = vmatpush1.xpose.msra.mxu0 %v71
    %106 = vmatprep.subr.mxu0 0.0
    %107 = vmatpush1.xpose.msra.mxu0 %v68
    %108 = vmatprep.subr.mxu0 0.0
    %109 = vmatpush1.xpose.msra.mxu0 %v65
    %110 = vmatprep.subr.mxu0 0.0
    %111 = vmatpush1.xpose.msra.mxu0 %v62
    %112 = vmatprep.subr.mxu0 0.0
    %113 = vmatpush1.xpose.msra.mxu0 %v59
    %114 = vmatprep.subr.mxu0 0.0
    %115 = vmatpush2.xpose.msra.mxu0 0.0
    %116 = vmatprep.subr.mxu0 0.0
    %117 = vmatpush2.xpose.msra.mxu0 0.0
    %118 = vmatprep.subr.mxu0 0.0
    %119 = vmatpush2.xpose.msra.mxu0 0.0
    %120 = vmatprep.subr.mxu0 0.0
    %121 = vmatpush2.xpose.msra.mxu0 0.0
    %122 = vmatprep.subr.mxu0 0.0
    %123 = vmatpush2.xpose.msra.mxu0 0.0
    %124 = vmatprep.subr.mxu0 0.0
    %125 = vmatpush2.xpose.msra.mxu0 0.0
    %126 = vmatprep.subr.mxu0 0.0
    %127 = vmatpush2.xpose.msra.mxu0 0.0
    %128 = vmatprep.subr.mxu0 0.0
    %129 = vmatpush2.xpose.msra.mxu0 0.0
    %130 = vmatprep.subr.mxu0 0.0
    %131 = vmatpush2.xpose.msra.mxu0 0.0
    %132 = vmatprep.subr.mxu0 0.0
    %133 = vmatpush2.xpose.msra.mxu0 0.0
    %134 = vmatprep.subr.mxu0 0.0
    %135 = vmatpush2.xpose.msra.mxu0 0.0
    %136 = vmatprep.subr.mxu0 0.0
    %137 = vmatpush2.xpose.msra.mxu0 0.0
    %138 = vmatprep.subr.mxu0 0.0
    %139 = vmatpush2.xpose.msra.mxu0 0.0
    %140 = vmatprep.subr.mxu0 0.0
    %141 = vmatpush2.xpose.msra.mxu0 0.0
    %142 = vmatprep.subr.mxu0 0.0
    %143 = vmatpush2.xpose.msra.mxu0 0.0
    %144 = vmatprep.subr.mxu0 0.0
    %145 = vmatpush2.xpose.msra.mxu0 0.0
    %146 = vmatprep.mubr.f32.mxu0 0.0
    %147 = vmatmul.mubr.f32.gmra.mxu0 %v56
    %v148 = vpop.f32.mrf.mxu0
    %v149 = vadd.f32 %v52, %v148
    %v150 = vpop.f32.mrf.mxu0
    %151 = vdwg.mxu0
    %v152 = vld [vmem:[%s4] sm:$0xff]
    %v153 = vld [vmem:[%s4 + $0x8] sm:$0xff]
    %v154 = vld [vmem:[%s4 + $0x10] sm:$0xff]
    %v155 = vld [vmem:[%s4 + $0x18] sm:$0xff]
    %v156 = vld [vmem:[%s4 + $0x20] sm:$0xff]
    %v157 = vld [vmem:[%s4 + $0x28] sm:$0xff]
    %v158 = vld [vmem:[%s4 + $0x30] sm:$0xff]
    %v159 = vld [vmem:[%s4 + $0x38] sm:$0xff]
    %v160 = vld [vmem:[%s6] sm:$0x1]
    %v162 = vlaneseq
    %v163 = vshrl.u32 %v162, 7
    %v164 = vsub.s32 0, %v163
    %v165 = vrot.slane %v160, %v164
    %v168 = vsel %vm54, %v152, 0
    %v171 = vsel %vm54, %v153, 0
    %v174 = vsel %vm54, %v154, 0
    %v177 = vsel %vm54, %v155, 0
    %v180 = vsel %vm54, %v156, 0
    %v183 = vsel %vm54, %v157, 0
    %v186 = vsel %vm54, %v158, 0
    %v189 = vsel %vm54, %v159, 0
    %191 = vmatprep.subr.mxu0 0.0
    %192 = vmatpush1.xpose.msra.mxu0 0.0
    %193 = vmatprep.subr.mxu0 0.0
    %194 = vmatpush1.xpose.msra.mxu0 0.0
    %195 = vmatprep.subr.mxu0 0.0
    %196 = vmatpush1.xpose.msra.mxu0 0.0
    %197 = vmatprep.subr.mxu0 0.0
    %198 = vmatpush1.xpose.msra.mxu0 0.0
    %199 = vmatprep.subr.mxu0 0.0
    %200 = vmatpush1.xpose.msra.mxu0 0.0
    %201 = vmatprep.subr.mxu0 0.0
    %202 = vmatpush1.xpose.msra.mxu0 0.0
    %203 = vmatprep.subr.mxu0 0.0
    %204 = vmatpush1.xpose.msra.mxu0 0.0
    %205 = vmatprep.subr.mxu0 0.0
    %206 = vmatpush1.xpose.msra.mxu0 0.0
    %207 = vmatprep.subr.mxu0 0.0
    %208 = vmatpush1.xpose.msra.mxu0 %v189
    %209 = vmatprep.subr.mxu0 0.0
    %210 = vmatpush1.xpose.msra.mxu0 %v186
    %211 = vmatprep.subr.mxu0 0.0
    %212 = vmatpush1.xpose.msra.mxu0 %v183
    %213 = vmatprep.subr.mxu0 0.0
    %214 = vmatpush1.xpose.msra.mxu0 %v180
    %215 = vmatprep.subr.mxu0 0.0
    %216 = vmatpush1.xpose.msra.mxu0 %v177
    %217 = vmatprep.subr.mxu0 0.0
    %218 = vmatpush1.xpose.msra.mxu0 %v174
    %219 = vmatprep.subr.mxu0 0.0
    %220 = vmatpush1.xpose.msra.mxu0 %v171
    %221 = vmatprep.subr.mxu0 0.0
    %222 = vmatpush1.xpose.msra.mxu0 %v168
    %223 = vmatprep.subr.mxu0 0.0
    %224 = vmatpush2.xpose.msra.mxu0 0.0
    %225 = vmatprep.subr.mxu0 0.0
    %226 = vmatpush2.xpose.msra.mxu0 0.0
    %227 = vmatprep.subr.mxu0 0.0
    %228 = vmatpush2.xpose.msra.mxu0 0.0
    %229 = vmatprep.subr.mxu0 0.0
    %230 = vmatpush2.xpose.msra.mxu0 0.0
    %231 = vmatprep.subr.mxu0 0.0
    %232 = vmatpush2.xpose.msra.mxu0 0.0
    %233 = vmatprep.subr.mxu0 0.0
    %234 = vmatpush2.xpose.msra.mxu0 0.0
    %235 = vmatprep.subr.mxu0 0.0
    %236 = vmatpush2.xpose.msra.mxu0 0.0
    %237 = vmatprep.subr.mxu0 0.0
    %238 = vmatpush2.xpose.msra.mxu0 0.0
    %239 = vmatprep.subr.mxu0 0.0
    %240 = vmatpush2.xpose.msra.mxu0 0.0
    %241 = vmatprep.subr.mxu0 0.0
    %242 = vmatpush2.xpose.msra.mxu0 0.0
    %243 = vmatprep.subr.mxu0 0.0
    %244 = vmatpush2.xpose.msra.mxu0 0.0
    %245 = vmatprep.subr.mxu0 0.0
    %246 = vmatpush2.xpose.msra.mxu0 0.0
    %247 = vmatprep.subr.mxu0 0.0
    %248 = vmatpush2.xpose.msra.mxu0 0.0
    %249 = vmatprep.subr.mxu0 0.0
    %250 = vmatpush2.xpose.msra.mxu0 0.0
    %251 = vmatprep.subr.mxu0 0.0
    %252 = vmatpush2.xpose.msra.mxu0 0.0
    %253 = vmatprep.subr.mxu0 0.0
    %254 = vmatpush2.xpose.msra.mxu0 0.0
    %255 = vmatprep.mubr.f32.mxu0 0.0
    %256 = vmatmul.mubr.f32.gmra.mxu0 %v56
    %v257 = vpop.f32.mrf.mxu0
    %v258 = vadd.f32 %v165, %v257
    %v259 = vpop.f32.mrf.mxu0
    %260 = vdwg.mxu0
    %v261 = vld [vmem:[%s2] sm:$0xff]
    %v262 = vld [vmem:[%s2 + $0x8] sm:$0xff]
    %v263 = vld [vmem:[%s2 + $0x10] sm:$0xff]
    %v264 = vld [vmem:[%s2 + $0x18] sm:$0xff]
    %v265 = vld [vmem:[%s2 + $0x20] sm:$0xff]
    %v266 = vld [vmem:[%s2 + $0x28] sm:$0xff]
    %v267 = vld [vmem:[%s2 + $0x30] sm:$0xff]
    %v268 = vld [vmem:[%s2 + $0x38] sm:$0xff]
    %v269 = vld [vmem:[%s5] sm:$0xff]
    %v270 = vld [vmem:[%s5 + $0x8] sm:$0xff]
    %v271 = vld [vmem:[%s5 + $0x10] sm:$0xff]
    %v272 = vld [vmem:[%s5 + $0x18] sm:$0xff]
    %v273 = vld [vmem:[%s5 + $0x20] sm:$0xff]
    %v274 = vld [vmem:[%s5 + $0x28] sm:$0xff]
    %v275 = vld [vmem:[%s5 + $0x30] sm:$0xff]
    %v276 = vld [vmem:[%s5 + $0x38] sm:$0xff]
    %vm277 = vcmask 130048
    %v279 = vsel %vm277, 0.0, 0
    %v282 = vsel %vm277, %v261, 0
    %v285 = vsel %vm277, %v262, 0
    %v288 = vsel %vm277, %v263, 0
    %v291 = vsel %vm277, %v264, 0
    %v294 = vsel %vm277, %v265, 0
    %v297 = vsel %vm277, %v266, 0
    %v300 = vsel %vm277, %v267, 0
    %v303 = vsel %vm277, %v268, 0
    %305 = vmatprep.subr.mxu0 0.0
    %306 = vmatpush1.xpose.msra.mxu0 0.0
    %307 = vmatprep.subr.mxu0 0.0
    %308 = vmatpush1.xpose.msra.mxu0 0.0
    %309 = vmatprep.subr.mxu0 0.0
    %310 = vmatpush1.xpose.msra.mxu0 0.0
    %311 = vmatprep.subr.mxu0 0.0
    %312 = vmatpush1.xpose.msra.mxu0 0.0
    %313 = vmatprep.subr.mxu0 0.0
    %314 = vmatpush1.xpose.msra.mxu0 0.0
    %315 = vmatprep.subr.mxu0 0.0
    %316 = vmatpush1.xpose.msra.mxu0 0.0
    %317 = vmatprep.subr.mxu0 0.0
    %318 = vmatpush1.xpose.msra.mxu0 0.0
    %319 = vmatprep.subr.mxu0 0.0
    %320 = vmatpush1.xpose.msra.mxu0 0.0
    %321 = vmatprep.subr.mxu0 0.0
    %322 = vmatpush1.xpose.msra.mxu0 %v303
    %323 = vmatprep.subr.mxu0 0.0
    %324 = vmatpush1.xpose.msra.mxu0 %v300
    %325 = vmatprep.subr.mxu0 0.0
    %326 = vmatpush1.xpose.msra.mxu0 %v297
    %327 = vmatprep.subr.mxu0 0.0
    %328 = vmatpush1.xpose.msra.mxu0 %v294
    %329 = vmatprep.subr.mxu0 0.0
    %330 = vmatpush1.xpose.msra.mxu0 %v291
    %331 = vmatprep.subr.mxu0 0.0
    %332 = vmatpush1.xpose.msra.mxu0 %v288
    %333 = vmatprep.subr.mxu0 0.0
    %334 = vmatpush1.xpose.msra.mxu0 %v285
    %335 = vmatprep.subr.mxu0 0.0
    %336 = vmatpush1.xpose.msra.mxu0 %v282
    %337 = vmatprep.subr.mxu0 0.0
    %338 = vmatpush2.xpose.msra.mxu0 0.0
    %339 = vmatprep.subr.mxu0 0.0
    %340 = vmatpush2.xpose.msra.mxu0 0.0
    %341 = vmatprep.subr.mxu0 0.0
    %342 = vmatpush2.xpose.msra.mxu0 0.0
    %343 = vmatprep.subr.mxu0 0.0
    %344 = vmatpush2.xpose.msra.mxu0 0.0
    %345 = vmatprep.subr.mxu0 0.0
    %346 = vmatpush2.xpose.msra.mxu0 0.0
    %347 = vmatprep.subr.mxu0 0.0
    %348 = vmatpush2.xpose.msra.mxu0 0.0
    %349 = vmatprep.subr.mxu0 0.0
    %350 = vmatpush2.xpose.msra.mxu0 0.0
    %351 = vmatprep.subr.mxu0 0.0
    %352 = vmatpush2.xpose.msra.mxu0 0.0
    %353 = vmatprep.subr.mxu0 0.0
    %354 = vmatpush2.xpose.msra.mxu0 0.0
    %355 = vmatprep.subr.mxu0 0.0
    %356 = vmatpush2.xpose.msra.mxu0 0.0
    %357 = vmatprep.subr.mxu0 0.0
    %358 = vmatpush2.xpose.msra.mxu0 0.0
    %359 = vmatprep.subr.mxu0 0.0
    %360 = vmatpush2.xpose.msra.mxu0 0.0
    %361 = vmatprep.subr.mxu0 0.0
    %362 = vmatpush2.xpose.msra.mxu0 0.0
    %363 = vmatprep.subr.mxu0 0.0
    %364 = vmatpush2.xpose.msra.mxu0 0.0
    %365 = vmatprep.subr.mxu0 0.0
    %366 = vmatpush2.xpose.msra.mxu0 0.0
    %367 = vmatprep.subr.mxu0 0.0
    %368 = vmatpush2.xpose.msra.mxu0 0.0
    %369 = vmatprep.mubr.f32.mxu0 0.0
    %370 = vmatmul.mubr.f32.gmra.mxu0 %v279
    %v371 = vpop.f32.mrf.mxu0
    %v372 = vadd.f32 0.0, %v371
    %v373 = vpop.f32.mrf.mxu0
    %374 = vdwg.mxu0
    %v375 = vadd.f32 %v149, %v372
    %v376 = vsub.f32 0.0, %v375
    %v377 = vmul.f32 %v376, 1.442695
    %v378 = vpow.pop %v377
    %v379 = vadd.f32 %v378, 1.0
    %v380 = vrcp.pop %v379
    %v381 = vmul.f32 1.0, %v380
    %v382 = vtanh.pop %v375
    %v383 = vmul.f32 %v381, 0.0
    %385 = vrot.lane.b32.xlu0 %v382, 96
    %v386 = vpop.permute.xlu0 %385
    %v388 = vmul.f32 %v381, %v386
    %390 = vrot.lane.b32.xlu0 %v388, 16
    %v391 = vpop.permute.xlu0 %390
    %v393 = vadd.f32 %v383, %v391
    %v394 = vtanh.pop %v393
    %396 = vrot.lane.b32.xlu0 %v394, 32
    %v397 = vpop.permute.xlu0 %396
    %v399 = vmul.f32 %v381, %v397
    %401 = vrot.lane.b32.xlu0 %v399, 80
    %v402 = vpop.permute.xlu0 %401
    %v403 = vsel %vm277, %v402, 0
    %405 = vmatprep.subr.mxu0 0.0
    %406 = vmatpush1.xpose.msra.mxu0 0.0
    %407 = vmatprep.subr.mxu0 0.0
    %408 = vmatpush1.xpose.msra.mxu0 0.0
    %409 = vmatprep.subr.mxu0 0.0
    %410 = vmatpush1.xpose.msra.mxu0 0.0
    %411 = vmatprep.subr.mxu0 0.0
    %412 = vmatpush1.xpose.msra.mxu0 0.0
    %413 = vmatprep.subr.mxu0 0.0
    %414 = vmatpush1.xpose.msra.mxu0 0.0
    %415 = vmatprep.subr.mxu0 0.0
    %416 = vmatpush1.xpose.msra.mxu0 0.0
    %417 = vmatprep.subr.mxu0 0.0
    %418 = vmatpush1.xpose.msra.mxu0 0.0
    %419 = vmatprep.subr.mxu0 0.0
    %420 = vmatpush1.xpose.msra.mxu0 0.0
    %421 = vmatprep.subr.mxu0 0.0
    %422 = vmatpush1.xpose.msra.mxu0 %v303
    %423 = vmatprep.subr.mxu0 0.0
    %424 = vmatpush1.xpose.msra.mxu0 %v300
    %425 = vmatprep.subr.mxu0 0.0
    %426 = vmatpush1.xpose.msra.mxu0 %v297
    %427 = vmatprep.subr.mxu0 0.0
    %428 = vmatpush1.xpose.msra.mxu0 %v294
    %429 = vmatprep.subr.mxu0 0.0
    %430 = vmatpush1.xpose.msra.mxu0 %v291
    %431 = vmatprep.subr.mxu0 0.0
    %432 = vmatpush1.xpose.msra.mxu0 %v288
    %433 = vmatprep.subr.mxu0 0.0
    %434 = vmatpush1.xpose.msra.mxu0 %v285
    %435 = vmatprep.subr.mxu0 0.0
    %436 = vmatpush1.xpose.msra.mxu0 %v282
    %437 = vmatprep.subr.mxu0 0.0
    %438 = vmatpush2.xpose.msra.mxu0 0.0
    %439 = vmatprep.subr.mxu0 0.0
    %440 = vmatpush2.xpose.msra.mxu0 0.0
    %441 = vmatprep.subr.mxu0 0.0
    %442 = vmatpush2.xpose.msra.mxu0 0.0
    %443 = vmatprep.subr.mxu0 0.0
    %444 = vmatpush2.xpose.msra.mxu0 0.0
    %445 = vmatprep.subr.mxu0 0.0
    %446 = vmatpush2.xpose.msra.mxu0 0.0
    %447 = vmatprep.subr.mxu0 0.0
    %448 = vmatpush2.xpose.msra.mxu0 0.0
    %449 = vmatprep.subr.mxu0 0.0
    %450 = vmatpush2.xpose.msra.mxu0 0.0
    %451 = vmatprep.subr.mxu0 0.0
    %452 = vmatpush2.xpose.msra.mxu0 0.0
    %453 = vmatprep.subr.mxu0 0.0
    %454 = vmatpush2.xpose.msra.mxu0 0.0
    %455 = vmatprep.subr.mxu0 0.0
    %456 = vmatpush2.xpose.msra.mxu0 0.0
    %457 = vmatprep.subr.mxu0 0.0
    %458 = vmatpush2.xpose.msra.mxu0 0.0
    %459 = vmatprep.subr.mxu0 0.0
    %460 = vmatpush2.xpose.msra.mxu0 0.0
    %461 = vmatprep.subr.mxu0 0.0
    %462 = vmatpush2.xpose.msra.mxu0 0.0
    %463 = vmatprep.subr.mxu0 0.0
    %464 = vmatpush2.xpose.msra.mxu0 0.0
    %465 = vmatprep.subr.mxu0 0.0
    %466 = vmatpush2.xpose.msra.mxu0 0.0
    %467 = vmatprep.subr.mxu0 0.0
    %468 = vmatpush2.xpose.msra.mxu0 0.0
    %469 = vmatprep.mubr.f32.mxu0 0.0
    %470 = vmatmul.mubr.f32.gmra.mxu0 %v403
    %v471 = vpop.f32.mrf.mxu0
    %v472 = vadd.f32 0.0, %v471
    %v473 = vpop.f32.mrf.mxu0
    %474 = vdwg.mxu0
    %v476 = vrot.slane %v472, 7
    %v478 = vadd.f32 %v149, %v476
    %v479 = vsub.f32 0.0, %v478
    %v480 = vmul.f32 %v479, 1.442695
    %v481 = vpow.pop %v480
    %v482 = vadd.f32 %v481, 1.0
    %v483 = vrcp.pop %v482
    %v484 = vmul.f32 1.0, %v483
    %v485 = vtanh.pop %v478
    %v487 = vrot.slane %v393, 7
    %v489 = vmul.f32 %v484, %v487
    %491 = vrot.lane.b32.xlu0 %v485, 96
    %v492 = vpop.permute.xlu0 %491
    %v494 = vmul.f32 %v484, %v492
    %496 = vrot.lane.b32.xlu0 %v494, 16
    %v497 = vpop.permute.xlu0 %496
    %v499 = vadd.f32 %v489, %v497
    %v500 = vtanh.pop %v499
    %502 = vrot.lane.b32.xlu0 %v500, 32
    %v503 = vpop.permute.xlu0 %502
    %v505 = vmul.f32 %v484, %v503
    %v507 = vrot.slane %v505, 1
    %508 = vrot.lane.b32.xlu0 %v507, 80
    %v509 = vpop.permute.xlu0 %508
    %v510 = vsel %vm277, %v509, 0
    %512 = vmatprep.subr.mxu0 0.0
    %513 = vmatpush1.xpose.msra.mxu0 0.0
    %514 = vmatprep.subr.mxu0 0.0
    %515 = vmatpush1.xpose.msra.mxu0 0.0
    %516 = vmatprep.subr.mxu0 0.0
    %517 = vmatpush1.xpose.msra.mxu0 0.0
    %518 = vmatprep.subr.mxu0 0.0
    %519 = vmatpush1.xpose.msra.mxu0 0.0
    %520 = vmatprep.subr.mxu0 0.0
    %521 = vmatpush1.xpose.msra.mxu0 0.0
    %522 = vmatprep.subr.mxu0 0.0
    %523 = vmatpush1.xpose.msra.mxu0 0.0
    %524 = vmatprep.subr.mxu0 0.0
    %525 = vmatpush1.xpose.msra.mxu0 0.0
    %526 = vmatprep.subr.mxu0 0.0
    %527 = vmatpush1.xpose.msra.mxu0 0.0
    %528 = vmatprep.subr.mxu0 0.0
    %529 = vmatpush1.xpose.msra.mxu0 %v303
    %530 = vmatprep.subr.mxu0 0.0
    %531 = vmatpush1.xpose.msra.mxu0 %v300
    %532 = vmatprep.subr.mxu0 0.0
    %533 = vmatpush1.xpose.msra.mxu0 %v297
    %534 = vmatprep.subr.mxu0 0.0
    %535 = vmatpush1.xpose.msra.mxu0 %v294
    %536 = vmatprep.subr.mxu0 0.0
    %537 = vmatpush1.xpose.msra.mxu0 %v291
    %538 = vmatprep.subr.mxu0 0.0
    %539 = vmatpush1.xpose.msra.mxu0 %v288
    %540 = vmatprep.subr.mxu0 0.0
    %541 = vmatpush1.xpose.msra.mxu0 %v285
    %542 = vmatprep.subr.mxu0 0.0
    %543 = vmatpush1.xpose.msra.mxu0 %v282
    %544 = vmatprep.subr.mxu0 0.0
    %545 = vmatpush2.xpose.msra.mxu0 0.0
    %546 = vmatprep.subr.mxu0 0.0
    %547 = vmatpush2.xpose.msra.mxu0 0.0
    %548 = vmatprep.subr.mxu0 0.0
    %549 = vmatpush2.xpose.msra.mxu0 0.0
    %550 = vmatprep.subr.mxu0 0.0
    %551 = vmatpush2.xpose.msra.mxu0 0.0
    %552 = vmatprep.subr.mxu0 0.0
    %553 = vmatpush2.xpose.msra.mxu0 0.0
    %554 = vmatprep.subr.mxu0 0.0
    %555 = vmatpush2.xpose.msra.mxu0 0.0
    %556 = vmatprep.subr.mxu0 0.0
    %557 = vmatpush2.xpose.msra.mxu0 0.0
    %558 = vmatprep.subr.mxu0 0.0
    %559 = vmatpush2.xpose.msra.mxu0 0.0
    %560 = vmatprep.subr.mxu0 0.0
    %561 = vmatpush2.xpose.msra.mxu0 0.0
    %562 = vmatprep.subr.mxu0 0.0
    %563 = vmatpush2.xpose.msra.mxu0 0.0
    %564 = vmatprep.subr.mxu0 0.0
    %565 = vmatpush2.xpose.msra.mxu0 0.0
    %566 = vmatprep.subr.mxu0 0.0
    %567 = vmatpush2.xpose.msra.mxu0 0.0
    %568 = vmatprep.subr.mxu0 0.0
    %569 = vmatpush2.xpose.msra.mxu0 0.0
    %570 = vmatprep.subr.mxu0 0.0
    %571 = vmatpush2.xpose.msra.mxu0 0.0
    %572 = vmatprep.subr.mxu0 0.0
    %573 = vmatpush2.xpose.msra.mxu0 0.0
    %574 = vmatprep.subr.mxu0 0.0
    %575 = vmatpush2.xpose.msra.mxu0 0.0
    %576 = vmatprep.mubr.f32.mxu0 0.0
    %577 = vmatmul.mubr.f32.gmra.mxu0 %v510
    %v578 = vpop.f32.mrf.mxu0
    %v579 = vadd.f32 0.0, %v578
    %v580 = vpop.f32.mrf.mxu0
    %581 = vdwg.mxu0
    %v583 = vrot.slane %v579, 6
    %v585 = vadd.f32 %v149, %v583
    %v586 = vsub.f32 0.0, %v585
    %v587 = vmul.f32 %v586, 1.442695
    %v588 = vpow.pop %v587
    %v589 = vadd.f32 %v588, 1.0
    %v590 = vrcp.pop %v589
    %v591 = vmul.f32 1.0, %v590
    %v592 = vtanh.pop %v585
    %v594 = vrot.slane %v499, 7
    %v596 = vmul.f32 %v591, %v594
    %598 = vrot.lane.b32.xlu0 %v592, 96
    %v599 = vpop.permute.xlu0 %598
    %v601 = vmul.f32 %v591, %v599
    %603 = vrot.lane.b32.xlu0 %v601, 16
    %v604 = vpop.permute.xlu0 %603
    %v606 = vadd.f32 %v596, %v604
    %v607 = vtanh.pop %v606
    %609 = vrot.lane.b32.xlu0 %v607, 32
    %v610 = vpop.permute.xlu0 %609
    %v612 = vmul.f32 %v591, %v610
    %v614 = vrot.slane %v612, 2
    %615 = vrot.lane.b32.xlu0 %v614, 80
    %v616 = vpop.permute.xlu0 %615
    %v617 = vsel %vm277, %v616, 0
    %619 = vmatprep.subr.mxu0 0.0
    %620 = vmatpush1.xpose.msra.mxu0 0.0
    %621 = vmatprep.subr.mxu0 0.0
    %622 = vmatpush1.xpose.msra.mxu0 0.0
    %623 = vmatprep.subr.mxu0 0.0
    %624 = vmatpush1.xpose.msra.mxu0 0.0
    %625 = vmatprep.subr.mxu0 0.0
    %626 = vmatpush1.xpose.msra.mxu0 0.0
    %627 = vmatprep.subr.mxu0 0.0
    %628 = vmatpush1.xpose.msra.mxu0 0.0
    %629 = vmatprep.subr.mxu0 0.0
    %630 = vmatpush1.xpose.msra.mxu0 0.0
    %631 = vmatprep.subr.mxu0 0.0
    %632 = vmatpush1.xpose.msra.mxu0 0.0
    %633 = vmatprep.subr.mxu0 0.0
    %634 = vmatpush1.xpose.msra.mxu0 0.0
    %635 = vmatprep.subr.mxu0 0.0
    %636 = vmatpush1.xpose.msra.mxu0 %v303
    %637 = vmatprep.subr.mxu0 0.0
    %638 = vmatpush1.xpose.msra.mxu0 %v300
    %639 = vmatprep.subr.mxu0 0.0
    %640 = vmatpush1.xpose.msra.mxu0 %v297
    %641 = vmatprep.subr.mxu0 0.0
    %642 = vmatpush1.xpose.msra.mxu0 %v294
    %643 = vmatprep.subr.mxu0 0.0
    %644 = vmatpush1.xpose.msra.mxu0 %v291
    %645 = vmatprep.subr.mxu0 0.0
    %646 = vmatpush1.xpose.msra.mxu0 %v288
    %647 = vmatprep.subr.mxu0 0.0
    %648 = vmatpush1.xpose.msra.mxu0 %v285
    %649 = vmatprep.subr.mxu0 0.0
    %650 = vmatpush1.xpose.msra.mxu0 %v282
    %651 = vmatprep.subr.mxu0 0.0
    %652 = vmatpush2.xpose.msra.mxu0 0.0
    %653 = vmatprep.subr.mxu0 0.0
    %654 = vmatpush2.xpose.msra.mxu0 0.0
    %655 = vmatprep.subr.mxu0 0.0
    %656 = vmatpush2.xpose.msra.mxu0 0.0
    %657 = vmatprep.subr.mxu0 0.0
    %658 = vmatpush2.xpose.msra.mxu0 0.0
    %659 = vmatprep.subr.mxu0 0.0
    %660 = vmatpush2.xpose.msra.mxu0 0.0
    %661 = vmatprep.subr.mxu0 0.0
    %662 = vmatpush2.xpose.msra.mxu0 0.0
    %663 = vmatprep.subr.mxu0 0.0
    %664 = vmatpush2.xpose.msra.mxu0 0.0
    %665 = vmatprep.subr.mxu0 0.0
    %666 = vmatpush2.xpose.msra.mxu0 0.0
    %667 = vmatprep.subr.mxu0 0.0
    %668 = vmatpush2.xpose.msra.mxu0 0.0
    %669 = vmatprep.subr.mxu0 0.0
    %670 = vmatpush2.xpose.msra.mxu0 0.0
    %671 = vmatprep.subr.mxu0 0.0
    %672 = vmatpush2.xpose.msra.mxu0 0.0
    %673 = vmatprep.subr.mxu0 0.0
    %674 = vmatpush2.xpose.msra.mxu0 0.0
    %675 = vmatprep.subr.mxu0 0.0
    %676 = vmatpush2.xpose.msra.mxu0 0.0
    %677 = vmatprep.subr.mxu0 0.0
    %678 = vmatpush2.xpose.msra.mxu0 0.0
    %679 = vmatprep.subr.mxu0 0.0
    %680 = vmatpush2.xpose.msra.mxu0 0.0
    %681 = vmatprep.subr.mxu0 0.0
    %682 = vmatpush2.xpose.msra.mxu0 0.0
    %683 = vmatprep.mubr.f32.mxu0 0.0
    %684 = vmatmul.mubr.f32.gmra.mxu0 %v617
    %v685 = vpop.f32.mrf.mxu0
    %v686 = vadd.f32 0.0, %v685
    %v687 = vpop.f32.mrf.mxu0
    %688 = vdwg.mxu0
    %v690 = vrot.slane %v686, 5
    %v692 = vadd.f32 %v149, %v690
    %v693 = vsub.f32 0.0, %v692
    %v694 = vmul.f32 %v693, 1.442695
    %v695 = vpow.pop %v694
    %v696 = vadd.f32 %v695, 1.0
    %v697 = vrcp.pop %v696
    %v698 = vmul.f32 1.0, %v697
    %v699 = vtanh.pop %v692
    %v701 = vrot.slane %v606, 7
    %v703 = vmul.f32 %v698, %v701
    %705 = vrot.lane.b32.xlu0 %v699, 96
    %v706 = vpop.permute.xlu0 %705
    %v708 = vmul.f32 %v698, %v706
    %710 = vrot.lane.b32.xlu0 %v708, 16
    %v711 = vpop.permute.xlu0 %710
    %v713 = vadd.f32 %v703, %v711
    %v714 = vtanh.pop %v713
    %716 = vrot.lane.b32.xlu0 %v714, 32
    %v717 = vpop.permute.xlu0 %716
    %v719 = vmul.f32 %v698, %v717
    %v721 = vrot.slane %v719, 3
    %722 = vrot.lane.b32.xlu0 %v721, 80
    %v723 = vpop.permute.xlu0 %722
    %v724 = vsel %vm277, %v723, 0
    %726 = vmatprep.subr.mxu0 0.0
    %727 = vmatpush1.xpose.msra.mxu0 0.0
    %728 = vmatprep.subr.mxu0 0.0
    %729 = vmatpush1.xpose.msra.mxu0 0.0
    %730 = vmatprep.subr.mxu0 0.0
    %731 = vmatpush1.xpose.msra.mxu0 0.0
    %732 = vmatprep.subr.mxu0 0.0
    %733 = vmatpush1.xpose.msra.mxu0 0.0
    %734 = vmatprep.subr.mxu0 0.0
    %735 = vmatpush1.xpose.msra.mxu0 0.0
    %736 = vmatprep.subr.mxu0 0.0
    %737 = vmatpush1.xpose.msra.mxu0 0.0
    %738 = vmatprep.subr.mxu0 0.0
    %739 = vmatpush1.xpose.msra.mxu0 0.0
    %740 = vmatprep.subr.mxu0 0.0
    %741 = vmatpush1.xpose.msra.mxu0 0.0
    %742 = vmatprep.subr.mxu0 0.0
    %743 = vmatpush1.xpose.msra.mxu0 %v303
    %744 = vmatprep.subr.mxu0 0.0
    %745 = vmatpush1.xpose.msra.mxu0 %v300
    %746 = vmatprep.subr.mxu0 0.0
    %747 = vmatpush1.xpose.msra.mxu0 %v297
    %748 = vmatprep.subr.mxu0 0.0
    %749 = vmatpush1.xpose.msra.mxu0 %v294
    %750 = vmatprep.subr.mxu0 0.0
    %751 = vmatpush1.xpose.msra.mxu0 %v291
    %752 = vmatprep.subr.mxu0 0.0
    %753 = vmatpush1.xpose.msra.mxu0 %v288
    %754 = vmatprep.subr.mxu0 0.0
    %755 = vmatpush1.xpose.msra.mxu0 %v285
    %756 = vmatprep.subr.mxu0 0.0
    %757 = vmatpush1.xpose.msra.mxu0 %v282
    %758 = vmatprep.subr.mxu0 0.0
    %759 = vmatpush2.xpose.msra.mxu0 0.0
    %760 = vmatprep.subr.mxu0 0.0
    %761 = vmatpush2.xpose.msra.mxu0 0.0
    %762 = vmatprep.subr.mxu0 0.0
    %763 = vmatpush2.xpose.msra.mxu0 0.0
    %764 = vmatprep.subr.mxu0 0.0
    %765 = vmatpush2.xpose.msra.mxu0 0.0
    %766 = vmatprep.subr.mxu0 0.0
    %767 = vmatpush2.xpose.msra.mxu0 0.0
    %768 = vmatprep.subr.mxu0 0.0
    %769 = vmatpush2.xpose.msra.mxu0 0.0
    %770 = vmatprep.subr.mxu0 0.0
    %771 = vmatpush2.xpose.msra.mxu0 0.0
    %772 = vmatprep.subr.mxu0 0.0
    %773 = vmatpush2.xpose.msra.mxu0 0.0
    %774 = vmatprep.subr.mxu0 0.0
    %775 = vmatpush2.xpose.msra.mxu0 0.0
    %776 = vmatprep.subr.mxu0 0.0
    %777 = vmatpush2.xpose.msra.mxu0 0.0
    %778 = vmatprep.subr.mxu0 0.0
    %779 = vmatpush2.xpose.msra.mxu0 0.0
    %780 = vmatprep.subr.mxu0 0.0
    %781 = vmatpush2.xpose.msra.mxu0 0.0
    %782 = vmatprep.subr.mxu0 0.0
    %783 = vmatpush2.xpose.msra.mxu0 0.0
    %784 = vmatprep.subr.mxu0 0.0
    %785 = vmatpush2.xpose.msra.mxu0 0.0
    %786 = vmatprep.subr.mxu0 0.0
    %787 = vmatpush2.xpose.msra.mxu0 0.0
    %788 = vmatprep.subr.mxu0 0.0
    %789 = vmatpush2.xpose.msra.mxu0 0.0
    %790 = vmatprep.mubr.f32.mxu0 0.0
    %791 = vmatmul.mubr.f32.gmra.mxu0 %v724
    %v792 = vpop.f32.mrf.mxu0
    %v793 = vadd.f32 0.0, %v792
    %v794 = vpop.f32.mrf.mxu0
    %795 = vdwg.mxu0
    %v797 = vrot.slane %v793, 4
    %v799 = vadd.f32 %v149, %v797
    %v800 = vsub.f32 0.0, %v799
    %v801 = vmul.f32 %v800, 1.442695
    %v802 = vpow.pop %v801
    %v803 = vadd.f32 %v802, 1.0
    %v804 = vrcp.pop %v803
    %v805 = vmul.f32 1.0, %v804
    %v806 = vtanh.pop %v799
    %v808 = vrot.slane %v713, 7
    %v810 = vmul.f32 %v805, %v808
    %812 = vrot.lane.b32.xlu0 %v806, 96
    %v813 = vpop.permute.xlu0 %812
    %v815 = vmul.f32 %v805, %v813
    %817 = vrot.lane.b32.xlu0 %v815, 16
    %v818 = vpop.permute.xlu0 %817
    %v820 = vadd.f32 %v810, %v818
    %v821 = vtanh.pop %v820
    %823 = vrot.lane.b32.xlu0 %v821, 32
    %v824 = vpop.permute.xlu0 %823
    %v826 = vmul.f32 %v805, %v824
    %v828 = vrot.slane %v826, 4
    %829 = vrot.lane.b32.xlu0 %v828, 80
    %v830 = vpop.permute.xlu0 %829
    %v831 = vsel %vm277, %v830, 0
    %833 = vmatprep.subr.mxu0 0.0
    %834 = vmatpush1.xpose.msra.mxu0 0.0
    %835 = vmatprep.subr.mxu0 0.0
    %836 = vmatpush1.xpose.msra.mxu0 0.0
    %837 = vmatprep.subr.mxu0 0.0
    %838 = vmatpush1.xpose.msra.mxu0 0.0
    %839 = vmatprep.subr.mxu0 0.0
    %840 = vmatpush1.xpose.msra.mxu0 0.0
    %841 = vmatprep.subr.mxu0 0.0
    %842 = vmatpush1.xpose.msra.mxu0 0.0
    %843 = vmatprep.subr.mxu0 0.0
    %844 = vmatpush1.xpose.msra.mxu0 0.0
    %845 = vmatprep.subr.mxu0 0.0
    %846 = vmatpush1.xpose.msra.mxu0 0.0
    %847 = vmatprep.subr.mxu0 0.0
    %848 = vmatpush1.xpose.msra.mxu0 0.0
    %849 = vmatprep.subr.mxu0 0.0
    %850 = vmatpush1.xpose.msra.mxu0 %v303
    %851 = vmatprep.subr.mxu0 0.0
    %852 = vmatpush1.xpose.msra.mxu0 %v300
    %853 = vmatprep.subr.mxu0 0.0
    %854 = vmatpush1.xpose.msra.mxu0 %v297
    %855 = vmatprep.subr.mxu0 0.0
    %856 = vmatpush1.xpose.msra.mxu0 %v294
    %857 = vmatprep.subr.mxu0 0.0
    %858 = vmatpush1.xpose.msra.mxu0 %v291
    %859 = vmatprep.subr.mxu0 0.0
    %860 = vmatpush1.xpose.msra.mxu0 %v288
    %861 = vmatprep.subr.mxu0 0.0
    %862 = vmatpush1.xpose.msra.mxu0 %v285
    %863 = vmatprep.subr.mxu0 0.0
    %864 = vmatpush1.xpose.msra.mxu0 %v282
    %865 = vmatprep.subr.mxu0 0.0
    %866 = vmatpush2.xpose.msra.mxu0 0.0
    %867 = vmatprep.subr.mxu0 0.0
    %868 = vmatpush2.xpose.msra.mxu0 0.0
    %869 = vmatprep.subr.mxu0 0.0
    %870 = vmatpush2.xpose.msra.mxu0 0.0
    %871 = vmatprep.subr.mxu0 0.0
    %872 = vmatpush2.xpose.msra.mxu0 0.0
    %873 = vmatprep.subr.mxu0 0.0
    %874 = vmatpush2.xpose.msra.mxu0 0.0
    %875 = vmatprep.subr.mxu0 0.0
    %876 = vmatpush2.xpose.msra.mxu0 0.0
    %877 = vmatprep.subr.mxu0 0.0
    %878 = vmatpush2.xpose.msra.mxu0 0.0
    %879 = vmatprep.subr.mxu0 0.0
    %880 = vmatpush2.xpose.msra.mxu0 0.0
    %881 = vmatprep.subr.mxu0 0.0
    %882 = vmatpush2.xpose.msra.mxu0 0.0
    %883 = vmatprep.subr.mxu0 0.0
    %884 = vmatpush2.xpose.msra.mxu0 0.0
    %885 = vmatprep.subr.mxu0 0.0
    %886 = vmatpush2.xpose.msra.mxu0 0.0
    %887 = vmatprep.subr.mxu0 0.0
    %888 = vmatpush2.xpose.msra.mxu0 0.0
    %889 = vmatprep.subr.mxu0 0.0
    %890 = vmatpush2.xpose.msra.mxu0 0.0
    %891 = vmatprep.subr.mxu0 0.0
    %892 = vmatpush2.xpose.msra.mxu0 0.0
    %893 = vmatprep.subr.mxu0 0.0
    %894 = vmatpush2.xpose.msra.mxu0 0.0
    %895 = vmatprep.subr.mxu0 0.0
    %896 = vmatpush2.xpose.msra.mxu0 0.0
    %897 = vmatprep.mubr.f32.mxu0 0.0
    %898 = vmatmul.mubr.f32.gmra.mxu0 %v831
    %v899 = vpop.f32.mrf.mxu0
    %v900 = vadd.f32 0.0, %v899
    %v901 = vpop.f32.mrf.mxu0
    %902 = vdwg.mxu0
    %v904 = vrot.slane %v900, 3
    %v906 = vadd.f32 %v149, %v904
    %v907 = vsub.f32 0.0, %v906
    %v908 = vmul.f32 %v907, 1.442695
    %v909 = vpow.pop %v908
    %v910 = vadd.f32 %v909, 1.0
    %v911 = vrcp.pop %v910
    %v912 = vmul.f32 1.0, %v911
    %v913 = vtanh.pop %v906
    %v915 = vrot.slane %v820, 7
    %v917 = vmul.f32 %v912, %v915
    %919 = vrot.lane.b32.xlu0 %v913, 96
    %v920 = vpop.permute.xlu0 %919
    %v922 = vmul.f32 %v912, %v920
    %924 = vrot.lane.b32.xlu0 %v922, 16
    %v925 = vpop.permute.xlu0 %924
    %v927 = vadd.f32 %v917, %v925
    %v928 = vtanh.pop %v927
    %930 = vrot.lane.b32.xlu0 %v928, 32
    %v931 = vpop.permute.xlu0 %930
    %v933 = vmul.f32 %v912, %v931
    %v935 = vrot.slane %v933, 5
    %936 = vrot.lane.b32.xlu0 %v935, 80
    %v937 = vpop.permute.xlu0 %936
    %v938 = vsel %vm277, %v937, 0
    %940 = vmatprep.subr.mxu0 0.0
    %941 = vmatpush1.xpose.msra.mxu0 0.0
    %942 = vmatprep.subr.mxu0 0.0
    %943 = vmatpush1.xpose.msra.mxu0 0.0
    %944 = vmatprep.subr.mxu0 0.0
    %945 = vmatpush1.xpose.msra.mxu0 0.0
    %946 = vmatprep.subr.mxu0 0.0
    %947 = vmatpush1.xpose.msra.mxu0 0.0
    %948 = vmatprep.subr.mxu0 0.0
    %949 = vmatpush1.xpose.msra.mxu0 0.0
    %950 = vmatprep.subr.mxu0 0.0
    %951 = vmatpush1.xpose.msra.mxu0 0.0
    %952 = vmatprep.subr.mxu0 0.0
    %953 = vmatpush1.xpose.msra.mxu0 0.0
    %954 = vmatprep.subr.mxu0 0.0
    %955 = vmatpush1.xpose.msra.mxu0 0.0
    %956 = vmatprep.subr.mxu0 0.0
    %957 = vmatpush1.xpose.msra.mxu0 %v303
    %958 = vmatprep.subr.mxu0 0.0
    %959 = vmatpush1.xpose.msra.mxu0 %v300
    %960 = vmatprep.subr.mxu0 0.0
    %961 = vmatpush1.xpose.msra.mxu0 %v297
    %962 = vmatprep.subr.mxu0 0.0
    %963 = vmatpush1.xpose.msra.mxu0 %v294
    %964 = vmatprep.subr.mxu0 0.0
    %965 = vmatpush1.xpose.msra.mxu0 %v291
    %966 = vmatprep.subr.mxu0 0.0
    %967 = vmatpush1.xpose.msra.mxu0 %v288
    %968 = vmatprep.subr.mxu0 0.0
    %969 = vmatpush1.xpose.msra.mxu0 %v285
    %970 = vmatprep.subr.mxu0 0.0
    %971 = vmatpush1.xpose.msra.mxu0 %v282
    %972 = vmatprep.subr.mxu0 0.0
    %973 = vmatpush2.xpose.msra.mxu0 0.0
    %974 = vmatprep.subr.mxu0 0.0
    %975 = vmatpush2.xpose.msra.mxu0 0.0
    %976 = vmatprep.subr.mxu0 0.0
    %977 = vmatpush2.xpose.msra.mxu0 0.0
    %978 = vmatprep.subr.mxu0 0.0
    %979 = vmatpush2.xpose.msra.mxu0 0.0
    %980 = vmatprep.subr.mxu0 0.0
    %981 = vmatpush2.xpose.msra.mxu0 0.0
    %982 = vmatprep.subr.mxu0 0.0
    %983 = vmatpush2.xpose.msra.mxu0 0.0
    %984 = vmatprep.subr.mxu0 0.0
    %985 = vmatpush2.xpose.msra.mxu0 0.0
    %986 = vmatprep.subr.mxu0 0.0
    %987 = vmatpush2.xpose.msra.mxu0 0.0
    %988 = vmatprep.subr.mxu0 0.0
    %989 = vmatpush2.xpose.msra.mxu0 0.0
    %990 = vmatprep.subr.mxu0 0.0
    %991 = vmatpush2.xpose.msra.mxu0 0.0
    %992 = vmatprep.subr.mxu0 0.0
    %993 = vmatpush2.xpose.msra.mxu0 0.0
    %994 = vmatprep.subr.mxu0 0.0
    %995 = vmatpush2.xpose.msra.mxu0 0.0
    %996 = vmatprep.subr.mxu0 0.0
    %997 = vmatpush2.xpose.msra.mxu0 0.0
    %998 = vmatprep.subr.mxu0 0.0
    %999 = vmatpush2.xpose.msra.mxu0 0.0
    %1000 = vmatprep.subr.mxu0 0.0
    %1001 = vmatpush2.xpose.msra.mxu0 0.0
    %1002 = vmatprep.subr.mxu0 0.0
    %1003 = vmatpush2.xpose.msra.mxu0 0.0
    %1004 = vmatprep.mubr.f32.mxu0 0.0
    %1005 = vmatmul.mubr.f32.gmra.mxu0 %v938
    %v1006 = vpop.f32.mrf.mxu0
    %v1007 = vadd.f32 0.0, %v1006
    %v1008 = vpop.f32.mrf.mxu0
    %1009 = vdwg.mxu0
    %v1011 = vrot.slane %v1007, 2
    %v1013 = vadd.f32 %v149, %v1011
    %v1014 = vsub.f32 0.0, %v1013
    %v1015 = vmul.f32 %v1014, 1.442695
    %v1016 = vpow.pop %v1015
    %v1017 = vadd.f32 %v1016, 1.0
    %v1018 = vrcp.pop %v1017
    %v1019 = vmul.f32 1.0, %v1018
    %v1020 = vtanh.pop %v1013
    %v1022 = vrot.slane %v927, 7
    %v1024 = vmul.f32 %v1019, %v1022
    %1026 = vrot.lane.b32.xlu0 %v1020, 96
    %v1027 = vpop.permute.xlu0 %1026
    %v1029 = vmul.f32 %v1019, %v1027
    %1031 = vrot.lane.b32.xlu0 %v1029, 16
    %v1032 = vpop.permute.xlu0 %1031
    %v1034 = vadd.f32 %v1024, %v1032
    %v1035 = vtanh.pop %v1034
    %1037 = vrot.lane.b32.xlu0 %v1035, 32
    %v1038 = vpop.permute.xlu0 %1037
    %v1040 = vmul.f32 %v1019, %v1038
    %v1042 = vrot.slane %v1040, 6
    %1043 = vrot.lane.b32.xlu0 %v1042, 80
    %v1044 = vpop.permute.xlu0 %1043
    %v1045 = vsel %vm277, %v1044, 0
    %1047 = vmatprep.subr.mxu0 0.0
    %1048 = vmatpush1.xpose.msra.mxu0 0.0
    %1049 = vmatprep.subr.mxu0 0.0
    %1050 = vmatpush1.xpose.msra.mxu0 0.0
    %1051 = vmatprep.subr.mxu0 0.0
    %1052 = vmatpush1.xpose.msra.mxu0 0.0
    %1053 = vmatprep.subr.mxu0 0.0
    %1054 = vmatpush1.xpose.msra.mxu0 0.0
    %1055 = vmatprep.subr.mxu0 0.0
    %1056 = vmatpush1.xpose.msra.mxu0 0.0
    %1057 = vmatprep.subr.mxu0 0.0
    %1058 = vmatpush1.xpose.msra.mxu0 0.0
    %1059 = vmatprep.subr.mxu0 0.0
    %1060 = vmatpush1.xpose.msra.mxu0 0.0
    %1061 = vmatprep.subr.mxu0 0.0
    %1062 = vmatpush1.xpose.msra.mxu0 0.0
    %1063 = vmatprep.subr.mxu0 0.0
    %1064 = vmatpush1.xpose.msra.mxu0 %v303
    %1065 = vmatprep.subr.mxu0 0.0
    %1066 = vmatpush1.xpose.msra.mxu0 %v300
    %1067 = vmatprep.subr.mxu0 0.0
    %1068 = vmatpush1.xpose.msra.mxu0 %v297
    %1069 = vmatprep.subr.mxu0 0.0
    %1070 = vmatpush1.xpose.msra.mxu0 %v294
    %1071 = vmatprep.subr.mxu0 0.0
    %1072 = vmatpush1.xpose.msra.mxu0 %v291
    %1073 = vmatprep.subr.mxu0 0.0
    %1074 = vmatpush1.xpose.msra.mxu0 %v288
    %1075 = vmatprep.subr.mxu0 0.0
    %1076 = vmatpush1.xpose.msra.mxu0 %v285
    %1077 = vmatprep.subr.mxu0 0.0
    %1078 = vmatpush1.xpose.msra.mxu0 %v282
    %1079 = vmatprep.subr.mxu0 0.0
    %1080 = vmatpush2.xpose.msra.mxu0 0.0
    %1081 = vmatprep.subr.mxu0 0.0
    %1082 = vmatpush2.xpose.msra.mxu0 0.0
    %1083 = vmatprep.subr.mxu0 0.0
    %1084 = vmatpush2.xpose.msra.mxu0 0.0
    %1085 = vmatprep.subr.mxu0 0.0
    %1086 = vmatpush2.xpose.msra.mxu0 0.0
    %1087 = vmatprep.subr.mxu0 0.0
    %1088 = vmatpush2.xpose.msra.mxu0 0.0
    %1089 = vmatprep.subr.mxu0 0.0
    %1090 = vmatpush2.xpose.msra.mxu0 0.0
    %1091 = vmatprep.subr.mxu0 0.0
    %1092 = vmatpush2.xpose.msra.mxu0 0.0
    %1093 = vmatprep.subr.mxu0 0.0
    %1094 = vmatpush2.xpose.msra.mxu0 0.0
    %1095 = vmatprep.subr.mxu0 0.0
    %1096 = vmatpush2.xpose.msra.mxu0 0.0
    %1097 = vmatprep.subr.mxu0 0.0
    %1098 = vmatpush2.xpose.msra.mxu0 0.0
    %1099 = vmatprep.subr.mxu0 0.0
    %1100 = vmatpush2.xpose.msra.mxu0 0.0
    %1101 = vmatprep.subr.mxu0 0.0
    %1102 = vmatpush2.xpose.msra.mxu0 0.0
    %1103 = vmatprep.subr.mxu0 0.0
    %1104 = vmatpush2.xpose.msra.mxu0 0.0
    %1105 = vmatprep.subr.mxu0 0.0
    %1106 = vmatpush2.xpose.msra.mxu0 0.0
    %1107 = vmatprep.subr.mxu0 0.0
    %1108 = vmatpush2.xpose.msra.mxu0 0.0
    %1109 = vmatprep.subr.mxu0 0.0
    %1110 = vmatpush2.xpose.msra.mxu0 0.0
    %1111 = vmatprep.mubr.f32.mxu0 0.0
    %1112 = vmatmul.mubr.f32.gmra.mxu0 %v1045
    %v1113 = vpop.f32.mrf.mxu0
    %v1114 = vadd.f32 0.0, %v1113
    %v1115 = vpop.f32.mrf.mxu0
    %1116 = vdwg.mxu0
    %v1118 = vrot.slane %v1114, 1
    %v1120 = vadd.f32 %v149, %v1118
    %v1121 = vsub.f32 0.0, %v1120
    %v1122 = vmul.f32 %v1121, 1.442695
    %v1123 = vpow.pop %v1122
    %v1124 = vadd.f32 %v1123, 1.0
    %v1125 = vrcp.pop %v1124
    %v1126 = vmul.f32 1.0, %v1125
    %v1127 = vtanh.pop %v1120
    %v1129 = vrot.slane %v1034, 7
    %v1131 = vmul.f32 %v1126, %v1129
    %1133 = vrot.lane.b32.xlu0 %v1127, 96
    %v1134 = vpop.permute.xlu0 %1133
    %v1136 = vmul.f32 %v1126, %v1134
    %1138 = vrot.lane.b32.xlu0 %v1136, 16
    %v1139 = vpop.permute.xlu0 %1138
    %v1141 = vadd.f32 %v1131, %v1139
    %v1142 = vtanh.pop %v1141
    %1144 = vrot.lane.b32.xlu0 %v1142, 32
    %v1145 = vpop.permute.xlu0 %1144
    %v1147 = vmul.f32 %v1126, %v1145
    %v1149 = vsel %vm277, %v269, 0
    %v1152 = vsel %vm277, %v270, 0
    %v1155 = vsel %vm277, %v271, 0
    %v1158 = vsel %vm277, %v272, 0
    %v1161 = vsel %vm277, %v273, 0
    %v1164 = vsel %vm277, %v274, 0
    %v1167 = vsel %vm277, %v275, 0
    %v1170 = vsel %vm277, %v276, 0
    %1172 = vmatprep.subr.mxu0 0.0
    %1173 = vmatpush1.xpose.msra.mxu0 0.0
    %1174 = vmatprep.subr.mxu0 0.0
    %1175 = vmatpush1.xpose.msra.mxu0 0.0
    %1176 = vmatprep.subr.mxu0 0.0
    %1177 = vmatpush1.xpose.msra.mxu0 0.0
    %1178 = vmatprep.subr.mxu0 0.0
    %1179 = vmatpush1.xpose.msra.mxu0 0.0
    %1180 = vmatprep.subr.mxu0 0.0
    %1181 = vmatpush1.xpose.msra.mxu0 0.0
    %1182 = vmatprep.subr.mxu0 0.0
    %1183 = vmatpush1.xpose.msra.mxu0 0.0
    %1184 = vmatprep.subr.mxu0 0.0
    %1185 = vmatpush1.xpose.msra.mxu0 0.0
    %1186 = vmatprep.subr.mxu0 0.0
    %1187 = vmatpush1.xpose.msra.mxu0 0.0
    %1188 = vmatprep.subr.mxu0 0.0
    %1189 = vmatpush1.xpose.msra.mxu0 %v1170
    %1190 = vmatprep.subr.mxu0 0.0
    %1191 = vmatpush1.xpose.msra.mxu0 %v1167
    %1192 = vmatprep.subr.mxu0 0.0
    %1193 = vmatpush1.xpose.msra.mxu0 %v1164
    %1194 = vmatprep.subr.mxu0 0.0
    %1195 = vmatpush1.xpose.msra.mxu0 %v1161
    %1196 = vmatprep.subr.mxu0 0.0
    %1197 = vmatpush1.xpose.msra.mxu0 %v1158
    %1198 = vmatprep.subr.mxu0 0.0
    %1199 = vmatpush1.xpose.msra.mxu0 %v1155
    %1200 = vmatprep.subr.mxu0 0.0
    %1201 = vmatpush1.xpose.msra.mxu0 %v1152
    %1202 = vmatprep.subr.mxu0 0.0
    %1203 = vmatpush1.xpose.msra.mxu0 %v1149
    %1204 = vmatprep.subr.mxu0 0.0
    %1205 = vmatpush2.xpose.msra.mxu0 0.0
    %1206 = vmatprep.subr.mxu0 0.0
    %1207 = vmatpush2.xpose.msra.mxu0 0.0
    %1208 = vmatprep.subr.mxu0 0.0
    %1209 = vmatpush2.xpose.msra.mxu0 0.0
    %1210 = vmatprep.subr.mxu0 0.0
    %1211 = vmatpush2.xpose.msra.mxu0 0.0
    %1212 = vmatprep.subr.mxu0 0.0
    %1213 = vmatpush2.xpose.msra.mxu0 0.0
    %1214 = vmatprep.subr.mxu0 0.0
    %1215 = vmatpush2.xpose.msra.mxu0 0.0
    %1216 = vmatprep.subr.mxu0 0.0
    %1217 = vmatpush2.xpose.msra.mxu0 0.0
    %1218 = vmatprep.subr.mxu0 0.0
    %1219 = vmatpush2.xpose.msra.mxu0 0.0
    %1220 = vmatprep.subr.mxu0 0.0
    %1221 = vmatpush2.xpose.msra.mxu0 0.0
    %1222 = vmatprep.subr.mxu0 0.0
    %1223 = vmatpush2.xpose.msra.mxu0 0.0
    %1224 = vmatprep.subr.mxu0 0.0
    %1225 = vmatpush2.xpose.msra.mxu0 0.0
    %1226 = vmatprep.subr.mxu0 0.0
    %1227 = vmatpush2.xpose.msra.mxu0 0.0
    %1228 = vmatprep.subr.mxu0 0.0
    %1229 = vmatpush2.xpose.msra.mxu0 0.0
    %1230 = vmatprep.subr.mxu0 0.0
    %1231 = vmatpush2.xpose.msra.mxu0 0.0
    %1232 = vmatprep.subr.mxu0 0.0
    %1233 = vmatpush2.xpose.msra.mxu0 0.0
    %1234 = vmatprep.subr.mxu0 0.0
    %1235 = vmatpush2.xpose.msra.mxu0 0.0
    %1236 = vmatprep.mubr.f32.mxu0 0.0
    %1237 = vmatmul.mubr.f32.gmra.mxu0 %v279
    %v1238 = vpop.f32.mrf.mxu0
    %v1239 = vadd.f32 0.0, %v1238
    %v1240 = vpop.f32.mrf.mxu0
    %1241 = vdwg.mxu0
    %v1243 = vrot.slane %v1239, 1
    %v1245 = vadd.f32 %v258, %v1243
    %v1246 = vsub.f32 0.0, %v1245
    %v1247 = vmul.f32 %v1246, 1.442695
    %v1248 = vpow.pop %v1247
    %v1249 = vadd.f32 %v1248, 1.0
    %v1250 = vrcp.pop %v1249
    %v1251 = vmul.f32 1.0, %v1250
    %v1252 = vtanh.pop %v1245
    %v1253 = vmul.f32 %v1251, 0.0
    %1255 = vrot.lane.b32.xlu0 %v1252, 96
    %v1256 = vpop.permute.xlu0 %1255
    %v1258 = vmul.f32 %v1251, %v1256
    %1260 = vrot.lane.b32.xlu0 %v1258, 16
    %v1261 = vpop.permute.xlu0 %1260
    %v1263 = vadd.f32 %v1253, %v1261
    %v1264 = vtanh.pop %v1263
    %1266 = vrot.lane.b32.xlu0 %v1264, 32
    %v1267 = vpop.permute.xlu0 %1266
    %v1269 = vmul.f32 %v1251, %v1267
    %v1271 = vrot.slane %v1269, 7
    %1272 = vrot.lane.b32.xlu0 %v1271, 80
    %v1273 = vpop.permute.xlu0 %1272
    %v1274 = vsel %vm277, %v1273, 0
    %1276 = vmatprep.subr.mxu0 0.0
    %1277 = vmatpush1.xpose.msra.mxu0 0.0
    %1278 = vmatprep.subr.mxu0 0.0
    %1279 = vmatpush1.xpose.msra.mxu0 0.0
    %1280 = vmatprep.subr.mxu0 0.0
    %1281 = vmatpush1.xpose.msra.mxu0 0.0
    %1282 = vmatprep.subr.mxu0 0.0
    %1283 = vmatpush1.xpose.msra.mxu0 0.0
    %1284 = vmatprep.subr.mxu0 0.0
    %1285 = vmatpush1.xpose.msra.mxu0 0.0
    %1286 = vmatprep.subr.mxu0 0.0
    %1287 = vmatpush1.xpose.msra.mxu0 0.0
    %1288 = vmatprep.subr.mxu0 0.0
    %1289 = vmatpush1.xpose.msra.mxu0 0.0
    %1290 = vmatprep.subr.mxu0 0.0
    %1291 = vmatpush1.xpose.msra.mxu0 0.0
    %1292 = vmatprep.subr.mxu0 0.0
    %1293 = vmatpush1.xpose.msra.mxu0 %v1170
    %1294 = vmatprep.subr.mxu0 0.0
    %1295 = vmatpush1.xpose.msra.mxu0 %v1167
    %1296 = vmatprep.subr.mxu0 0.0
    %1297 = vmatpush1.xpose.msra.mxu0 %v1164
    %1298 = vmatprep.subr.mxu0 0.0
    %1299 = vmatpush1.xpose.msra.mxu0 %v1161
    %1300 = vmatprep.subr.mxu0 0.0
    %1301 = vmatpush1.xpose.msra.mxu0 %v1158
    %1302 = vmatprep.subr.mxu0 0.0
    %1303 = vmatpush1.xpose.msra.mxu0 %v1155
    %1304 = vmatprep.subr.mxu0 0.0
    %1305 = vmatpush1.xpose.msra.mxu0 %v1152
    %1306 = vmatprep.subr.mxu0 0.0
    %1307 = vmatpush1.xpose.msra.mxu0 %v1149
    %1308 = vmatprep.subr.mxu0 0.0
    %1309 = vmatpush2.xpose.msra.mxu0 0.0
    %1310 = vmatprep.subr.mxu0 0.0
    %1311 = vmatpush2.xpose.msra.mxu0 0.0
    %1312 = vmatprep.subr.mxu0 0.0
    %1313 = vmatpush2.xpose.msra.mxu0 0.0
    %1314 = vmatprep.subr.mxu0 0.0
    %1315 = vmatpush2.xpose.msra.mxu0 0.0
    %1316 = vmatprep.subr.mxu0 0.0
    %1317 = vmatpush2.xpose.msra.mxu0 0.0
    %1318 = vmatprep.subr.mxu0 0.0
    %1319 = vmatpush2.xpose.msra.mxu0 0.0
    %1320 = vmatprep.subr.mxu0 0.0
    %1321 = vmatpush2.xpose.msra.mxu0 0.0
    %1322 = vmatprep.subr.mxu0 0.0
    %1323 = vmatpush2.xpose.msra.mxu0 0.0
    %1324 = vmatprep.subr.mxu0 0.0
    %1325 = vmatpush2.xpose.msra.mxu0 0.0
    %1326 = vmatprep.subr.mxu0 0.0
    %1327 = vmatpush2.xpose.msra.mxu0 0.0
    %1328 = vmatprep.subr.mxu0 0.0
    %1329 = vmatpush2.xpose.msra.mxu0 0.0
    %1330 = vmatprep.subr.mxu0 0.0
    %1331 = vmatpush2.xpose.msra.mxu0 0.0
    %1332 = vmatprep.subr.mxu0 0.0
    %1333 = vmatpush2.xpose.msra.mxu0 0.0
    %1334 = vmatprep.subr.mxu0 0.0
    %1335 = vmatpush2.xpose.msra.mxu0 0.0
    %1336 = vmatprep.subr.mxu0 0.0
    %1337 = vmatpush2.xpose.msra.mxu0 0.0
    %1338 = vmatprep.subr.mxu0 0.0
    %1339 = vmatpush2.xpose.msra.mxu0 0.0
    %1340 = vmatprep.mubr.f32.mxu0 0.0
    %1341 = vmatmul.mubr.f32.gmra.mxu0 %v1274
    %v1342 = vpop.f32.mrf.mxu0
    %v1343 = vadd.f32 0.0, %v1342
    %v1344 = vpop.f32.mrf.mxu0
    %1345 = vdwg.mxu0
    %v1347 = vrot.slane %v1343, 2
    %v1349 = vadd.f32 %v258, %v1347
    %v1350 = vsub.f32 0.0, %v1349
    %v1351 = vmul.f32 %v1350, 1.442695
    %v1352 = vpow.pop %v1351
    %v1353 = vadd.f32 %v1352, 1.0
    %v1354 = vrcp.pop %v1353
    %v1355 = vmul.f32 1.0, %v1354
    %v1356 = vtanh.pop %v1349
    %v1358 = vrot.slane %v1263, 1
    %v1360 = vmul.f32 %v1355, %v1358
    %1362 = vrot.lane.b32.xlu0 %v1356, 96
    %v1363 = vpop.permute.xlu0 %1362
    %v1365 = vmul.f32 %v1355, %v1363
    %1367 = vrot.lane.b32.xlu0 %v1365, 16
    %v1368 = vpop.permute.xlu0 %1367
    %v1370 = vadd.f32 %v1360, %v1368
    %v1371 = vtanh.pop %v1370
    %1373 = vrot.lane.b32.xlu0 %v1371, 32
    %v1374 = vpop.permute.xlu0 %1373
    %v1376 = vmul.f32 %v1355, %v1374
    %v1378 = vrot.slane %v1376, 6
    %1379 = vrot.lane.b32.xlu0 %v1378, 80
    %v1380 = vpop.permute.xlu0 %1379
    %v1381 = vsel %vm277, %v1380, 0
    %1383 = vmatprep.subr.mxu0 0.0
    %1384 = vmatpush1.xpose.msra.mxu0 0.0
    %1385 = vmatprep.subr.mxu0 0.0
    %1386 = vmatpush1.xpose.msra.mxu0 0.0
    %1387 = vmatprep.subr.mxu0 0.0
    %1388 = vmatpush1.xpose.msra.mxu0 0.0
    %1389 = vmatprep.subr.mxu0 0.0
    %1390 = vmatpush1.xpose.msra.mxu0 0.0
    %1391 = vmatprep.subr.mxu0 0.0
    %1392 = vmatpush1.xpose.msra.mxu0 0.0
    %1393 = vmatprep.subr.mxu0 0.0
    %1394 = vmatpush1.xpose.msra.mxu0 0.0
    %1395 = vmatprep.subr.mxu0 0.0
    %1396 = vmatpush1.xpose.msra.mxu0 0.0
    %1397 = vmatprep.subr.mxu0 0.0
    %1398 = vmatpush1.xpose.msra.mxu0 0.0
    %1399 = vmatprep.subr.mxu0 0.0
    %1400 = vmatpush1.xpose.msra.mxu0 %v1170
    %1401 = vmatprep.subr.mxu0 0.0
    %1402 = vmatpush1.xpose.msra.mxu0 %v1167
    %1403 = vmatprep.subr.mxu0 0.0
    %1404 = vmatpush1.xpose.msra.mxu0 %v1164
    %1405 = vmatprep.subr.mxu0 0.0
    %1406 = vmatpush1.xpose.msra.mxu0 %v1161
    %1407 = vmatprep.subr.mxu0 0.0
    %1408 = vmatpush1.xpose.msra.mxu0 %v1158
    %1409 = vmatprep.subr.mxu0 0.0
    %1410 = vmatpush1.xpose.msra.mxu0 %v1155
    %1411 = vmatprep.subr.mxu0 0.0
    %1412 = vmatpush1.xpose.msra.mxu0 %v1152
    %1413 = vmatprep.subr.mxu0 0.0
    %1414 = vmatpush1.xpose.msra.mxu0 %v1149
    %1415 = vmatprep.subr.mxu0 0.0
    %1416 = vmatpush2.xpose.msra.mxu0 0.0
    %1417 = vmatprep.subr.mxu0 0.0
    %1418 = vmatpush2.xpose.msra.mxu0 0.0
    %1419 = vmatprep.subr.mxu0 0.0
    %1420 = vmatpush2.xpose.msra.mxu0 0.0
    %1421 = vmatprep.subr.mxu0 0.0
    %1422 = vmatpush2.xpose.msra.mxu0 0.0
    %1423 = vmatprep.subr.mxu0 0.0
    %1424 = vmatpush2.xpose.msra.mxu0 0.0
    %1425 = vmatprep.subr.mxu0 0.0
    %1426 = vmatpush2.xpose.msra.mxu0 0.0
    %1427 = vmatprep.subr.mxu0 0.0
    %1428 = vmatpush2.xpose.msra.mxu0 0.0
    %1429 = vmatprep.subr.mxu0 0.0
    %1430 = vmatpush2.xpose.msra.mxu0 0.0
    %1431 = vmatprep.subr.mxu0 0.0
    %1432 = vmatpush2.xpose.msra.mxu0 0.0
    %1433 = vmatprep.subr.mxu0 0.0
    %1434 = vmatpush2.xpose.msra.mxu0 0.0
    %1435 = vmatprep.subr.mxu0 0.0
    %1436 = vmatpush2.xpose.msra.mxu0 0.0
    %1437 = vmatprep.subr.mxu0 0.0
    %1438 = vmatpush2.xpose.msra.mxu0 0.0
    %1439 = vmatprep.subr.mxu0 0.0
    %1440 = vmatpush2.xpose.msra.mxu0 0.0
    %1441 = vmatprep.subr.mxu0 0.0
    %1442 = vmatpush2.xpose.msra.mxu0 0.0
    %1443 = vmatprep.subr.mxu0 0.0
    %1444 = vmatpush2.xpose.msra.mxu0 0.0
    %1445 = vmatprep.subr.mxu0 0.0
    %1446 = vmatpush2.xpose.msra.mxu0 0.0
    %1447 = vmatprep.mubr.f32.mxu0 0.0
    %1448 = vmatmul.mubr.f32.gmra.mxu0 %v1381
    %v1449 = vpop.f32.mrf.mxu0
    %v1450 = vadd.f32 0.0, %v1449
    %v1451 = vpop.f32.mrf.mxu0
    %1452 = vdwg.mxu0
    %v1454 = vrot.slane %v1450, 3
    %v1456 = vadd.f32 %v258, %v1454
    %v1457 = vsub.f32 0.0, %v1456
    %v1458 = vmul.f32 %v1457, 1.442695
    %v1459 = vpow.pop %v1458
    %v1460 = vadd.f32 %v1459, 1.0
    %v1461 = vrcp.pop %v1460
    %v1462 = vmul.f32 1.0, %v1461
    %v1463 = vtanh.pop %v1456
    %v1465 = vrot.slane %v1370, 1
    %v1467 = vmul.f32 %v1462, %v1465
    %1469 = vrot.lane.b32.xlu0 %v1463, 96
    %v1470 = vpop.permute.xlu0 %1469
    %v1472 = vmul.f32 %v1462, %v1470
    %1474 = vrot.lane.b32.xlu0 %v1472, 16
    %v1475 = vpop.permute.xlu0 %1474
    %v1477 = vadd.f32 %v1467, %v1475
    %v1478 = vtanh.pop %v1477
    %1480 = vrot.lane.b32.xlu0 %v1478, 32
    %v1481 = vpop.permute.xlu0 %1480
    %v1483 = vmul.f32 %v1462, %v1481
    %v1485 = vrot.slane %v1483, 5
    %1486 = vrot.lane.b32.xlu0 %v1485, 80
    %v1487 = vpop.permute.xlu0 %1486
    %v1488 = vsel %vm277, %v1487, 0
    %1490 = vmatprep.subr.mxu0 0.0
    %1491 = vmatpush1.xpose.msra.mxu0 0.0
    %1492 = vmatprep.subr.mxu0 0.0
    %1493 = vmatpush1.xpose.msra.mxu0 0.0
    %1494 = vmatprep.subr.mxu0 0.0
    %1495 = vmatpush1.xpose.msra.mxu0 0.0
    %1496 = vmatprep.subr.mxu0 0.0
    %1497 = vmatpush1.xpose.msra.mxu0 0.0
    %1498 = vmatprep.subr.mxu0 0.0
    %1499 = vmatpush1.xpose.msra.mxu0 0.0
    %1500 = vmatprep.subr.mxu0 0.0
    %1501 = vmatpush1.xpose.msra.mxu0 0.0
    %1502 = vmatprep.subr.mxu0 0.0
    %1503 = vmatpush1.xpose.msra.mxu0 0.0
    %1504 = vmatprep.subr.mxu0 0.0
    %1505 = vmatpush1.xpose.msra.mxu0 0.0
    %1506 = vmatprep.subr.mxu0 0.0
    %1507 = vmatpush1.xpose.msra.mxu0 %v1170
    %1508 = vmatprep.subr.mxu0 0.0
    %1509 = vmatpush1.xpose.msra.mxu0 %v1167
    %1510 = vmatprep.subr.mxu0 0.0
    %1511 = vmatpush1.xpose.msra.mxu0 %v1164
    %1512 = vmatprep.subr.mxu0 0.0
    %1513 = vmatpush1.xpose.msra.mxu0 %v1161
    %1514 = vmatprep.subr.mxu0 0.0
    %1515 = vmatpush1.xpose.msra.mxu0 %v1158
    %1516 = vmatprep.subr.mxu0 0.0
    %1517 = vmatpush1.xpose.msra.mxu0 %v1155
    %1518 = vmatprep.subr.mxu0 0.0
    %1519 = vmatpush1.xpose.msra.mxu0 %v1152
    %1520 = vmatprep.subr.mxu0 0.0
    %1521 = vmatpush1.xpose.msra.mxu0 %v1149
    %1522 = vmatprep.subr.mxu0 0.0
    %1523 = vmatpush2.xpose.msra.mxu0 0.0
    %1524 = vmatprep.subr.mxu0 0.0
    %1525 = vmatpush2.xpose.msra.mxu0 0.0
    %1526 = vmatprep.subr.mxu0 0.0
    %1527 = vmatpush2.xpose.msra.mxu0 0.0
    %1528 = vmatprep.subr.mxu0 0.0
    %1529 = vmatpush2.xpose.msra.mxu0 0.0
    %1530 = vmatprep.subr.mxu0 0.0
    %1531 = vmatpush2.xpose.msra.mxu0 0.0
    %1532 = vmatprep.subr.mxu0 0.0
    %1533 = vmatpush2.xpose.msra.mxu0 0.0
    %1534 = vmatprep.subr.mxu0 0.0
    %1535 = vmatpush2.xpose.msra.mxu0 0.0
    %1536 = vmatprep.subr.mxu0 0.0
    %1537 = vmatpush2.xpose.msra.mxu0 0.0
    %1538 = vmatprep.subr.mxu0 0.0
    %1539 = vmatpush2.xpose.msra.mxu0 0.0
    %1540 = vmatprep.subr.mxu0 0.0
    %1541 = vmatpush2.xpose.msra.mxu0 0.0
    %1542 = vmatprep.subr.mxu0 0.0
    %1543 = vmatpush2.xpose.msra.mxu0 0.0
    %1544 = vmatprep.subr.mxu0 0.0
    %1545 = vmatpush2.xpose.msra.mxu0 0.0
    %1546 = vmatprep.subr.mxu0 0.0
    %1547 = vmatpush2.xpose.msra.mxu0 0.0
    %1548 = vmatprep.subr.mxu0 0.0
    %1549 = vmatpush2.xpose.msra.mxu0 0.0
    %1550 = vmatprep.subr.mxu0 0.0
    %1551 = vmatpush2.xpose.msra.mxu0 0.0
    %1552 = vmatprep.subr.mxu0 0.0
    %1553 = vmatpush2.xpose.msra.mxu0 0.0
    %1554 = vmatprep.mubr.f32.mxu0 0.0
    %1555 = vmatmul.mubr.f32.gmra.mxu0 %v1488
    %v1556 = vpop.f32.mrf.mxu0
    %v1557 = vadd.f32 0.0, %v1556
    %v1558 = vpop.f32.mrf.mxu0
    %1559 = vdwg.mxu0
    %v1561 = vrot.slane %v1557, 4
    %v1563 = vadd.f32 %v258, %v1561
    %v1564 = vsub.f32 0.0, %v1563
    %v1565 = vmul.f32 %v1564, 1.442695
    %v1566 = vpow.pop %v1565
    %v1567 = vadd.f32 %v1566, 1.0
    %v1568 = vrcp.pop %v1567
    %v1569 = vmul.f32 1.0, %v1568
    %v1570 = vtanh.pop %v1563
    %v1572 = vrot.slane %v1477, 1
    %v1574 = vmul.f32 %v1569, %v1572
    %1576 = vrot.lane.b32.xlu0 %v1570, 96
    %v1577 = vpop.permute.xlu0 %1576
    %v1579 = vmul.f32 %v1569, %v1577
    %1581 = vrot.lane.b32.xlu0 %v1579, 16
    %v1582 = vpop.permute.xlu0 %1581
    %v1584 = vadd.f32 %v1574, %v1582
    %v1585 = vtanh.pop %v1584
    %1587 = vrot.lane.b32.xlu0 %v1585, 32
    %v1588 = vpop.permute.xlu0 %1587
    %v1590 = vmul.f32 %v1569, %v1588
    %v1592 = vrot.slane %v1590, 4
    %1593 = vrot.lane.b32.xlu0 %v1592, 80
    %v1594 = vpop.permute.xlu0 %1593
    %v1595 = vsel %vm277, %v1594, 0
    %1597 = vmatprep.subr.mxu0 0.0
    %1598 = vmatpush1.xpose.msra.mxu0 0.0
    %1599 = vmatprep.subr.mxu0 0.0
    %1600 = vmatpush1.xpose.msra.mxu0 0.0
    %1601 = vmatprep.subr.mxu0 0.0
    %1602 = vmatpush1.xpose.msra.mxu0 0.0
    %1603 = vmatprep.subr.mxu0 0.0
    %1604 = vmatpush1.xpose.msra.mxu0 0.0
    %1605 = vmatprep.subr.mxu0 0.0
    %1606 = vmatpush1.xpose.msra.mxu0 0.0
    %1607 = vmatprep.subr.mxu0 0.0
    %1608 = vmatpush1.xpose.msra.mxu0 0.0
    %1609 = vmatprep.subr.mxu0 0.0
    %1610 = vmatpush1.xpose.msra.mxu0 0.0
    %1611 = vmatprep.subr.mxu0 0.0
    %1612 = vmatpush1.xpose.msra.mxu0 0.0
    %1613 = vmatprep.subr.mxu0 0.0
    %1614 = vmatpush1.xpose.msra.mxu0 %v1170
    %1615 = vmatprep.subr.mxu0 0.0
    %1616 = vmatpush1.xpose.msra.mxu0 %v1167
    %1617 = vmatprep.subr.mxu0 0.0
    %1618 = vmatpush1.xpose.msra.mxu0 %v1164
    %1619 = vmatprep.subr.mxu0 0.0
    %1620 = vmatpush1.xpose.msra.mxu0 %v1161
    %1621 = vmatprep.subr.mxu0 0.0
    %1622 = vmatpush1.xpose.msra.mxu0 %v1158
    %1623 = vmatprep.subr.mxu0 0.0
    %1624 = vmatpush1.xpose.msra.mxu0 %v1155
    %1625 = vmatprep.subr.mxu0 0.0
    %1626 = vmatpush1.xpose.msra.mxu0 %v1152
    %1627 = vmatprep.subr.mxu0 0.0
    %1628 = vmatpush1.xpose.msra.mxu0 %v1149
    %1629 = vmatprep.subr.mxu0 0.0
    %1630 = vmatpush2.xpose.msra.mxu0 0.0
    %1631 = vmatprep.subr.mxu0 0.0
    %1632 = vmatpush2.xpose.msra.mxu0 0.0
    %1633 = vmatprep.subr.mxu0 0.0
    %1634 = vmatpush2.xpose.msra.mxu0 0.0
    %1635 = vmatprep.subr.mxu0 0.0
    %1636 = vmatpush2.xpose.msra.mxu0 0.0
    %1637 = vmatprep.subr.mxu0 0.0
    %1638 = vmatpush2.xpose.msra.mxu0 0.0
    %1639 = vmatprep.subr.mxu0 0.0
    %1640 = vmatpush2.xpose.msra.mxu0 0.0
    %1641 = vmatprep.subr.mxu0 0.0
    %1642 = vmatpush2.xpose.msra.mxu0 0.0
    %1643 = vmatprep.subr.mxu0 0.0
    %1644 = vmatpush2.xpose.msra.mxu0 0.0
    %1645 = vmatprep.subr.mxu0 0.0
    %1646 = vmatpush2.xpose.msra.mxu0 0.0
    %1647 = vmatprep.subr.mxu0 0.0
    %1648 = vmatpush2.xpose.msra.mxu0 0.0
    %1649 = vmatprep.subr.mxu0 0.0
    %1650 = vmatpush2.xpose.msra.mxu0 0.0
    %1651 = vmatprep.subr.mxu0 0.0
    %1652 = vmatpush2.xpose.msra.mxu0 0.0
    %1653 = vmatprep.subr.mxu0 0.0
    %1654 = vmatpush2.xpose.msra.mxu0 0.0
    %1655 = vmatprep.subr.mxu0 0.0
    %1656 = vmatpush2.xpose.msra.mxu0 0.0
    %1657 = vmatprep.subr.mxu0 0.0
    %1658 = vmatpush2.xpose.msra.mxu0 0.0
    %1659 = vmatprep.subr.mxu0 0.0
    %1660 = vmatpush2.xpose.msra.mxu0 0.0
    %1661 = vmatprep.mubr.f32.mxu0 0.0
    %1662 = vmatmul.mubr.f32.gmra.mxu0 %v1595
    %v1663 = vpop.f32.mrf.mxu0
    %v1664 = vadd.f32 0.0, %v1663
    %v1665 = vpop.f32.mrf.mxu0
    %1666 = vdwg.mxu0
    %v1668 = vrot.slane %v1664, 5
    %v1670 = vadd.f32 %v258, %v1668
    %v1671 = vsub.f32 0.0, %v1670
    %v1672 = vmul.f32 %v1671, 1.442695
    %v1673 = vpow.pop %v1672
    %v1674 = vadd.f32 %v1673, 1.0
    %v1675 = vrcp.pop %v1674
    %v1676 = vmul.f32 1.0, %v1675
    %v1677 = vtanh.pop %v1670
    %v1679 = vrot.slane %v1584, 1
    %v1681 = vmul.f32 %v1676, %v1679
    %1683 = vrot.lane.b32.xlu0 %v1677, 96
    %v1684 = vpop.permute.xlu0 %1683
    %v1686 = vmul.f32 %v1676, %v1684
    %1688 = vrot.lane.b32.xlu0 %v1686, 16
    %v1689 = vpop.permute.xlu0 %1688
    %v1691 = vadd.f32 %v1681, %v1689
    %v1692 = vtanh.pop %v1691
    %1694 = vrot.lane.b32.xlu0 %v1692, 32
    %v1695 = vpop.permute.xlu0 %1694
    %v1697 = vmul.f32 %v1676, %v1695
    %v1699 = vrot.slane %v1697, 3
    %1700 = vrot.lane.b32.xlu0 %v1699, 80
    %v1701 = vpop.permute.xlu0 %1700
    %v1702 = vsel %vm277, %v1701, 0
    %1704 = vmatprep.subr.mxu0 0.0
    %1705 = vmatpush1.xpose.msra.mxu0 0.0
    %1706 = vmatprep.subr.mxu0 0.0
    %1707 = vmatpush1.xpose.msra.mxu0 0.0
    %1708 = vmatprep.subr.mxu0 0.0
    %1709 = vmatpush1.xpose.msra.mxu0 0.0
    %1710 = vmatprep.subr.mxu0 0.0
    %1711 = vmatpush1.xpose.msra.mxu0 0.0
    %1712 = vmatprep.subr.mxu0 0.0
    %1713 = vmatpush1.xpose.msra.mxu0 0.0
    %1714 = vmatprep.subr.mxu0 0.0
    %1715 = vmatpush1.xpose.msra.mxu0 0.0
    %1716 = vmatprep.subr.mxu0 0.0
    %1717 = vmatpush1.xpose.msra.mxu0 0.0
    %1718 = vmatprep.subr.mxu0 0.0
    %1719 = vmatpush1.xpose.msra.mxu0 0.0
    %1720 = vmatprep.subr.mxu0 0.0
    %1721 = vmatpush1.xpose.msra.mxu0 %v1170
    %1722 = vmatprep.subr.mxu0 0.0
    %1723 = vmatpush1.xpose.msra.mxu0 %v1167
    %1724 = vmatprep.subr.mxu0 0.0
    %1725 = vmatpush1.xpose.msra.mxu0 %v1164
    %1726 = vmatprep.subr.mxu0 0.0
    %1727 = vmatpush1.xpose.msra.mxu0 %v1161
    %1728 = vmatprep.subr.mxu0 0.0
    %1729 = vmatpush1.xpose.msra.mxu0 %v1158
    %1730 = vmatprep.subr.mxu0 0.0
    %1731 = vmatpush1.xpose.msra.mxu0 %v1155
    %1732 = vmatprep.subr.mxu0 0.0
    %1733 = vmatpush1.xpose.msra.mxu0 %v1152
    %1734 = vmatprep.subr.mxu0 0.0
    %1735 = vmatpush1.xpose.msra.mxu0 %v1149
    %1736 = vmatprep.subr.mxu0 0.0
    %1737 = vmatpush2.xpose.msra.mxu0 0.0
    %1738 = vmatprep.subr.mxu0 0.0
    %1739 = vmatpush2.xpose.msra.mxu0 0.0
    %1740 = vmatprep.subr.mxu0 0.0
    %1741 = vmatpush2.xpose.msra.mxu0 0.0
    %1742 = vmatprep.subr.mxu0 0.0
    %1743 = vmatpush2.xpose.msra.mxu0 0.0
    %1744 = vmatprep.subr.mxu0 0.0
    %1745 = vmatpush2.xpose.msra.mxu0 0.0
    %1746 = vmatprep.subr.mxu0 0.0
    %1747 = vmatpush2.xpose.msra.mxu0 0.0
    %1748 = vmatprep.subr.mxu0 0.0
    %1749 = vmatpush2.xpose.msra.mxu0 0.0
    %1750 = vmatprep.subr.mxu0 0.0
    %1751 = vmatpush2.xpose.msra.mxu0 0.0
    %1752 = vmatprep.subr.mxu0 0.0
    %1753 = vmatpush2.xpose.msra.mxu0 0.0
    %1754 = vmatprep.subr.mxu0 0.0
    %1755 = vmatpush2.xpose.msra.mxu0 0.0
    %1756 = vmatprep.subr.mxu0 0.0
    %1757 = vmatpush2.xpose.msra.mxu0 0.0
    %1758 = vmatprep.subr.mxu0 0.0
    %1759 = vmatpush2.xpose.msra.mxu0 0.0
    %1760 = vmatprep.subr.mxu0 0.0
    %1761 = vmatpush2.xpose.msra.mxu0 0.0
    %1762 = vmatprep.subr.mxu0 0.0
    %1763 = vmatpush2.xpose.msra.mxu0 0.0
    %1764 = vmatprep.subr.mxu0 0.0
    %1765 = vmatpush2.xpose.msra.mxu0 0.0
    %1766 = vmatprep.subr.mxu0 0.0
    %1767 = vmatpush2.xpose.msra.mxu0 0.0
    %1768 = vmatprep.mubr.f32.mxu0 0.0
    %1769 = vmatmul.mubr.f32.gmra.mxu0 %v1702
    %v1770 = vpop.f32.mrf.mxu0
    %v1771 = vadd.f32 0.0, %v1770
    %v1772 = vpop.f32.mrf.mxu0
    %1773 = vdwg.mxu0
    %v1775 = vrot.slane %v1771, 6
    %v1777 = vadd.f32 %v258, %v1775
    %v1778 = vsub.f32 0.0, %v1777
    %v1779 = vmul.f32 %v1778, 1.442695
    %v1780 = vpow.pop %v1779
    %v1781 = vadd.f32 %v1780, 1.0
    %v1782 = vrcp.pop %v1781
    %v1783 = vmul.f32 1.0, %v1782
    %v1784 = vtanh.pop %v1777
    %v1786 = vrot.slane %v1691, 1
    %v1788 = vmul.f32 %v1783, %v1786
    %1790 = vrot.lane.b32.xlu0 %v1784, 96
    %v1791 = vpop.permute.xlu0 %1790
    %v1793 = vmul.f32 %v1783, %v1791
    %1795 = vrot.lane.b32.xlu0 %v1793, 16
    %v1796 = vpop.permute.xlu0 %1795
    %v1798 = vadd.f32 %v1788, %v1796
    %v1799 = vtanh.pop %v1798
    %1801 = vrot.lane.b32.xlu0 %v1799, 32
    %v1802 = vpop.permute.xlu0 %1801
    %v1804 = vmul.f32 %v1783, %v1802
    %v1806 = vrot.slane %v1804, 2
    %1807 = vrot.lane.b32.xlu0 %v1806, 80
    %v1808 = vpop.permute.xlu0 %1807
    %v1809 = vsel %vm277, %v1808, 0
    %1811 = vmatprep.subr.mxu0 0.0
    %1812 = vmatpush1.xpose.msra.mxu0 0.0
    %1813 = vmatprep.subr.mxu0 0.0
    %1814 = vmatpush1.xpose.msra.mxu0 0.0
    %1815 = vmatprep.subr.mxu0 0.0
    %1816 = vmatpush1.xpose.msra.mxu0 0.0
    %1817 = vmatprep.subr.mxu0 0.0
    %1818 = vmatpush1.xpose.msra.mxu0 0.0
    %1819 = vmatprep.subr.mxu0 0.0
    %1820 = vmatpush1.xpose.msra.mxu0 0.0
    %1821 = vmatprep.subr.mxu0 0.0
    %1822 = vmatpush1.xpose.msra.mxu0 0.0
    %1823 = vmatprep.subr.mxu0 0.0
    %1824 = vmatpush1.xpose.msra.mxu0 0.0
    %1825 = vmatprep.subr.mxu0 0.0
    %1826 = vmatpush1.xpose.msra.mxu0 0.0
    %1827 = vmatprep.subr.mxu0 0.0
    %1828 = vmatpush1.xpose.msra.mxu0 %v1170
    %1829 = vmatprep.subr.mxu0 0.0
    %1830 = vmatpush1.xpose.msra.mxu0 %v1167
    %1831 = vmatprep.subr.mxu0 0.0
    %1832 = vmatpush1.xpose.msra.mxu0 %v1164
    %1833 = vmatprep.subr.mxu0 0.0
    %1834 = vmatpush1.xpose.msra.mxu0 %v1161
    %1835 = vmatprep.subr.mxu0 0.0
    %1836 = vmatpush1.xpose.msra.mxu0 %v1158
    %1837 = vmatprep.subr.mxu0 0.0
    %1838 = vmatpush1.xpose.msra.mxu0 %v1155
    %1839 = vmatprep.subr.mxu0 0.0
    %1840 = vmatpush1.xpose.msra.mxu0 %v1152
    %1841 = vmatprep.subr.mxu0 0.0
    %1842 = vmatpush1.xpose.msra.mxu0 %v1149
    %1843 = vmatprep.subr.mxu0 0.0
    %1844 = vmatpush2.xpose.msra.mxu0 0.0
    %1845 = vmatprep.subr.mxu0 0.0
    %1846 = vmatpush2.xpose.msra.mxu0 0.0
    %1847 = vmatprep.subr.mxu0 0.0
    %1848 = vmatpush2.xpose.msra.mxu0 0.0
    %1849 = vmatprep.subr.mxu0 0.0
    %1850 = vmatpush2.xpose.msra.mxu0 0.0
    %1851 = vmatprep.subr.mxu0 0.0
    %1852 = vmatpush2.xpose.msra.mxu0 0.0
    %1853 = vmatprep.subr.mxu0 0.0
    %1854 = vmatpush2.xpose.msra.mxu0 0.0
    %1855 = vmatprep.subr.mxu0 0.0
    %1856 = vmatpush2.xpose.msra.mxu0 0.0
    %1857 = vmatprep.subr.mxu0 0.0
    %1858 = vmatpush2.xpose.msra.mxu0 0.0
    %1859 = vmatprep.subr.mxu0 0.0
    %1860 = vmatpush2.xpose.msra.mxu0 0.0
    %1861 = vmatprep.subr.mxu0 0.0
    %1862 = vmatpush2.xpose.msra.mxu0 0.0
    %1863 = vmatprep.subr.mxu0 0.0
    %1864 = vmatpush2.xpose.msra.mxu0 0.0
    %1865 = vmatprep.subr.mxu0 0.0
    %1866 = vmatpush2.xpose.msra.mxu0 0.0
    %1867 = vmatprep.subr.mxu0 0.0
    %1868 = vmatpush2.xpose.msra.mxu0 0.0
    %1869 = vmatprep.subr.mxu0 0.0
    %1870 = vmatpush2.xpose.msra.mxu0 0.0
    %1871 = vmatprep.subr.mxu0 0.0
    %1872 = vmatpush2.xpose.msra.mxu0 0.0
    %1873 = vmatprep.subr.mxu0 0.0
    %1874 = vmatpush2.xpose.msra.mxu0 0.0
    %1875 = vmatprep.mubr.f32.mxu0 0.0
    %1876 = vmatmul.mubr.f32.gmra.mxu0 %v1809
    %v1877 = vpop.f32.mrf.mxu0
    %v1878 = vadd.f32 0.0, %v1877
    %v1879 = vpop.f32.mrf.mxu0
    %1880 = vdwg.mxu0
    %v1882 = vrot.slane %v1878, 7
    %v1884 = vadd.f32 %v258, %v1882
    %v1885 = vsub.f32 0.0, %v1884
    %v1886 = vmul.f32 %v1885, 1.442695
    %v1887 = vpow.pop %v1886
    %v1888 = vadd.f32 %v1887, 1.0
    %v1889 = vrcp.pop %v1888
    %v1890 = vmul.f32 1.0, %v1889
    %v1891 = vtanh.pop %v1884
    %v1893 = vrot.slane %v1798, 1
    %v1895 = vmul.f32 %v1890, %v1893
    %1897 = vrot.lane.b32.xlu0 %v1891, 96
    %v1898 = vpop.permute.xlu0 %1897
    %v1900 = vmul.f32 %v1890, %v1898
    %1902 = vrot.lane.b32.xlu0 %v1900, 16
    %v1903 = vpop.permute.xlu0 %1902
    %v1905 = vadd.f32 %v1895, %v1903
    %v1906 = vtanh.pop %v1905
    %1908 = vrot.lane.b32.xlu0 %v1906, 32
    %v1909 = vpop.permute.xlu0 %1908
    %v1911 = vmul.f32 %v1890, %v1909
    %v1913 = vrot.slane %v1911, 1
    %1914 = vrot.lane.b32.xlu0 %v1913, 80
    %v1915 = vpop.permute.xlu0 %1914
    %v1916 = vsel %vm277, %v1915, 0
    %1918 = vmatprep.subr.mxu0 0.0
    %1919 = vmatpush1.xpose.msra.mxu0 0.0
    %1920 = vmatprep.subr.mxu0 0.0
    %1921 = vmatpush1.xpose.msra.mxu0 0.0
    %1922 = vmatprep.subr.mxu0 0.0
    %1923 = vmatpush1.xpose.msra.mxu0 0.0
    %1924 = vmatprep.subr.mxu0 0.0
    %1925 = vmatpush1.xpose.msra.mxu0 0.0
    %1926 = vmatprep.subr.mxu0 0.0
    %1927 = vmatpush1.xpose.msra.mxu0 0.0
    %1928 = vmatprep.subr.mxu0 0.0
    %1929 = vmatpush1.xpose.msra.mxu0 0.0
    %1930 = vmatprep.subr.mxu0 0.0
    %1931 = vmatpush1.xpose.msra.mxu0 0.0
    %1932 = vmatprep.subr.mxu0 0.0
    %1933 = vmatpush1.xpose.msra.mxu0 0.0
    %1934 = vmatprep.subr.mxu0 0.0
    %1935 = vmatpush1.xpose.msra.mxu0 %v1170
    %1936 = vmatprep.subr.mxu0 0.0
    %1937 = vmatpush1.xpose.msra.mxu0 %v1167
    %1938 = vmatprep.subr.mxu0 0.0
    %1939 = vmatpush1.xpose.msra.mxu0 %v1164
    %1940 = vmatprep.subr.mxu0 0.0
    %1941 = vmatpush1.xpose.msra.mxu0 %v1161
    %1942 = vmatprep.subr.mxu0 0.0
    %1943 = vmatpush1.xpose.msra.mxu0 %v1158
    %1944 = vmatprep.subr.mxu0 0.0
    %1945 = vmatpush1.xpose.msra.mxu0 %v1155
    %1946 = vmatprep.subr.mxu0 0.0
    %1947 = vmatpush1.xpose.msra.mxu0 %v1152
    %1948 = vmatprep.subr.mxu0 0.0
    %1949 = vmatpush1.xpose.msra.mxu0 %v1149
    %1950 = vmatprep.subr.mxu0 0.0
    %1951 = vmatpush2.xpose.msra.mxu0 0.0
    %1952 = vmatprep.subr.mxu0 0.0
    %1953 = vmatpush2.xpose.msra.mxu0 0.0
    %1954 = vmatprep.subr.mxu0 0.0
    %1955 = vmatpush2.xpose.msra.mxu0 0.0
    %1956 = vmatprep.subr.mxu0 0.0
    %1957 = vmatpush2.xpose.msra.mxu0 0.0
    %1958 = vmatprep.subr.mxu0 0.0
    %1959 = vmatpush2.xpose.msra.mxu0 0.0
    %1960 = vmatprep.subr.mxu0 0.0
    %1961 = vmatpush2.xpose.msra.mxu0 0.0
    %1962 = vmatprep.subr.mxu0 0.0
    %1963 = vmatpush2.xpose.msra.mxu0 0.0
    %1964 = vmatprep.subr.mxu0 0.0
    %1965 = vmatpush2.xpose.msra.mxu0 0.0
    %1966 = vmatprep.subr.mxu0 0.0
    %1967 = vmatpush2.xpose.msra.mxu0 0.0
    %1968 = vmatprep.subr.mxu0 0.0
    %1969 = vmatpush2.xpose.msra.mxu0 0.0
    %1970 = vmatprep.subr.mxu0 0.0
    %1971 = vmatpush2.xpose.msra.mxu0 0.0
    %1972 = vmatprep.subr.mxu0 0.0
    %1973 = vmatpush2.xpose.msra.mxu0 0.0
    %1974 = vmatprep.subr.mxu0 0.0
    %1975 = vmatpush2.xpose.msra.mxu0 0.0
    %1976 = vmatprep.subr.mxu0 0.0
    %1977 = vmatpush2.xpose.msra.mxu0 0.0
    %1978 = vmatprep.subr.mxu0 0.0
    %1979 = vmatpush2.xpose.msra.mxu0 0.0
    %1980 = vmatprep.subr.mxu0 0.0
    %1981 = vmatpush2.xpose.msra.mxu0 0.0
    %1982 = vmatprep.mubr.f32.mxu0 0.0
    %1983 = vmatmul.mubr.f32.gmra.mxu0 %v1916
    %v1984 = vpop.f32.mrf.mxu0
    %v1985 = vadd.f32 0.0, %v1984
    %v1986 = vpop.f32.mrf.mxu0
    %1987 = vdwg.mxu0
    %v1988 = vadd.f32 %v258, %v1985
    %v1989 = vsub.f32 0.0, %v1988
    %v1990 = vmul.f32 %v1989, 1.442695
    %v1991 = vpow.pop %v1990
    %v1992 = vadd.f32 %v1991, 1.0
    %v1993 = vrcp.pop %v1992
    %v1994 = vmul.f32 1.0, %v1993
    %v1995 = vtanh.pop %v1988
    %v1997 = vrot.slane %v1905, 1
    %v1999 = vmul.f32 %v1994, %v1997
    %2001 = vrot.lane.b32.xlu0 %v1995, 96
    %v2002 = vpop.permute.xlu0 %2001
    %v2004 = vmul.f32 %v1994, %v2002
    %2006 = vrot.lane.b32.xlu0 %v2004, 16
    %v2007 = vpop.permute.xlu0 %2006
    %v2009 = vadd.f32 %v1999, %v2007
    %v2010 = vtanh.pop %v2009
    %2012 = vrot.lane.b32.xlu0 %v2010, 32
    %v2013 = vpop.permute.xlu0 %2012
    %v2015 = vmul.f32 %v1994, %v2013
    %vm2016 = vcmask 1040384
    %v2017 = vsel %vm2016, %v399, %v505
    %vm2018 = vcmask 1041408
    %v2019 = vsel %vm2018, %v2017, %v612
    %vm2020 = vcmask 1042432
    %v2021 = vsel %vm2020, %v2019, %v719
    %vm2022 = vcmask 1043456
    %v2023 = vsel %vm2022, %v2021, %v826
    %vm2024 = vcmask 1044480
    %v2025 = vsel %vm2024, %v2023, %v933
    %vm2026 = vcmask 1045504
    %v2027 = vsel %vm2026, %v2025, %v1040
    %vm2028 = vcmask 1046528
    %v2029 = vsel %vm2028, %v2027, %v1147
    %v2030 = vsel %vm2016, %v2015, %v1911
    %v2031 = vsel %vm2018, %v2030, %v1804
    %v2032 = vsel %vm2020, %v2031, %v1697
    %v2033 = vsel %vm2022, %v2032, %v1590
    %v2034 = vsel %vm2024, %v2033, %v1483
    %v2035 = vsel %vm2026, %v2034, %v1376
    %v2036 = vsel %vm2028, %v2035, %v1269
    %2038 = vrot.lane.b32.xlu0 %v2029, 80
    %v2039 = vpop.permute.xlu0 %2038
    %2042 = vrot.lane.b32.xlu0 %v2036, 96
    %v2043 = vpop.permute.xlu0 %2042
    %v2045 = vsel %vm277, %v2039, %v2043
    %v2046 = vld [vmem:[%s7] sm:$0xff]
    %v2047 = vld [vmem:[%s7 + $0x8] sm:$0xff]
    %v2048 = vld [vmem:[%s7 + $0x10] sm:$0xff]
    %v2049 = vld [vmem:[%s7 + $0x18] sm:$0xff]
    %v2050 = vld [vmem:[%s8] sm:$0x1]
    %v2052 = vlaneseq
    %v2053 = vshrl.u32 %v2052, 7
    %v2054 = vsub.s32 0, %v2053
    %v2055 = vrot.slane %v2050, %v2054
    %v2058 = vsel %vm54, %v2045, 0
    %v2061 = vsel %vm54, %v2046, 0
    %v2064 = vsel %vm54, %v2047, 0
    %v2067 = vsel %vm54, %v2048, 0
    %v2070 = vsel %vm54, %v2049, 0
    %2072 = vmatprep.subr.mxu0 0.0
    %2073 = vmatpush1.xpose.msra.mxu0 0.0
    %2074 = vmatprep.subr.mxu0 0.0
    %2075 = vmatpush1.xpose.msra.mxu0 0.0
    %2076 = vmatprep.subr.mxu0 0.0
    %2077 = vmatpush1.xpose.msra.mxu0 0.0
    %2078 = vmatprep.subr.mxu0 0.0
    %2079 = vmatpush1.xpose.msra.mxu0 0.0
    %2080 = vmatprep.subr.mxu0 0.0
    %2081 = vmatpush1.xpose.msra.mxu0 0.0
    %2082 = vmatprep.subr.mxu0 0.0
    %2083 = vmatpush1.xpose.msra.mxu0 0.0
    %2084 = vmatprep.subr.mxu0 0.0
    %2085 = vmatpush1.xpose.msra.mxu0 0.0
    %2086 = vmatprep.subr.mxu0 0.0
    %2087 = vmatpush1.xpose.msra.mxu0 0.0
    %2088 = vmatprep.subr.mxu0 0.0
    %2089 = vmatpush1.xpose.msra.mxu0 0.0
    %2090 = vmatprep.subr.mxu0 0.0
    %2091 = vmatpush1.xpose.msra.mxu0 0.0
    %2092 = vmatprep.subr.mxu0 0.0
    %2093 = vmatpush1.xpose.msra.mxu0 0.0
    %2094 = vmatprep.subr.mxu0 0.0
    %2095 = vmatpush1.xpose.msra.mxu0 0.0
    %2096 = vmatprep.subr.mxu0 0.0
    %2097 = vmatpush1.xpose.msra.mxu0 %v2070
    %2098 = vmatprep.subr.mxu0 0.0
    %2099 = vmatpush1.xpose.msra.mxu0 %v2067
    %2100 = vmatprep.subr.mxu0 0.0
    %2101 = vmatpush1.xpose.msra.mxu0 %v2064
    %2102 = vmatprep.subr.mxu0 0.0
    %2103 = vmatpush1.xpose.msra.mxu0 %v2061
    %2104 = vmatprep.subr.mxu0 0.0
    %2105 = vmatpush2.xpose.msra.mxu0 0.0
    %2106 = vmatprep.subr.mxu0 0.0
    %2107 = vmatpush2.xpose.msra.mxu0 0.0
    %2108 = vmatprep.subr.mxu0 0.0
    %2109 = vmatpush2.xpose.msra.mxu0 0.0
    %2110 = vmatprep.subr.mxu0 0.0
    %2111 = vmatpush2.xpose.msra.mxu0 0.0
    %2112 = vmatprep.subr.mxu0 0.0
    %2113 = vmatpush2.xpose.msra.mxu0 0.0
    %2114 = vmatprep.subr.mxu0 0.0
    %2115 = vmatpush2.xpose.msra.mxu0 0.0
    %2116 = vmatprep.subr.mxu0 0.0
    %2117 = vmatpush2.xpose.msra.mxu0 0.0
    %2118 = vmatprep.subr.mxu0 0.0
    %2119 = vmatpush2.xpose.msra.mxu0 0.0
    %2120 = vmatprep.subr.mxu0 0.0
    %2121 = vmatpush2.xpose.msra.mxu0 0.0
    %2122 = vmatprep.subr.mxu0 0.0
    %2123 = vmatpush2.xpose.msra.mxu0 0.0
    %2124 = vmatprep.subr.mxu0 0.0
    %2125 = vmatpush2.xpose.msra.mxu0 0.0
    %2126 = vmatprep.subr.mxu0 0.0
    %2127 = vmatpush2.xpose.msra.mxu0 0.0
    %2128 = vmatprep.subr.mxu0 0.0
    %2129 = vmatpush2.xpose.msra.mxu0 0.0
    %2130 = vmatprep.subr.mxu0 0.0
    %2131 = vmatpush2.xpose.msra.mxu0 0.0
    %2132 = vmatprep.subr.mxu0 0.0
    %2133 = vmatpush2.xpose.msra.mxu0 0.0
    %2134 = vmatprep.subr.mxu0 0.0
    %2135 = vmatpush2.xpose.msra.mxu0 0.0
    %2136 = vmatprep.mubr.f32.mxu0 0.0
    %2137 = vmatmul.mubr.f32.gmra.mxu0 %v2058
    %v2138 = vpop.f32.mrf.mxu0
    %v2139 = vadd.f32 %v2055, %v2138
    %v2140 = vpop.f32.mrf.mxu0
    %2141 = vdwg.mxu0
    %v2142 = vtanh.pop %v2139
    %v2143 = vld [vmem:[%s9] sm:$0xff]
    %v2144 = vld [vmem:[%s9 + $0x8] sm:$0xff]
    %v2145 = vld [vmem:[%s9 + $0x10] sm:$0xff]
    %v2146 = vld [vmem:[%s9 + $0x18] sm:$0xff]
    %v2148 = vsel %vm54, %v2142, 0
    %2150 = vmatprep.subr.mxu0 0.0
    %2151 = vmatpush1.msra.mxu0 0.0
    %2152 = vmatprep.subr.mxu0 0.0
    %2153 = vmatpush1.msra.mxu0 0.0
    %2154 = vmatprep.subr.mxu0 0.0
    %2155 = vmatpush1.msra.mxu0 0.0
    %2156 = vmatprep.subr.mxu0 0.0
    %2157 = vmatpush1.msra.mxu0 0.0
    %2158 = vmatprep.subr.mxu0 0.0
    %2159 = vmatpush1.msra.mxu0 0.0
    %2160 = vmatprep.subr.mxu0 0.0
    %2161 = vmatpush1.msra.mxu0 0.0
    %2162 = vmatprep.subr.mxu0 0.0
    %2163 = vmatpush1.msra.mxu0 0.0
    %2164 = vmatprep.subr.mxu0 0.0
    %2165 = vmatpush1.msra.mxu0 0.0
    %2166 = vmatprep.subr.mxu0 0.0
    %2167 = vmatpush1.msra.mxu0 0.0
    %2168 = vmatprep.subr.mxu0 0.0
    %2169 = vmatpush1.msra.mxu0 0.0
    %2170 = vmatprep.subr.mxu0 0.0
    %2171 = vmatpush1.msra.mxu0 0.0
    %2172 = vmatprep.subr.mxu0 0.0
    %2173 = vmatpush1.msra.mxu0 0.0
    %2174 = vmatprep.subr.mxu0 0.0
    %2175 = vmatpush1.msra.mxu0 %v2146
    %2176 = vmatprep.subr.mxu0 0.0
    %2177 = vmatpush1.msra.mxu0 %v2145
    %2178 = vmatprep.subr.mxu0 0.0
    %2179 = vmatpush1.msra.mxu0 %v2144
    %2180 = vmatprep.subr.mxu0 0.0
    %2181 = vmatpush1.msra.mxu0 %v2143
    %2182 = vmatprep.subr.mxu0 0.0
    %2183 = vmatpush2.msra.mxu0 0.0
    %2184 = vmatprep.subr.mxu0 0.0
    %2185 = vmatpush2.msra.mxu0 0.0
    %2186 = vmatprep.subr.mxu0 0.0
    %2187 = vmatpush2.msra.mxu0 0.0
    %2188 = vmatprep.subr.mxu0 0.0
    %2189 = vmatpush2.msra.mxu0 0.0
    %2190 = vmatprep.subr.mxu0 0.0
    %2191 = vmatpush2.msra.mxu0 0.0
    %2192 = vmatprep.subr.mxu0 0.0
    %2193 = vmatpush2.msra.mxu0 0.0
    %2194 = vmatprep.subr.mxu0 0.0
    %2195 = vmatpush2.msra.mxu0 0.0
    %2196 = vmatprep.subr.mxu0 0.0
    %2197 = vmatpush2.msra.mxu0 0.0
    %2198 = vmatprep.subr.mxu0 0.0
    %2199 = vmatpush2.msra.mxu0 0.0
    %2200 = vmatprep.subr.mxu0 0.0
    %2201 = vmatpush2.msra.mxu0 0.0
    %2202 = vmatprep.subr.mxu0 0.0
    %2203 = vmatpush2.msra.mxu0 0.0
    %2204 = vmatprep.subr.mxu0 0.0
    %2205 = vmatpush2.msra.mxu0 0.0
    %2206 = vmatprep.subr.mxu0 0.0
    %2207 = vmatpush2.msra.mxu0 0.0
    %2208 = vmatprep.subr.mxu0 0.0
    %2209 = vmatpush2.msra.mxu0 0.0
    %2210 = vmatprep.subr.mxu0 0.0
    %2211 = vmatpush2.msra.mxu0 0.0
    %2212 = vmatprep.subr.mxu0 0.0
    %2213 = vmatpush2.msra.mxu0 0.0
    %2214 = vmatprep.mubr.f32.mxu0 0.0
    %2215 = vmatmul.mubr.f32.gmra.mxu0 %v2148
    %v2216 = vpop.f32.mrf.mxu0
    %v2217 = vadd.f32 0.0, %v2216
    %v2218 = vpop.f32.mrf.mxu0
    %2219 = vdwg.mxu0
    %vm2220 = vcmask 7168
    %v2221 = vsel %vm2220, %v2217, -inf
    %v2222 = vrot.slane %v2221, 4
    %v2223 = vmax.f32 %v2221, %v2222
    %v2224 = vrot.slane %v2223, 2
    %v2225 = vmax.f32 %v2223, %v2224
    %v2226 = vrot.slane %v2225, 1
    %v2227 = vmax.f32 %v2225, %v2226
    %v2228 = vsub.f32 %v2217, %v2227
    %v2229 = vmul.f32 %v2228, 1.442695
    %v2230 = vpow.pop %v2229
    %v2231 = vsel %vm2220, %v2230, 0.0
    %v2232 = vrot.slane %v2231, 4
    %v2233 = vadd.f32 %v2231, %v2232
    %v2234 = vrot.slane %v2233, 2
    %v2235 = vadd.f32 %v2233, %v2234
    %v2236 = vrot.slane %v2235, 1
    %v2237 = vadd.f32 %v2235, %v2236
    %v2238 = vrcp.pop %v2237
    %v2239 = vmul.f32 %v2230, %v2238
    %2240 = vst.msk [vmem:[%s11] sm:$0xff] %vm2220, %v2239
    %2242 = vset.pattern.permute.xlu0 0
    %2243 = vperm.xlu0 %2242, %v2239
    %v2244 = vpop.permute.xlu0 %2243
    %v2246 = vmul.f32 %v2045, %v2244
    %v2247 = vsel %vm54, %v2246, 0.0
    %v2248 = vrot.slane %v2247, 4
    %v2249 = vadd.f32 %v2247, %v2248
    %v2250 = vrot.slane %v2249, 2
    %v2251 = vadd.f32 %v2249, %v2250
    %v2252 = vrot.slane %v2251, 1
    %v2253 = vadd.f32 %v2251, %v2252
    %vm2254 = vcmask 253952
    %2255 = vst.msk [vmem:[#allocation2] sm:$0x1] %vm2254, %v2253
    // Predicated region
    $region42: #{tpu_custom_call.1} parent=1 // pred_check
      _
    $region43: #{tpu_custom_call.1} parent=1 // pred_check_branch
      %2257 = sbr.rel (0) target = $region45
    $region44: #{tpu_custom_call.1} parent=1 // pred_region
      %s2259 = ssub.s32 16, 16
      %2260 = vsyncadd [#allocation3], %s2259
      %s2262 = sshll.u32 [#allocation2], 4
      %s2263 = int_to_ptr.vmem [resolvable:$true] %s2262
      %2265 = dma.vmem_to_hbm [thread:$0]  %s2263, 16, %s10, [#allocation3]
    $region45: #{tpu_custom_call.1} parent=1 // pred_fallthru
      _
    // Predicated region
    $region46: #{tpu_custom_call.1} parent=1 // pred_check
      _
    $region47: #{tpu_custom_call.1} parent=1 // pred_check_branch
      %2267 = sbr.rel (0) target = $region49
    $region48: #{tpu_custom_call.1} parent=1 // pred_region
      _
    $region49: #{tpu_custom_call.1} parent=1 // pred_fallthru
      _
    // Predicated region
    $region50: #{tpu_custom_call.1} parent=1 // pred_check
      _
    $region51: #{tpu_custom_call.1} parent=1 // pred_check_branch
      %2269 = sbr.rel (0) target = $region53
    $region52: #{tpu_custom_call.1} parent=1 // pred_region
      %2270 = dma.done [#allocation3], 16
    $region53: #{tpu_custom_call.1} parent=1 // pred_fallthru
      _
    // Predicated region
    $region54: #{tpu_custom_call.1} parent=1 // pred_check
      _
    $region55: #{tpu_custom_call.1} parent=1 // pred_check_branch
      %2272 = sbr.rel (0) target = $region57
    $region56: #{tpu_custom_call.1} parent=1 // pred_region
      _
    $region57: #{tpu_custom_call.1} parent=1 // pred_fallthru
      _
    %2273 = vsyncpa [#allocation3], 1

</llo_original>
